<compile_context>
chip_gen: v7x
topology: tpu7x:2x2x1
jax: 0.10.0
libtpu: 0.0.40
codegen_flags: <defaults>
</compile_context>

<pallas_src>
import jax
import jax.numpy as jnp
from jax.experimental import pallas as pl
from jax.experimental.pallas import tpu as pltpu


# ----------------------------------------------------------------------------
# Pallas kernels
# ----------------------------------------------------------------------------

def _make_conv_kernel(KH, KW, Wb, L, Cout, Cr, res_lo):
    """Fused conv (in-VMEM im2col) + folded-BN bias + optional residual + ReLU.

    Refs (per image, leading batch dim squeezed away by BlockSpec `None`):
      x_ref : (Ce, Hb*Wb)   bf16  flat spatially-padded image (stride-1 view)
      w_ref : (Cout, K)     bf16  K = KH*KW*Ce, BN scale already folded in
      b_ref : (Cout, 1)     f32   folded BN bias
      res_ref (optional): (Cr, L) bf16 residual; zero-extended in-kernel into
                          channels [res_lo, res_lo+Cr) when Cr < Cout
      o_ref : (Cout, L)     bf16  lane-dense output slab (L = whole spatial)
    """

    def _compute(x_ref, w_ref, b_ref, res_ref):
        # In-VMEM im2col: each tap is a contiguous lane-slice of the flat image;
        # stack taps along sublanes -> (K, L) slab, one wide-K matmul.
        taps = []
        for kh in range(KH):
            for kw in range(KW):
                s = kh * Wb + kw
                taps.append(x_ref[:, s:s + L])
        slab = jnp.concatenate(taps, axis=0)                         # (K, L)
        acc = jnp.dot(w_ref[...], slab,
                      preferred_element_type=jnp.float32)            # (Cout, L)
        acc = acc + b_ref[...]                                       # bias
        if res_ref is not None:
            r = res_ref[...].astype(jnp.float32)                     # (Cr, L)
            if Cr == Cout:
                acc = acc + r
            else:
                # option-'A' shortcut: zero-extend channels in-kernel
                pieces = []
                if res_lo > 0:
                    pieces.append(jnp.zeros((res_lo, L), jnp.float32))
                pieces.append(r)
                hi = Cout - res_lo - Cr
                if hi > 0:
                    pieces.append(jnp.zeros((hi, L), jnp.float32))
                acc = acc + jnp.concatenate(pieces, axis=0)
        return jnp.maximum(acc, 0.0)

    if Cr is None:
        def kernel(x_ref, w_ref, b_ref, o_ref):
            o_ref[...] = _compute(x_ref, w_ref, b_ref, None).astype(o_ref.dtype)
    else:
        def kernel(x_ref, w_ref, b_ref, res_ref, o_ref):
            o_ref[...] = _compute(x_ref, w_ref, b_ref, res_ref).astype(o_ref.dtype)
    return kernel


def pool_linear_kernel(x_ref, w_ref, b_ref, o_ref):
    """Global average pool over the flat spatial (lane) axis + Linear.

    x_ref: (C, HW) bf16, w_ref: (nc, C) f32, b_ref: (nc, 1) f32, o_ref: (nc, 1) f32
    """
    pooled = jnp.mean(x_ref[...].astype(jnp.float32), axis=-1, keepdims=True)
    o_ref[...] = (jnp.dot(w_ref[...], pooled,
                          preferred_element_type=jnp.float32) + b_ref[...]
                  ).astype(o_ref.dtype)


# ----------------------------------------------------------------------------
# Wrappers around pallas_call
# ----------------------------------------------------------------------------

def conv3x3_bn_relu(x, w, scale, bias, stride, residual=None):
    """3x3 conv (pad=1, stride 1|2) + folded BN + optional residual + ReLU.

    x        : (N, Cin, H, W)     (NCHW, any float dtype; cast to bf16)
    w        : (Cout, Cin, 3, 3)  f32
    scale    : (Cout,)            folded BN scale (multiplied into w)
    bias     : (Cout,)            folded BN bias
    residual : (N, Cr, Ho, Wo) or None (Cr == Cout or Cr < Cout, option-'A')
    returns  : (N, Cout, Ho, Wo) bf16
    """
    N, Cin, H, W = x.shape
    Cout = w.shape[0]
    Ho, Wo = H // stride, W // stride

    # Fold BN scale into the weight output-channel rows (f32, before bf16 cast).
    wf = w.astype(jnp.float32) * scale.astype(jnp.float32)[:, None, None, None]

    # Pad tiny channel counts (stem Cin=3) to a bf16-sublane multiple.
    if Cin % 16 != 0:
        cpad = 16 - Cin % 16
        x = jnp.pad(x, ((0, 0), (0, cpad), (0, 0), (0, 0)))
        wf = jnp.pad(wf, ((0, 0), (0, cpad), (0, 0), (0, 0)))
        Cin += cpad

    xp = jnp.pad(x.astype(jnp.bfloat16), ((0, 0), (0, 0), (1, 1), (1, 1)))
    Hp, Wp = H + 2, W + 2

    if stride == 1:
        KH = KW = 3
        Ce, Hb, Wb = Cin, Hp, Wp
        x_in = xp.reshape(N, Ce, Hb * Wb)
        w_mat = jnp.transpose(wf, (0, 2, 3, 1)).reshape(Cout, 9 * Cin)
    else:
        assert stride == 2 and H % 2 == 0 and W % 2 == 0
        # space-to-depth on the padded input: a stride-2 3x3 conv becomes a
        # stride-1 2x2 conv over (N, 4*Cin, Hp/2, Wp/2).
        KH = KW = 2
        Ce, Hb, Wb = 4 * Cin, Hp // 2, Wp // 2
        x_in = (xp.reshape(N, Cin, Hb, 2, Wb, 2)
                  .transpose(0, 1, 3, 5, 2, 4)          # (N, c, ph, pw, hb, wb)
                  .reshape(N, Ce, Hb * Wb))
        wp = jnp.pad(wf, ((0, 0), (0, 0), (0, 1), (0, 1)))     # kh,kw -> 4
        wp = wp.reshape(Cout, Cin, 2, 2, 2, 2)                 # (o,c,bh,ph,bw,pw)
        w_mat = jnp.transpose(wp, (0, 2, 4, 1, 3, 5)).reshape(Cout, 16 * Cin)

    K = KH * KW * Ce
    L = (Ho - 1) * Wb + Wo          # wide-flat output length (few garbage cols)
    w_mat = w_mat.astype(jnp.bfloat16)
    b2 = bias.reshape(Cout, 1).astype(jnp.float32)

    if residual is not None:
        Cr = residual.shape[1]
        res_lo = (Cout - Cr) // 2
        rw = jnp.pad(residual.astype(jnp.bfloat16),
                     ((0, 0), (0, 0), (0, 0), (0, Wb - Wo)))
        res_flat = rw.reshape(N, Cr, Ho * Wb)[:, :, :L]
    else:
        Cr, res_lo, res_flat = None, 0, None

    kernel = _make_conv_kernel(KH, KW, Wb, L, Cout, Cr, res_lo)

    in_specs = [
        pl.BlockSpec((None, Ce, Hb * Wb), lambda n: (n, 0, 0)),
        pl.BlockSpec((Cout, K), lambda n: (0, 0)),
        pl.BlockSpec((Cout, 1), lambda n: (0, 0)),
    ]
    args = [x_in, w_mat, b2]
    if res_flat is not None:
        in_specs.append(pl.BlockSpec((None, Cr, L), lambda n: (n, 0, 0)))
        args.append(res_flat)

    out = pl.pallas_call(
        kernel,
        out_shape=jax.ShapeDtypeStruct((N, Cout, L), jnp.bfloat16),
        grid_spec=pltpu.PrefetchScalarGridSpec(
            num_scalar_prefetch=0,
            grid=(N,),
            in_specs=in_specs,
            out_specs=pl.BlockSpec((None, Cout, L), lambda n: (n, 0, 0)),
        ),
        compiler_params=pltpu.CompilerParams(
            dimension_semantics=("parallel",)),
    )(*args)

    # Strip the wide-flat padding columns (cheap XLA layout plumbing).
    out = jnp.pad(out, ((0, 0), (0, 0), (0, Ho * Wb - L)))
    return out.reshape(N, Cout, Ho, Wb)[:, :, :, :Wo]


def pool_linear(x_nchw, lin_w, lin_b):
    """Global avg-pool over HxW + Linear(num_classes), tiled over batch."""
    N, C, H, W = x_nchw.shape
    nc = lin_w.shape[0]
    x3 = x_nchw.reshape(N, C, H * W).astype(jnp.bfloat16)
    w2 = lin_w.astype(jnp.float32)                       # (nc, C)
    b2 = lin_b.reshape(nc, 1).astype(jnp.float32)

    out = pl.pallas_call(
        pool_linear_kernel,
        out_shape=jax.ShapeDtypeStruct((N, nc, 1), jnp.float32),
        grid_spec=pltpu.PrefetchScalarGridSpec(
            num_scalar_prefetch=0,
            grid=(N,),
            in_specs=[
                pl.BlockSpec((None, C, H * W), lambda n: (n, 0, 0)),
                pl.BlockSpec((nc, C), lambda n: (0, 0)),
                pl.BlockSpec((nc, 1), lambda n: (0, 0)),
            ],
            out_specs=pl.BlockSpec((None, nc, 1), lambda n: (n, 0, 0)),
        ),
        compiler_params=pltpu.CompilerParams(
            dimension_semantics=("parallel",)),
    )(x3, w2, b2)
    return out.reshape(N, nc)


# ----------------------------------------------------------------------------
# Model: parameters + forward
# ----------------------------------------------------------------------------

def _kaiming(key, shape, fan_in):
    return (jax.random.normal(key, shape, jnp.float32)
            * jnp.sqrt(2.0 / fan_in)).astype(jnp.float32)


def _bn_folded(key, c, eps=1e-5):
    k1, k2, k3, k4 = jax.random.split(key, 4)
    gamma = 1.0 + 0.1 * jax.random.normal(k1, (c,), jnp.float32)
    beta = 0.1 * jax.random.normal(k2, (c,), jnp.float32)
    mean = 0.1 * jax.random.normal(k3, (c,), jnp.float32)
    var = 1.0 + 0.1 * jax.random.uniform(k4, (c,), jnp.float32)
    scale = gamma / jnp.sqrt(var + eps)
    bias = beta - mean * scale
    return scale, bias


def _make_block_params(key, cin, cout):
    k = jax.random.split(key, 4)
    w1 = _kaiming(k[0], (cout, cin, 3, 3), cin * 9)
    s1, b1 = _bn_folded(k[1], cout)
    w2 = _kaiming(k[2], (cout, cout, 3, 3), cout * 9)
    s2, b2 = _bn_folded(k[3], cout)
    return dict(w1=w1, s1=s1, b1=b1, w2=w2, s2=s2, b2=b2)


def make_resnet_params(key, num_blocks=(1, 1, 1), num_classes=10):
    n_keys = 3 + sum(num_blocks)
    keys = list(jax.random.split(key, n_keys))
    ki = iter(keys)

    params = {}
    params["conv1_w"] = _kaiming(next(ki), (16, 3, 3, 3), 3 * 9)
    params["bn1_s"], params["bn1_b"] = _bn_folded(next(ki), 16)

    in_planes = 16
    for li, (planes, nb) in enumerate(zip((16, 32, 64), num_blocks), start=1):
        blocks = []
        for _ in range(nb):
            blocks.append(_make_block_params(next(ki), in_planes, planes))
            in_planes = planes
        params[f"layer{li}"] = blocks

    klin = next(ki)
    params["lin_w"] = _kaiming(klin, (num_classes, 64), 64)
    params["lin_b"] = (0.01 * jax.random.normal(
        jax.random.fold_in(klin, 1), (num_classes,), jnp.float32))
    return params


def _basic_block_forward(x, p, stride):
    Cin = x.shape[1]
    Cout = p["w1"].shape[0]

    # conv1 + bn1 + relu (no residual)
    h = conv3x3_bn_relu(x, p["w1"], p["s1"], p["b1"], stride)

    # option 'A' shortcut: spatial subsample only; channel zero-extension is
    # done inside the conv2 kernel (no HBM pad).
    if stride != 1 or Cin != Cout:
        sc = x[:, :, ::stride, ::stride]
    else:
        sc = x

    # conv2 + bn2 + residual + relu (fused epilogue)
    return conv3x3_bn_relu(h, p["w2"], p["s2"], p["b2"], 1, residual=sc)


def resnet_forward(x_nchw, params):
    x = x_nchw.astype(jnp.bfloat16)       # NCHW kept throughout (no transpose)

    out = conv3x3_bn_relu(x, params["conv1_w"], params["bn1_s"],
                          params["bn1_b"], stride=1)

    for li, stride0 in zip((1, 2, 3), (1, 2, 2)):
        for bi, p in enumerate(params[f"layer{li}"]):
            out = _basic_block_forward(out, p, stride0 if bi == 0 else 1)

    return pool_linear(out, params["lin_w"], params["lin_b"])


# ----------------------------------------------------------------------------
if __name__ == "__main__":
    key = jax.random.PRNGKey(0)
    kx, kp = jax.random.split(key)

    # small CIFAR-like input: batch=2, 3 channels, 16x16 spatial (NCHW, like torch)
    x = jax.random.normal(kx, (2, 3, 16, 16), jnp.float32)
    params = make_resnet_params(kp, num_blocks=(1, 1, 1), num_classes=10)

    fwd = jax.jit(resnet_forward)
    logits = fwd(x, params)
    jax.block_until_ready(logits)

    assert logits.shape == (2, 10), logits.shape
    assert logits.dtype == jnp.float32
    assert bool(jnp.all(jnp.isfinite(logits)))
    print("KERNEL_OK")
</pallas_src>

<mosaic_0001>
module attributes {stable_mosaic.version = 11 : i64} {
  func.func @kernel(%arg0: i32, %arg1: memref<1x16x324xbf16, #tpu.memory_space<vmem>>, %arg2: memref<16x144xbf16, #tpu.memory_space<vmem>>, %arg3: memref<16x1xf32, #tpu.memory_space<vmem>>, %arg4: memref<1x16x286xbf16, #tpu.memory_space<vmem>>) attributes {dimension_semantics = [#tpu.dimension_semantics<parallel>], iteration_bounds = array<i64: 2>, scalar_prefetch = 0 : i64, scratch_operands = 0 : i64, tpu.core_type = #tpu.core_type<tc>, window_params = [{transform_indices = @transform_0, window_bounds = array<i64: 1, 16, 324>}, {pipeline_mode = #tpu.pipeline_mode<synchronous>, transform_indices = @transform_1, window_bounds = array<i64: 16, 144>}, {pipeline_mode = #tpu.pipeline_mode<synchronous>, transform_indices = @transform_2, window_bounds = array<i64: 16, 1>}, {transform_indices = @transform_3, window_bounds = array<i64: 1, 16, 286>}]} {
    %c0 = arith.constant 0 : index
    %c0_0 = arith.constant 0 : index
    %c0_1 = arith.constant 0 : index
    %0 = vector.load %arg1[%c0, %c0_0, %c0_1] : memref<1x16x324xbf16, #tpu.memory_space<vmem>>, vector<1x16x286xbf16>
    %1 = vector.shape_cast %0 : vector<1x16x286xbf16> to vector<16x286xbf16>
    %c0_2 = arith.constant 0 : index
    %c0_3 = arith.constant 0 : index
    %c1 = arith.constant 1 : index
    %2 = vector.load %arg1[%c0_2, %c0_3, %c1] : memref<1x16x324xbf16, #tpu.memory_space<vmem>>, vector<1x16x286xbf16>
    %3 = vector.shape_cast %2 : vector<1x16x286xbf16> to vector<16x286xbf16>
    %c0_4 = arith.constant 0 : index
    %c0_5 = arith.constant 0 : index
    %c2 = arith.constant 2 : index
    %4 = vector.load %arg1[%c0_4, %c0_5, %c2] : memref<1x16x324xbf16, #tpu.memory_space<vmem>>, vector<1x16x286xbf16>
    %5 = vector.shape_cast %4 : vector<1x16x286xbf16> to vector<16x286xbf16>
    %c0_6 = arith.constant 0 : index
    %c0_7 = arith.constant 0 : index
    %c18 = arith.constant 18 : index
    %6 = vector.load %arg1[%c0_6, %c0_7, %c18] : memref<1x16x324xbf16, #tpu.memory_space<vmem>>, vector<1x16x286xbf16>
    %7 = vector.shape_cast %6 : vector<1x16x286xbf16> to vector<16x286xbf16>
    %c0_8 = arith.constant 0 : index
    %c0_9 = arith.constant 0 : index
    %c19 = arith.constant 19 : index
    %8 = vector.load %arg1[%c0_8, %c0_9, %c19] : memref<1x16x324xbf16, #tpu.memory_space<vmem>>, vector<1x16x286xbf16>
    %9 = vector.shape_cast %8 : vector<1x16x286xbf16> to vector<16x286xbf16>
    %c0_10 = arith.constant 0 : index
    %c0_11 = arith.constant 0 : index
    %c20 = arith.constant 20 : index
    %10 = vector.load %arg1[%c0_10, %c0_11, %c20] : memref<1x16x324xbf16, #tpu.memory_space<vmem>>, vector<1x16x286xbf16>
    %11 = vector.shape_cast %10 : vector<1x16x286xbf16> to vector<16x286xbf16>
    %c0_12 = arith.constant 0 : index
    %c0_13 = arith.constant 0 : index
    %c36 = arith.constant 36 : index
    %12 = vector.load %arg1[%c0_12, %c0_13, %c36] : memref<1x16x324xbf16, #tpu.memory_space<vmem>>, vector<1x16x286xbf16>
    %13 = vector.shape_cast %12 : vector<1x16x286xbf16> to vector<16x286xbf16>
    %c0_14 = arith.constant 0 : index
    %c0_15 = arith.constant 0 : index
    %c37 = arith.constant 37 : index
    %14 = vector.load %arg1[%c0_14, %c0_15, %c37] : memref<1x16x324xbf16, #tpu.memory_space<vmem>>, vector<1x16x286xbf16>
    %15 = vector.shape_cast %14 : vector<1x16x286xbf16> to vector<16x286xbf16>
    %c0_16 = arith.constant 0 : index
    %c0_17 = arith.constant 0 : index
    %c38 = arith.constant 38 : index
    %16 = vector.load %arg1[%c0_16, %c0_17, %c38] : memref<1x16x324xbf16, #tpu.memory_space<vmem>>, vector<1x16x286xbf16>
    %17 = vector.shape_cast %16 : vector<1x16x286xbf16> to vector<16x286xbf16>
    %18 = tpu.concatenate %1, %3, %5, %7, %9, %11, %13, %15, %17 in 0 : vector<16x286xbf16>, vector<16x286xbf16>, vector<16x286xbf16>, vector<16x286xbf16>, vector<16x286xbf16>, vector<16x286xbf16>, vector<16x286xbf16>, vector<16x286xbf16>, vector<16x286xbf16> -> vector<144x286xbf16>
    %c0_18 = arith.constant 0 : index
    %c0_19 = arith.constant 0 : index
    %19 = vector.load %arg2[%c0_18, %c0_19] : memref<16x144xbf16, #tpu.memory_space<vmem>>, vector<16x144xbf16>
    %cst = arith.constant dense<0.000000e+00> : vector<16x286xf32>
    %20 = tpu.matmul %19, %18, %cst {dimension_numbers = #tpu.dot_dimension_numbers<[1], [0], [0], [1], [0, 0, 1, 1], [], []>} : vector<16x144xbf16>, vector<144x286xbf16>, vector<16x286xf32> -> vector<16x286xf32>
    %c0_20 = arith.constant 0 : index
    %c0_21 = arith.constant 0 : index
    %21 = vector.load %arg3[%c0_20, %c0_21] : memref<16x1xf32, #tpu.memory_space<vmem>>, vector<16x1xf32>
    %22 = vector.broadcast %21 : vector<16x1xf32> to vector<16x286xf32>
    %23 = arith.addf %20, %22 : vector<16x286xf32>
    %cst_22 = arith.constant 0.000000e+00 : f32
    %24 = vector.broadcast %cst_22 : f32 to vector<16x286xf32>
    %25 = arith.maximumf %23, %24 : vector<16x286xf32>
    %26 = arith.truncf %25 : vector<16x286xf32> to vector<16x286xbf16>
    %c0_23 = arith.constant 0 : index
    %c0_24 = arith.constant 0 : index
    %c0_25 = arith.constant 0 : index
    %27 = vector.load %arg4[%c0_23, %c0_24, %c0_25] : memref<1x16x286xbf16, #tpu.memory_space<vmem>>, vector<1x16x286xbf16>
    %28 = vector.shape_cast %27 : vector<1x16x286xbf16> to vector<16x286xbf16>
    %29 = vector.shape_cast %26 : vector<16x286xbf16> to vector<1x16x286xbf16>
    tpu.vector_store %arg4[%c0_23, %c0_24, %c0_25], %29 {strides = array<i32>} : memref<1x16x286xbf16, #tpu.memory_space<vmem>>, vector<1x16x286xbf16>,
    return
  }
  func.func @transform_0(%arg0: i32) -> (i32, i32, i32) {
    %c0_i32 = arith.constant 0 : i32
    %c0_i32_0 = arith.constant 0 : i32
    %c0_i32_1 = arith.constant 0 : i32
    return %arg0, %c0_i32, %c0_i32_0 : i32, i32, i32
  }
  func.func @transform_1(%arg0: i32) -> (i32, i32) {
    %c0_i32 = arith.constant 0 : i32
    %c0_i32_0 = arith.constant 0 : i32
    %c0_i32_1 = arith.constant 0 : i32
    return %c0_i32, %c0_i32_0 : i32, i32
  }
  func.func @transform_2(%arg0: i32) -> (i32, i32) {
    %c0_i32 = arith.constant 0 : i32
    %c0_i32_0 = arith.constant 0 : i32
    %c0_i32_1 = arith.constant 0 : i32
    return %c0_i32, %c0_i32_0 : i32, i32
  }
  func.func @transform_3(%arg0: i32) -> (i32, i32, i32) {
    %c0_i32 = arith.constant 0 : i32
    %c0_i32_0 = arith.constant 0 : i32
    %c0_i32_1 = arith.constant 0 : i32
    return %arg0, %c0_i32, %c0_i32_0 : i32, i32, i32
  }
}

module attributes {stable_mosaic.version = 11 : i64} {
  func.func @kernel(%arg0: i32, %arg1: memref<1x16x324xbf16, #tpu.memory_space<vmem>>, %arg2: memref<16x144xbf16, #tpu.memory_space<vmem>>, %arg3: memref<16x1xf32, #tpu.memory_space<vmem>>, %arg4: memref<1x16x286xbf16, #tpu.memory_space<vmem>>, %arg5: memref<1x16x286xbf16, #tpu.memory_space<vmem>>) attributes {dimension_semantics = [#tpu.dimension_semantics<parallel>], iteration_bounds = array<i64: 2>, scalar_prefetch = 0 : i64, scratch_operands = 0 : i64, tpu.core_type = #tpu.core_type<tc>, window_params = [{transform_indices = @transform_0, window_bounds = array<i64: 1, 16, 324>}, {pipeline_mode = #tpu.pipeline_mode<synchronous>, transform_indices = @transform_1, window_bounds = array<i64: 16, 144>}, {pipeline_mode = #tpu.pipeline_mode<synchronous>, transform_indices = @transform_2, window_bounds = array<i64: 16, 1>}, {transform_indices = @transform_3, window_bounds = array<i64: 1, 16, 286>}, {transform_indices = @transform_4, window_bounds = array<i64: 1, 16, 286>}]} {
    %c0 = arith.constant 0 : index
    %c0_0 = arith.constant 0 : index
    %c0_1 = arith.constant 0 : index
    %0 = vector.load %arg1[%c0, %c0_0, %c0_1] : memref<1x16x324xbf16, #tpu.memory_space<vmem>>, vector<1x16x286xbf16>
    %1 = vector.shape_cast %0 : vector<1x16x286xbf16> to vector<16x286xbf16>
    %c0_2 = arith.constant 0 : index
    %c0_3 = arith.constant 0 : index
    %c1 = arith.constant 1 : index
    %2 = vector.load %arg1[%c0_2, %c0_3, %c1] : memref<1x16x324xbf16, #tpu.memory_space<vmem>>, vector<1x16x286xbf16>
    %3 = vector.shape_cast %2 : vector<1x16x286xbf16> to vector<16x286xbf16>
    %c0_4 = arith.constant 0 : index
    %c0_5 = arith.constant 0 : index
    %c2 = arith.constant 2 : index
    %4 = vector.load %arg1[%c0_4, %c0_5, %c2] : memref<1x16x324xbf16, #tpu.memory_space<vmem>>, vector<1x16x286xbf16>
    %5 = vector.shape_cast %4 : vector<1x16x286xbf16> to vector<16x286xbf16>
    %c0_6 = arith.constant 0 : index
    %c0_7 = arith.constant 0 : index
    %c18 = arith.constant 18 : index
    %6 = vector.load %arg1[%c0_6, %c0_7, %c18] : memref<1x16x324xbf16, #tpu.memory_space<vmem>>, vector<1x16x286xbf16>
    %7 = vector.shape_cast %6 : vector<1x16x286xbf16> to vector<16x286xbf16>
    %c0_8 = arith.constant 0 : index
    %c0_9 = arith.constant 0 : index
    %c19 = arith.constant 19 : index
    %8 = vector.load %arg1[%c0_8, %c0_9, %c19] : memref<1x16x324xbf16, #tpu.memory_space<vmem>>, vector<1x16x286xbf16>
    %9 = vector.shape_cast %8 : vector<1x16x286xbf16> to vector<16x286xbf16>
    %c0_10 = arith.constant 0 : index
    %c0_11 = arith.constant 0 : index
    %c20 = arith.constant 20 : index
    %10 = vector.load %arg1[%c0_10, %c0_11, %c20] : memref<1x16x324xbf16, #tpu.memory_space<vmem>>, vector<1x16x286xbf16>
    %11 = vector.shape_cast %10 : vector<1x16x286xbf16> to vector<16x286xbf16>
    %c0_12 = arith.constant 0 : index
    %c0_13 = arith.constant 0 : index
    %c36 = arith.constant 36 : index
    %12 = vector.load %arg1[%c0_12, %c0_13, %c36] : memref<1x16x324xbf16, #tpu.memory_space<vmem>>, vector<1x16x286xbf16>
    %13 = vector.shape_cast %12 : vector<1x16x286xbf16> to vector<16x286xbf16>
    %c0_14 = arith.constant 0 : index
    %c0_15 = arith.constant 0 : index
    %c37 = arith.constant 37 : index
    %14 = vector.load %arg1[%c0_14, %c0_15, %c37] : memref<1x16x324xbf16, #tpu.memory_space<vmem>>, vector<1x16x286xbf16>
    %15 = vector.shape_cast %14 : vector<1x16x286xbf16> to vector<16x286xbf16>
    %c0_16 = arith.constant 0 : index
    %c0_17 = arith.constant 0 : index
    %c38 = arith.constant 38 : index
    %16 = vector.load %arg1[%c0_16, %c0_17, %c38] : memref<1x16x324xbf16, #tpu.memory_space<vmem>>, vector<1x16x286xbf16>
    %17 = vector.shape_cast %16 : vector<1x16x286xbf16> to vector<16x286xbf16>
    %18 = tpu.concatenate %1, %3, %5, %7, %9, %11, %13, %15, %17 in 0 : vector<16x286xbf16>, vector<16x286xbf16>, vector<16x286xbf16>, vector<16x286xbf16>, vector<16x286xbf16>, vector<16x286xbf16>, vector<16x286xbf16>, vector<16x286xbf16>, vector<16x286xbf16> -> vector<144x286xbf16>
    %c0_18 = arith.constant 0 : index
    %c0_19 = arith.constant 0 : index
    %19 = vector.load %arg2[%c0_18, %c0_19] : memref<16x144xbf16, #tpu.memory_space<vmem>>, vector<16x144xbf16>
    %cst = arith.constant dense<0.000000e+00> : vector<16x286xf32>
    %20 = tpu.matmul %19, %18, %cst {dimension_numbers = #tpu.dot_dimension_numbers<[1], [0], [0], [1], [0, 0, 1, 1], [], []>} : vector<16x144xbf16>, vector<144x286xbf16>, vector<16x286xf32> -> vector<16x286xf32>
    %c0_20 = arith.constant 0 : index
    %c0_21 = arith.constant 0 : index
    %21 = vector.load %arg3[%c0_20, %c0_21] : memref<16x1xf32, #tpu.memory_space<vmem>>, vector<16x1xf32>
    %22 = vector.broadcast %21 : vector<16x1xf32> to vector<16x286xf32>
    %23 = arith.addf %20, %22 : vector<16x286xf32>
    %c0_22 = arith.constant 0 : index
    %c0_23 = arith.constant 0 : index
    %c0_24 = arith.constant 0 : index
    %24 = vector.load %arg4[%c0_22, %c0_23, %c0_24] : memref<1x16x286xbf16, #tpu.memory_space<vmem>>, vector<1x16x286xbf16>
    %25 = vector.shape_cast %24 : vector<1x16x286xbf16> to vector<16x286xbf16>
    %26 = arith.extf %25 : vector<16x286xbf16> to vector<16x286xf32>
    %27 = arith.addf %23, %26 : vector<16x286xf32>
    %cst_25 = arith.constant 0.000000e+00 : f32
    %28 = vector.broadcast %cst_25 : f32 to vector<16x286xf32>
    %29 = arith.maximumf %27, %28 : vector<16x286xf32>
    %30 = arith.truncf %29 : vector<16x286xf32> to vector<16x286xbf16>
    %c0_26 = arith.constant 0 : index
    %c0_27 = arith.constant 0 : index
    %c0_28 = arith.constant 0 : index
    %31 = vector.load %arg5[%c0_26, %c0_27, %c0_28] : memref<1x16x286xbf16, #tpu.memory_space<vmem>>, vector<1x16x286xbf16>
    %32 = vector.shape_cast %31 : vector<1x16x286xbf16> to vector<16x286xbf16>
    %33 = vector.shape_cast %30 : vector<16x286xbf16> to vector<1x16x286xbf16>
    tpu.vector_store %arg5[%c0_26, %c0_27, %c0_28], %33 {strides = array<i32>} : memref<1x16x286xbf16, #tpu.memory_space<vmem>>, vector<1x16x286xbf16>,
    return
  }
  func.func @transform_0(%arg0: i32) -> (i32, i32, i32) {
    %c0_i32 = arith.constant 0 : i32
    %c0_i32_0 = arith.constant 0 : i32
    %c0_i32_1 = arith.constant 0 : i32
    return %arg0, %c0_i32, %c0_i32_0 : i32, i32, i32
  }
  func.func @transform_1(%arg0: i32) -> (i32, i32) {
    %c0_i32 = arith.constant 0 : i32
    %c0_i32_0 = arith.constant 0 : i32
    %c0_i32_1 = arith.constant 0 : i32
    return %c0_i32, %c0_i32_0 : i32, i32
  }
  func.func @transform_2(%arg0: i32) -> (i32, i32) {
    %c0_i32 = arith.constant 0 : i32
    %c0_i32_0 = arith.constant 0 : i32
    %c0_i32_1 = arith.constant 0 : i32
    return %c0_i32, %c0_i32_0 : i32, i32
  }
  func.func @transform_3(%arg0: i32) -> (i32, i32, i32) {
    %c0_i32 = arith.constant 0 : i32
    %c0_i32_0 = arith.constant 0 : i32
    %c0_i32_1 = arith.constant 0 : i32
    return %arg0, %c0_i32, %c0_i32_0 : i32, i32, i32
  }
  func.func @transform_4(%arg0: i32) -> (i32, i32, i32) {
    %c0_i32 = arith.constant 0 : i32
    %c0_i32_0 = arith.constant 0 : i32
    %c0_i32_1 = arith.constant 0 : i32
    return %arg0, %c0_i32, %c0_i32_0 : i32, i32, i32
  }
}

module attributes {stable_mosaic.version = 11 : i64} {
  func.func @kernel(%arg0: i32, %arg1: memref<1x64x81xbf16, #tpu.memory_space<vmem>>, %arg2: memref<32x256xbf16, #tpu.memory_space<vmem>>, %arg3: memref<32x1xf32, #tpu.memory_space<vmem>>, %arg4: memref<1x32x71xbf16, #tpu.memory_space<vmem>>) attributes {dimension_semantics = [#tpu.dimension_semantics<parallel>], iteration_bounds = array<i64: 2>, scalar_prefetch = 0 : i64, scratch_operands = 0 : i64, tpu.core_type = #tpu.core_type<tc>, window_params = [{transform_indices = @transform_0, window_bounds = array<i64: 1, 64, 81>}, {pipeline_mode = #tpu.pipeline_mode<synchronous>, transform_indices = @transform_1, window_bounds = array<i64: 32, 256>}, {pipeline_mode = #tpu.pipeline_mode<synchronous>, transform_indices = @transform_2, window_bounds = array<i64: 32, 1>}, {transform_indices = @transform_3, window_bounds = array<i64: 1, 32, 71>}]} {
    %c0 = arith.constant 0 : index
    %c0_0 = arith.constant 0 : index
    %c0_1 = arith.constant 0 : index
    %0 = vector.load %arg1[%c0, %c0_0, %c0_1] : memref<1x64x81xbf16, #tpu.memory_space<vmem>>, vector<1x64x71xbf16>
    %1 = vector.shape_cast %0 : vector<1x64x71xbf16> to vector<64x71xbf16>
    %c0_2 = arith.constant 0 : index
    %c0_3 = arith.constant 0 : index
    %c1 = arith.constant 1 : index
    %2 = vector.load %arg1[%c0_2, %c0_3, %c1] : memref<1x64x81xbf16, #tpu.memory_space<vmem>>, vector<1x64x71xbf16>
    %3 = vector.shape_cast %2 : vector<1x64x71xbf16> to vector<64x71xbf16>
    %c0_4 = arith.constant 0 : index
    %c0_5 = arith.constant 0 : index
    %c9 = arith.constant 9 : index
    %4 = vector.load %arg1[%c0_4, %c0_5, %c9] : memref<1x64x81xbf16, #tpu.memory_space<vmem>>, vector<1x64x71xbf16>
    %5 = vector.shape_cast %4 : vector<1x64x71xbf16> to vector<64x71xbf16>
    %c0_6 = arith.constant 0 : index
    %c0_7 = arith.constant 0 : index
    %c10 = arith.constant 10 : index
    %6 = vector.load %arg1[%c0_6, %c0_7, %c10] : memref<1x64x81xbf16, #tpu.memory_space<vmem>>, vector<1x64x71xbf16>
    %7 = vector.shape_cast %6 : vector<1x64x71xbf16> to vector<64x71xbf16>
    %8 = tpu.concatenate %1, %3, %5, %7 in 0 : vector<64x71xbf16>, vector<64x71xbf16>, vector<64x71xbf16>, vector<64x71xbf16> -> vector<256x71xbf16>
    %c0_8 = arith.constant 0 : index
    %c0_9 = arith.constant 0 : index
    %9 = vector.load %arg2[%c0_8, %c0_9] : memref<32x256xbf16, #tpu.memory_space<vmem>>, vector<32x256xbf16>
    %cst = arith.constant dense<0.000000e+00> : vector<32x71xf32>
    %10 = tpu.matmul %9, %8, %cst {dimension_numbers = #tpu.dot_dimension_numbers<[1], [0], [0], [1], [0, 0, 1, 1], [], []>} : vector<32x256xbf16>, vector<256x71xbf16>, vector<32x71xf32> -> vector<32x71xf32>
    %c0_10 = arith.constant 0 : index
    %c0_11 = arith.constant 0 : index
    %11 = vector.load %arg3[%c0_10, %c0_11] : memref<32x1xf32, #tpu.memory_space<vmem>>, vector<32x1xf32>
    %12 = vector.broadcast %11 : vector<32x1xf32> to vector<32x71xf32>
    %13 = arith.addf %10, %12 : vector<32x71xf32>
    %cst_12 = arith.constant 0.000000e+00 : f32
    %14 = vector.broadcast %cst_12 : f32 to vector<32x71xf32>
    %15 = arith.maximumf %13, %14 : vector<32x71xf32>
    %16 = arith.truncf %15 : vector<32x71xf32> to vector<32x71xbf16>
    %c0_13 = arith.constant 0 : index
    %c0_14 = arith.constant 0 : index
    %c0_15 = arith.constant 0 : index
    %17 = vector.load %arg4[%c0_13, %c0_14, %c0_15] : memref<1x32x71xbf16, #tpu.memory_space<vmem>>, vector<1x32x71xbf16>
    %18 = vector.shape_cast %17 : vector<1x32x71xbf16> to vector<32x71xbf16>
    %19 = vector.shape_cast %16 : vector<32x71xbf16> to vector<1x32x71xbf16>
    tpu.vector_store %arg4[%c0_13, %c0_14, %c0_15], %19 {strides = array<i32>} : memref<1x32x71xbf16, #tpu.memory_space<vmem>>, vector<1x32x71xbf16>,
    return
  }
  func.func @transform_0(%arg0: i32) -> (i32, i32, i32) {
    %c0_i32 = arith.constant 0 : i32
    %c0_i32_0 = arith.constant 0 : i32
    %c0_i32_1 = arith.constant 0 : i32
    return %arg0, %c0_i32, %c0_i32_0 : i32, i32, i32
  }
  func.func @transform_1(%arg0: i32) -> (i32, i32) {
    %c0_i32 = arith.constant 0 : i32
    %c0_i32_0 = arith.constant 0 : i32
    %c0_i32_1 = arith.constant 0 : i32
    return %c0_i32, %c0_i32_0 : i32, i32
  }
  func.func @transform_2(%arg0: i32) -> (i32, i32) {
    %c0_i32 = arith.constant 0 : i32
    %c0_i32_0 = arith.constant 0 : i32
    %c0_i32_1 = arith.constant 0 : i32
    return %c0_i32, %c0_i32_0 : i32, i32
  }
  func.func @transform_3(%arg0: i32) -> (i32, i32, i32) {
    %c0_i32 = arith.constant 0 : i32
    %c0_i32_0 = arith.constant 0 : i32
    %c0_i32_1 = arith.constant 0 : i32
    return %arg0, %c0_i32, %c0_i32_0 : i32, i32, i32
  }
}

module attributes {stable_mosaic.version = 11 : i64} {
  func.func @kernel(%arg0: i32, %arg1: memref<1x32x100xbf16, #tpu.memory_space<vmem>>, %arg2: memref<32x288xbf16, #tpu.memory_space<vmem>>, %arg3: memref<32x1xf32, #tpu.memory_space<vmem>>, %arg4: memref<1x16x78xbf16, #tpu.memory_space<vmem>>, %arg5: memref<1x32x78xbf16, #tpu.memory_space<vmem>>) attributes {dimension_semantics = [#tpu.dimension_semantics<parallel>], iteration_bounds = array<i64: 2>, scalar_prefetch = 0 : i64, scratch_operands = 0 : i64, tpu.core_type = #tpu.core_type<tc>, window_params = [{transform_indices = @transform_0, window_bounds = array<i64: 1, 32, 100>}, {pipeline_mode = #tpu.pipeline_mode<synchronous>, transform_indices = @transform_1, window_bounds = array<i64: 32, 288>}, {pipeline_mode = #tpu.pipeline_mode<synchronous>, transform_indices = @transform_2, window_bounds = array<i64: 32, 1>}, {transform_indices = @transform_3, window_bounds = array<i64: 1, 16, 78>}, {transform_indices = @transform_4, window_bounds = array<i64: 1, 32, 78>}]} {
    %c0 = arith.constant 0 : index
    %c0_0 = arith.constant 0 : index
    %c0_1 = arith.constant 0 : index
    %0 = vector.load %arg1[%c0, %c0_0, %c0_1] : memref<1x32x100xbf16, #tpu.memory_space<vmem>>, vector<1x32x78xbf16>
    %1 = vector.shape_cast %0 : vector<1x32x78xbf16> to vector<32x78xbf16>
    %c0_2 = arith.constant 0 : index
    %c0_3 = arith.constant 0 : index
    %c1 = arith.constant 1 : index
    %2 = vector.load %arg1[%c0_2, %c0_3, %c1] : memref<1x32x100xbf16, #tpu.memory_space<vmem>>, vector<1x32x78xbf16>
    %3 = vector.shape_cast %2 : vector<1x32x78xbf16> to vector<32x78xbf16>
    %c0_4 = arith.constant 0 : index
    %c0_5 = arith.constant 0 : index
    %c2 = arith.constant 2 : index
    %4 = vector.load %arg1[%c0_4, %c0_5, %c2] : memref<1x32x100xbf16, #tpu.memory_space<vmem>>, vector<1x32x78xbf16>
    %5 = vector.shape_cast %4 : vector<1x32x78xbf16> to vector<32x78xbf16>
    %c0_6 = arith.constant 0 : index
    %c0_7 = arith.constant 0 : index
    %c10 = arith.constant 10 : index
    %6 = vector.load %arg1[%c0_6, %c0_7, %c10] : memref<1x32x100xbf16, #tpu.memory_space<vmem>>, vector<1x32x78xbf16>
    %7 = vector.shape_cast %6 : vector<1x32x78xbf16> to vector<32x78xbf16>
    %c0_8 = arith.constant 0 : index
    %c0_9 = arith.constant 0 : index
    %c11 = arith.constant 11 : index
    %8 = vector.load %arg1[%c0_8, %c0_9, %c11] : memref<1x32x100xbf16, #tpu.memory_space<vmem>>, vector<1x32x78xbf16>
    %9 = vector.shape_cast %8 : vector<1x32x78xbf16> to vector<32x78xbf16>
    %c0_10 = arith.constant 0 : index
    %c0_11 = arith.constant 0 : index
    %c12 = arith.constant 12 : index
    %10 = vector.load %arg1[%c0_10, %c0_11, %c12] : memref<1x32x100xbf16, #tpu.memory_space<vmem>>, vector<1x32x78xbf16>
    %11 = vector.shape_cast %10 : vector<1x32x78xbf16> to vector<32x78xbf16>
    %c0_12 = arith.constant 0 : index
    %c0_13 = arith.constant 0 : index
    %c20 = arith.constant 20 : index
    %12 = vector.load %arg1[%c0_12, %c0_13, %c20] : memref<1x32x100xbf16, #tpu.memory_space<vmem>>, vector<1x32x78xbf16>
    %13 = vector.shape_cast %12 : vector<1x32x78xbf16> to vector<32x78xbf16>
    %c0_14 = arith.constant 0 : index
    %c0_15 = arith.constant 0 : index
    %c21 = arith.constant 21 : index
    %14 = vector.load %arg1[%c0_14, %c0_15, %c21] : memref<1x32x100xbf16, #tpu.memory_space<vmem>>, vector<1x32x78xbf16>
    %15 = vector.shape_cast %14 : vector<1x32x78xbf16> to vector<32x78xbf16>
    %c0_16 = arith.constant 0 : index
    %c0_17 = arith.constant 0 : index
    %c22 = arith.constant 22 : index
    %16 = vector.load %arg1[%c0_16, %c0_17, %c22] : memref<1x32x100xbf16, #tpu.memory_space<vmem>>, vector<1x32x78xbf16>
    %17 = vector.shape_cast %16 : vector<1x32x78xbf16> to vector<32x78xbf16>
    %18 = tpu.concatenate %1, %3, %5, %7, %9, %11, %13, %15, %17 in 0 : vector<32x78xbf16>, vector<32x78xbf16>, vector<32x78xbf16>, vector<32x78xbf16>, vector<32x78xbf16>, vector<32x78xbf16>, vector<32x78xbf16>, vector<32x78xbf16>, vector<32x78xbf16> -> vector<288x78xbf16>
    %c0_18 = arith.constant 0 : index
    %c0_19 = arith.constant 0 : index
    %19 = vector.load %arg2[%c0_18, %c0_19] : memref<32x288xbf16, #tpu.memory_space<vmem>>, vector<32x288xbf16>
    %cst = arith.constant dense<0.000000e+00> : vector<32x78xf32>
    %20 = tpu.matmul %19, %18, %cst {dimension_numbers = #tpu.dot_dimension_numbers<[1], [0], [0], [1], [0, 0, 1, 1], [], []>} : vector<32x288xbf16>, vector<288x78xbf16>, vector<32x78xf32> -> vector<32x78xf32>
    %c0_20 = arith.constant 0 : index
    %c0_21 = arith.constant 0 : index
    %21 = vector.load %arg3[%c0_20, %c0_21] : memref<32x1xf32, #tpu.memory_space<vmem>>, vector<32x1xf32>
    %22 = vector.broadcast %21 : vector<32x1xf32> to vector<32x78xf32>
    %23 = arith.addf %20, %22 : vector<32x78xf32>
    %c0_22 = arith.constant 0 : index
    %c0_23 = arith.constant 0 : index
    %c0_24 = arith.constant 0 : index
    %24 = vector.load %arg4[%c0_22, %c0_23, %c0_24] : memref<1x16x78xbf16, #tpu.memory_space<vmem>>, vector<1x16x78xbf16>
    %25 = vector.shape_cast %24 : vector<1x16x78xbf16> to vector<16x78xbf16>
    %26 = arith.extf %25 : vector<16x78xbf16> to vector<16x78xf32>
    %cst_25 = arith.constant 0.000000e+00 : f32
    %27 = vector.broadcast %cst_25 : f32 to vector<8x78xf32>
    %cst_26 = arith.constant 0.000000e+00 : f32
    %28 = vector.broadcast %cst_26 : f32 to vector<8x78xf32>
    %29 = tpu.concatenate %27, %26, %28 in 0 : vector<8x78xf32>, vector<16x78xf32>, vector<8x78xf32> -> vector<32x78xf32>
    %30 = arith.addf %23, %29 : vector<32x78xf32>
    %cst_27 = arith.constant 0.000000e+00 : f32
    %31 = vector.broadcast %cst_27 : f32 to vector<32x78xf32>
    %32 = arith.maximumf %30, %31 : vector<32x78xf32>
    %33 = arith.truncf %32 : vector<32x78xf32> to vector<32x78xbf16>
    %c0_28 = arith.constant 0 : index
    %c0_29 = arith.constant 0 : index
    %c0_30 = arith.constant 0 : index
    %34 = vector.load %arg5[%c0_28, %c0_29, %c0_30] : memref<1x32x78xbf16, #tpu.memory_space<vmem>>, vector<1x32x78xbf16>
    %35 = vector.shape_cast %34 : vector<1x32x78xbf16> to vector<32x78xbf16>
    %36 = vector.shape_cast %33 : vector<32x78xbf16> to vector<1x32x78xbf16>
    tpu.vector_store %arg5[%c0_28, %c0_29, %c0_30], %36 {strides = array<i32>} : memref<1x32x78xbf16, #tpu.memory_space<vmem>>, vector<1x32x78xbf16>,
    return
  }
  func.func @transform_0(%arg0: i32) -> (i32, i32, i32) {
    %c0_i32 = arith.constant 0 : i32
    %c0_i32_0 = arith.constant 0 : i32
    %c0_i32_1 = arith.constant 0 : i32
    return %arg0, %c0_i32, %c0_i32_0 : i32, i32, i32
  }
  func.func @transform_1(%arg0: i32) -> (i32, i32) {
    %c0_i32 = arith.constant 0 : i32
    %c0_i32_0 = arith.constant 0 : i32
    %c0_i32_1 = arith.constant 0 : i32
    return %c0_i32, %c0_i32_0 : i32, i32
  }
  func.func @transform_2(%arg0: i32) -> (i32, i32) {
    %c0_i32 = arith.constant 0 : i32
    %c0_i32_0 = arith.constant 0 : i32
    %c0_i32_1 = arith.constant 0 : i32
    return %c0_i32, %c0_i32_0 : i32, i32
  }
  func.func @transform_3(%arg0: i32) -> (i32, i32, i32) {
    %c0_i32 = arith.constant 0 : i32
    %c0_i32_0 = arith.constant 0 : i32
    %c0_i32_1 = arith.constant 0 : i32
    return %arg0, %c0_i32, %c0_i32_0 : i32, i32, i32
  }
  func.func @transform_4(%arg0: i32) -> (i32, i32, i32) {
    %c0_i32 = arith.constant 0 : i32
    %c0_i32_0 = arith.constant 0 : i32
    %c0_i32_1 = arith.constant 0 : i32
    return %arg0, %c0_i32, %c0_i32_0 : i32, i32, i32
  }
}

module attributes {stable_mosaic.version = 11 : i64} {
  func.func @kernel(%arg0: i32, %arg1: memref<1x128x25xbf16, #tpu.memory_space<vmem>>, %arg2: memref<64x512xbf16, #tpu.memory_space<vmem>>, %arg3: memref<64x1xf32, #tpu.memory_space<vmem>>, %arg4: memref<1x64x19xbf16, #tpu.memory_space<vmem>>) attributes {dimension_semantics = [#tpu.dimension_semantics<parallel>], iteration_bounds = array<i64: 2>, scalar_prefetch = 0 : i64, scratch_operands = 0 : i64, tpu.core_type = #tpu.core_type<tc>, window_params = [{transform_indices = @transform_0, window_bounds = array<i64: 1, 128, 25>}, {pipeline_mode = #tpu.pipeline_mode<synchronous>, transform_indices = @transform_1, window_bounds = array<i64: 64, 512>}, {pipeline_mode = #tpu.pipeline_mode<synchronous>, transform_indices = @transform_2, window_bounds = array<i64: 64, 1>}, {transform_indices = @transform_3, window_bounds = array<i64: 1, 64, 19>}]} {
    %c0 = arith.constant 0 : index
    %c0_0 = arith.constant 0 : index
    %c0_1 = arith.constant 0 : index
    %0 = vector.load %arg1[%c0, %c0_0, %c0_1] : memref<1x128x25xbf16, #tpu.memory_space<vmem>>, vector<1x128x19xbf16>
    %1 = vector.shape_cast %0 : vector<1x128x19xbf16> to vector<128x19xbf16>
    %c0_2 = arith.constant 0 : index
    %c0_3 = arith.constant 0 : index
    %c1 = arith.constant 1 : index
    %2 = vector.load %arg1[%c0_2, %c0_3, %c1] : memref<1x128x25xbf16, #tpu.memory_space<vmem>>, vector<1x128x19xbf16>
    %3 = vector.shape_cast %2 : vector<1x128x19xbf16> to vector<128x19xbf16>
    %c0_4 = arith.constant 0 : index
    %c0_5 = arith.constant 0 : index
    %c5 = arith.constant 5 : index
    %4 = vector.load %arg1[%c0_4, %c0_5, %c5] : memref<1x128x25xbf16, #tpu.memory_space<vmem>>, vector<1x128x19xbf16>
    %5 = vector.shape_cast %4 : vector<1x128x19xbf16> to vector<128x19xbf16>
    %c0_6 = arith.constant 0 : index
    %c0_7 = arith.constant 0 : index
    %c6 = arith.constant 6 : index
    %6 = vector.load %arg1[%c0_6, %c0_7, %c6] : memref<1x128x25xbf16, #tpu.memory_space<vmem>>, vector<1x128x19xbf16>
    %7 = vector.shape_cast %6 : vector<1x128x19xbf16> to vector<128x19xbf16>
    %8 = tpu.concatenate %1, %3, %5, %7 in 0 : vector<128x19xbf16>, vector<128x19xbf16>, vector<128x19xbf16>, vector<128x19xbf16> -> vector<512x19xbf16>
    %c0_8 = arith.constant 0 : index
    %c0_9 = arith.constant 0 : index
    %9 = vector.load %arg2[%c0_8, %c0_9] : memref<64x512xbf16, #tpu.memory_space<vmem>>, vector<64x512xbf16>
    %cst = arith.constant dense<0.000000e+00> : vector<64x19xf32>
    %10 = tpu.matmul %9, %8, %cst {dimension_numbers = #tpu.dot_dimension_numbers<[1], [0], [0], [1], [0, 0, 1, 1], [], []>} : vector<64x512xbf16>, vector<512x19xbf16>, vector<64x19xf32> -> vector<64x19xf32>
    %c0_10 = arith.constant 0 : index
    %c0_11 = arith.constant 0 : index
    %11 = vector.load %arg3[%c0_10, %c0_11] : memref<64x1xf32, #tpu.memory_space<vmem>>, vector<64x1xf32>
    %12 = vector.broadcast %11 : vector<64x1xf32> to vector<64x19xf32>
    %13 = arith.addf %10, %12 : vector<64x19xf32>
    %cst_12 = arith.constant 0.000000e+00 : f32
    %14 = vector.broadcast %cst_12 : f32 to vector<64x19xf32>
    %15 = arith.maximumf %13, %14 : vector<64x19xf32>
    %16 = arith.truncf %15 : vector<64x19xf32> to vector<64x19xbf16>
    %c0_13 = arith.constant 0 : index
    %c0_14 = arith.constant 0 : index
    %c0_15 = arith.constant 0 : index
    %17 = vector.load %arg4[%c0_13, %c0_14, %c0_15] : memref<1x64x19xbf16, #tpu.memory_space<vmem>>, vector<1x64x19xbf16>
    %18 = vector.shape_cast %17 : vector<1x64x19xbf16> to vector<64x19xbf16>
    %19 = vector.shape_cast %16 : vector<64x19xbf16> to vector<1x64x19xbf16>
    tpu.vector_store %arg4[%c0_13, %c0_14, %c0_15], %19 {strides = array<i32>} : memref<1x64x19xbf16, #tpu.memory_space<vmem>>, vector<1x64x19xbf16>,
    return
  }
  func.func @transform_0(%arg0: i32) -> (i32, i32, i32) {
    %c0_i32 = arith.constant 0 : i32
    %c0_i32_0 = arith.constant 0 : i32
    %c0_i32_1 = arith.constant 0 : i32
    return %arg0, %c0_i32, %c0_i32_0 : i32, i32, i32
  }
  func.func @transform_1(%arg0: i32) -> (i32, i32) {
    %c0_i32 = arith.constant 0 : i32
    %c0_i32_0 = arith.constant 0 : i32
    %c0_i32_1 = arith.constant 0 : i32
    return %c0_i32, %c0_i32_0 : i32, i32
  }
  func.func @transform_2(%arg0: i32) -> (i32, i32) {
    %c0_i32 = arith.constant 0 : i32
    %c0_i32_0 = arith.constant 0 : i32
    %c0_i32_1 = arith.constant 0 : i32
    return %c0_i32, %c0_i32_0 : i32, i32
  }
  func.func @transform_3(%arg0: i32) -> (i32, i32, i32) {
    %c0_i32 = arith.constant 0 : i32
    %c0_i32_0 = arith.constant 0 : i32
    %c0_i32_1 = arith.constant 0 : i32
    return %arg0, %c0_i32, %c0_i32_0 : i32, i32, i32
  }
}

module attributes {stable_mosaic.version = 11 : i64} {
  func.func @kernel(%arg0: i32, %arg1: memref<1x64x36xbf16, #tpu.memory_space<vmem>>, %arg2: memref<64x576xbf16, #tpu.memory_space<vmem>>, %arg3: memref<64x1xf32, #tpu.memory_space<vmem>>, %arg4: memref<1x32x22xbf16, #tpu.memory_space<vmem>>, %arg5: memref<1x64x22xbf16, #tpu.memory_space<vmem>>) attributes {dimension_semantics = [#tpu.dimension_semantics<parallel>], iteration_bounds = array<i64: 2>, scalar_prefetch = 0 : i64, scratch_operands = 0 : i64, tpu.core_type = #tpu.core_type<tc>, window_params = [{transform_indices = @transform_0, window_bounds = array<i64: 1, 64, 36>}, {pipeline_mode = #tpu.pipeline_mode<synchronous>, transform_indices = @transform_1, window_bounds = array<i64: 64, 576>}, {pipeline_mode = #tpu.pipeline_mode<synchronous>, transform_indices = @transform_2, window_bounds = array<i64: 64, 1>}, {transform_indices = @transform_3, window_bounds = array<i64: 1, 32, 22>}, {transform_indices = @transform_4, window_bounds = array<i64: 1, 64, 22>}]} {
    %c0 = arith.constant 0 : index
    %c0_0 = arith.constant 0 : index
    %c0_1 = arith.constant 0 : index
    %0 = vector.load %arg1[%c0, %c0_0, %c0_1] : memref<1x64x36xbf16, #tpu.memory_space<vmem>>, vector<1x64x22xbf16>
    %1 = vector.shape_cast %0 : vector<1x64x22xbf16> to vector<64x22xbf16>
    %c0_2 = arith.constant 0 : index
    %c0_3 = arith.constant 0 : index
    %c1 = arith.constant 1 : index
    %2 = vector.load %arg1[%c0_2, %c0_3, %c1] : memref<1x64x36xbf16, #tpu.memory_space<vmem>>, vector<1x64x22xbf16>
    %3 = vector.shape_cast %2 : vector<1x64x22xbf16> to vector<64x22xbf16>
    %c0_4 = arith.constant 0 : index
    %c0_5 = arith.constant 0 : index
    %c2 = arith.constant 2 : index
    %4 = vector.load %arg1[%c0_4, %c0_5, %c2] : memref<1x64x36xbf16, #tpu.memory_space<vmem>>, vector<1x64x22xbf16>
    %5 = vector.shape_cast %4 : vector<1x64x22xbf16> to vector<64x22xbf16>
    %c0_6 = arith.constant 0 : index
    %c0_7 = arith.constant 0 : index
    %c6 = arith.constant 6 : index
    %6 = vector.load %arg1[%c0_6, %c0_7, %c6] : memref<1x64x36xbf16, #tpu.memory_space<vmem>>, vector<1x64x22xbf16>
    %7 = vector.shape_cast %6 : vector<1x64x22xbf16> to vector<64x22xbf16>
    %c0_8 = arith.constant 0 : index
    %c0_9 = arith.constant 0 : index
    %c7 = arith.constant 7 : index
    %8 = vector.load %arg1[%c0_8, %c0_9, %c7] : memref<1x64x36xbf16, #tpu.memory_space<vmem>>, vector<1x64x22xbf16>
    %9 = vector.shape_cast %8 : vector<1x64x22xbf16> to vector<64x22xbf16>
    %c0_10 = arith.constant 0 : index
    %c0_11 = arith.constant 0 : index
    %c8 = arith.constant 8 : index
    %10 = vector.load %arg1[%c0_10, %c0_11, %c8] : memref<1x64x36xbf16, #tpu.memory_space<vmem>>, vector<1x64x22xbf16>
    %11 = vector.shape_cast %10 : vector<1x64x22xbf16> to vector<64x22xbf16>
    %c0_12 = arith.constant 0 : index
    %c0_13 = arith.constant 0 : index
    %c12 = arith.constant 12 : index
    %12 = vector.load %arg1[%c0_12, %c0_13, %c12] : memref<1x64x36xbf16, #tpu.memory_space<vmem>>, vector<1x64x22xbf16>
    %13 = vector.shape_cast %12 : vector<1x64x22xbf16> to vector<64x22xbf16>
    %c0_14 = arith.constant 0 : index
    %c0_15 = arith.constant 0 : index
    %c13 = arith.constant 13 : index
    %14 = vector.load %arg1[%c0_14, %c0_15, %c13] : memref<1x64x36xbf16, #tpu.memory_space<vmem>>, vector<1x64x22xbf16>
    %15 = vector.shape_cast %14 : vector<1x64x22xbf16> to vector<64x22xbf16>
    %c0_16 = arith.constant 0 : index
    %c0_17 = arith.constant 0 : index
    %c14 = arith.constant 14 : index
    %16 = vector.load %arg1[%c0_16, %c0_17, %c14] : memref<1x64x36xbf16, #tpu.memory_space<vmem>>, vector<1x64x22xbf16>
    %17 = vector.shape_cast %16 : vector<1x64x22xbf16> to vector<64x22xbf16>
    %18 = tpu.concatenate %1, %3, %5, %7, %9, %11, %13, %15, %17 in 0 : vector<64x22xbf16>, vector<64x22xbf16>, vector<64x22xbf16>, vector<64x22xbf16>, vector<64x22xbf16>, vector<64x22xbf16>, vector<64x22xbf16>, vector<64x22xbf16>, vector<64x22xbf16> -> vector<576x22xbf16>
    %c0_18 = arith.constant 0 : index
    %c0_19 = arith.constant 0 : index
    %19 = vector.load %arg2[%c0_18, %c0_19] : memref<64x576xbf16, #tpu.memory_space<vmem>>, vector<64x576xbf16>
    %cst = arith.constant dense<0.000000e+00> : vector<64x22xf32>
    %20 = tpu.matmul %19, %18, %cst {dimension_numbers = #tpu.dot_dimension_numbers<[1], [0], [0], [1], [0, 0, 1, 1], [], []>} : vector<64x576xbf16>, vector<576x22xbf16>, vector<64x22xf32> -> vector<64x22xf32>
    %c0_20 = arith.constant 0 : index
    %c0_21 = arith.constant 0 : index
    %21 = vector.load %arg3[%c0_20, %c0_21] : memref<64x1xf32, #tpu.memory_space<vmem>>, vector<64x1xf32>
    %22 = vector.broadcast %21 : vector<64x1xf32> to vector<64x22xf32>
    %23 = arith.addf %20, %22 : vector<64x22xf32>
    %c0_22 = arith.constant 0 : index
    %c0_23 = arith.constant 0 : index
    %c0_24 = arith.constant 0 : index
    %24 = vector.load %arg4[%c0_22, %c0_23, %c0_24] : memref<1x32x22xbf16, #tpu.memory_space<vmem>>, vector<1x32x22xbf16>
    %25 = vector.shape_cast %24 : vector<1x32x22xbf16> to vector<32x22xbf16>
    %26 = arith.extf %25 : vector<32x22xbf16> to vector<32x22xf32>
    %cst_25 = arith.constant 0.000000e+00 : f32
    %27 = vector.broadcast %cst_25 : f32 to vector<16x22xf32>
    %cst_26 = arith.constant 0.000000e+00 : f32
    %28 = vector.broadcast %cst_26 : f32 to vector<16x22xf32>
    %29 = tpu.concatenate %27, %26, %28 in 0 : vector<16x22xf32>, vector<32x22xf32>, vector<16x22xf32> -> vector<64x22xf32>
    %30 = arith.addf %23, %29 : vector<64x22xf32>
    %cst_27 = arith.constant 0.000000e+00 : f32
    %31 = vector.broadcast %cst_27 : f32 to vector<64x22xf32>
    %32 = arith.maximumf %30, %31 : vector<64x22xf32>
    %33 = arith.truncf %32 : vector<64x22xf32> to vector<64x22xbf16>
    %c0_28 = arith.constant 0 : index
    %c0_29 = arith.constant 0 : index
    %c0_30 = arith.constant 0 : index
    %34 = vector.load %arg5[%c0_28, %c0_29, %c0_30] : memref<1x64x22xbf16, #tpu.memory_space<vmem>>, vector<1x64x22xbf16>
    %35 = vector.shape_cast %34 : vector<1x64x22xbf16> to vector<64x22xbf16>
    %36 = vector.shape_cast %33 : vector<64x22xbf16> to vector<1x64x22xbf16>
    tpu.vector_store %arg5[%c0_28, %c0_29, %c0_30], %36 {strides = array<i32>} : memref<1x64x22xbf16, #tpu.memory_space<vmem>>, vector<1x64x22xbf16>,
    return
  }
  func.func @transform_0(%arg0: i32) -> (i32, i32, i32) {
    %c0_i32 = arith.constant 0 : i32
    %c0_i32_0 = arith.constant 0 : i32
    %c0_i32_1 = arith.constant 0 : i32
    return %arg0, %c0_i32, %c0_i32_0 : i32, i32, i32
  }
  func.func @transform_1(%arg0: i32) -> (i32, i32) {
    %c0_i32 = arith.constant 0 : i32
    %c0_i32_0 = arith.constant 0 : i32
    %c0_i32_1 = arith.constant 0 : i32
    return %c0_i32, %c0_i32_0 : i32, i32
  }
  func.func @transform_2(%arg0: i32) -> (i32, i32) {
    %c0_i32 = arith.constant 0 : i32
    %c0_i32_0 = arith.constant 0 : i32
    %c0_i32_1 = arith.constant 0 : i32
    return %c0_i32, %c0_i32_0 : i32, i32
  }
  func.func @transform_3(%arg0: i32) -> (i32, i32, i32) {
    %c0_i32 = arith.constant 0 : i32
    %c0_i32_0 = arith.constant 0 : i32
    %c0_i32_1 = arith.constant 0 : i32
    return %arg0, %c0_i32, %c0_i32_0 : i32, i32, i32
  }
  func.func @transform_4(%arg0: i32) -> (i32, i32, i32) {
    %c0_i32 = arith.constant 0 : i32
    %c0_i32_0 = arith.constant 0 : i32
    %c0_i32_1 = arith.constant 0 : i32
    return %arg0, %c0_i32, %c0_i32_0 : i32, i32, i32
  }
}

module attributes {stable_mosaic.version = 11 : i64} {
  func.func @pool_linear_kernel(%arg0: i32, %arg1: memref<1x64x16xbf16, #tpu.memory_space<vmem>>, %arg2: memref<10x64xf32, #tpu.memory_space<vmem>>, %arg3: memref<10x1xf32, #tpu.memory_space<vmem>>, %arg4: memref<1x10x1xf32, #tpu.memory_space<vmem>>) attributes {dimension_semantics = [#tpu.dimension_semantics<parallel>], iteration_bounds = array<i64: 2>, scalar_prefetch = 0 : i64, scratch_operands = 0 : i64, tpu.core_type = #tpu.core_type<tc>, window_params = [{transform_indices = @transform_0, window_bounds = array<i64: 1, 64, 16>}, {pipeline_mode = #tpu.pipeline_mode<synchronous>, transform_indices = @transform_1, window_bounds = array<i64: 10, 64>}, {pipeline_mode = #tpu.pipeline_mode<synchronous>, transform_indices = @transform_2, window_bounds = array<i64: 10, 1>}, {transform_indices = @transform_3, window_bounds = array<i64: 1, 10, 1>}]} {
    %c0 = arith.constant 0 : index
    %c0_0 = arith.constant 0 : index
    %c0_1 = arith.constant 0 : index
    %0 = vector.load %arg1[%c0, %c0_0, %c0_1] : memref<1x64x16xbf16, #tpu.memory_space<vmem>>, vector<1x64x16xbf16>
    %1 = vector.shape_cast %0 : vector<1x64x16xbf16> to vector<64x16xbf16>
    %2 = arith.extf %1 : vector<64x16xbf16> to vector<64x16xf32>
    %cst = arith.constant dense<0.000000e+00> : vector<64xf32>
    %3 = vector.multi_reduction <add>, %2, %cst [1] : vector<64x16xf32> to vector<64xf32>
    %4 = vector.shape_cast %3 : vector<64xf32> to vector<64x1xf32>
    %cst_2 = arith.constant 1.600000e+01 : f32
    %5 = vector.broadcast %cst_2 : f32 to vector<64x1xf32>
    %6 = arith.divf %4, %5 : vector<64x1xf32>
    %c0_3 = arith.constant 0 : index
    %c0_4 = arith.constant 0 : index
    %7 = vector.load %arg2[%c0_3, %c0_4] : memref<10x64xf32, #tpu.memory_space<vmem>>, vector<10x64xf32>
    %cst_5 = arith.constant dense<0.000000e+00> : vector<10x1xf32>
    %8 = tpu.matmul %7, %6, %cst_5 {dimension_numbers = #tpu.dot_dimension_numbers<[1], [0], [0], [1], [0, 0, 1, 1], [], []>} : vector<10x64xf32>, vector<64x1xf32>, vector<10x1xf32> -> vector<10x1xf32>
    %c0_6 = arith.constant 0 : index
    %c0_7 = arith.constant 0 : index
    %9 = vector.load %arg3[%c0_6, %c0_7] : memref<10x1xf32, #tpu.memory_space<vmem>>, vector<10x1xf32>
    %10 = arith.addf %8, %9 : vector<10x1xf32>
    %c0_8 = arith.constant 0 : index
    %c0_9 = arith.constant 0 : index
    %c0_10 = arith.constant 0 : index
    %11 = vector.load %arg4[%c0_8, %c0_9, %c0_10] : memref<1x10x1xf32, #tpu.memory_space<vmem>>, vector<1x10x1xf32>
    %12 = vector.shape_cast %11 : vector<1x10x1xf32> to vector<10x1xf32>
    %13 = vector.shape_cast %10 : vector<10x1xf32> to vector<1x10x1xf32>
    tpu.vector_store %arg4[%c0_8, %c0_9, %c0_10], %13 {strides = array<i32>} : memref<1x10x1xf32, #tpu.memory_space<vmem>>, vector<1x10x1xf32>,
    return
  }
  func.func @transform_0(%arg0: i32) -> (i32, i32, i32) {
    %c0_i32 = arith.constant 0 : i32
    %c0_i32_0 = arith.constant 0 : i32
    %c0_i32_1 = arith.constant 0 : i32
    return %arg0, %c0_i32, %c0_i32_0 : i32, i32, i32
  }
  func.func @transform_1(%arg0: i32) -> (i32, i32) {
    %c0_i32 = arith.constant 0 : i32
    %c0_i32_0 = arith.constant 0 : i32
    %c0_i32_1 = arith.constant 0 : i32
    return %c0_i32, %c0_i32_0 : i32, i32
  }
  func.func @transform_2(%arg0: i32) -> (i32, i32) {
    %c0_i32 = arith.constant 0 : i32
    %c0_i32_0 = arith.constant 0 : i32
    %c0_i32_1 = arith.constant 0 : i32
    return %c0_i32, %c0_i32_0 : i32, i32
  }
  func.func @transform_3(%arg0: i32) -> (i32, i32, i32) {
    %c0_i32 = arith.constant 0 : i32
    %c0_i32_0 = arith.constant 0 : i32
    %c0_i32_1 = arith.constant 0 : i32
    return %arg0, %c0_i32, %c0_i32_0 : i32, i32, i32
  }
}

</mosaic_0001>

<llo_original>
// kernel: resnet_forward.10
$region0: #{resnet_forward.10}
  #allocation0 [shape = 'u32[]', space=smem, size = 0x4, offset = 0x4, fixed_abs, tag = 'smem constant byte address 0x4 - core index']
  #allocation1 [shape = 'u32[144,128]{1,0:T(1,128)}', space=vmem, size = 0x12000, scoped, tag = 'internal scratch']
  %s0 = inlined_call_operand.vmem [shape: bf16[2,16,324], index: 0, kind: input, shape index: {}]
  %s1 = inlined_call_operand.vmem [shape: bf16[16,144], index: 1, kind: input, shape index: {}]
  %s2 = inlined_call_operand.vmem [shape: f32[16,1], index: 2, kind: input, shape index: {}]
  %s3 = inlined_call_operand.vmem [shape: bf16[2,16,286], index: 3, kind: input, shape index: {}]
  %s4 = inlined_call_operand.vmem [shape: bf16[2,16,286], index: 4, kind: output, shape index: {}]
  %s5 = sld [smem:[#allocation0]]
  $region49: #{resnet_forward.10} parent=0
    _
  %s7 = ssub.s32 1, %s5
  %s8 = scalar_select 0, %s7, %s5
  loop: start=0, step=1, limit=4
  $region2: #{resnet_forward.10} parent=0 // loop_pre_header
    _
  $region3: #{resnet_forward.10} parent=0 // loop_header
    %s10 = sphi 0, %s14
    %p11 = scmp.ge.s32.totalorder %s10, 4
    %s20 = sphi 0, %s22
    %s23 = sphi 0, %s20
    %s24 = sphi 0, %s23
    %s40 = sphi 0, %s24
    %s44 = sphi 0, %s44
    %s46 = sphi 0, %s44
    %s47 = sphi 0, %s46
    %s61 = sphi 0, %s47
    %s65 = sphi 0, %s65
    %s67 = sphi 0, %s65
    %s68 = sphi 0, %s67
    %s82 = sphi 0, %s68
    %s88 = sphi 0, %s90
    %s91 = sphi 0, %s88
    %s92 = sphi 0, %s91
    %s108 = sphi 0, %s92
    %s114 = sphi 0, %s116
    %s117 = sphi 0, %s114
    %s118 = sphi 0, %s117
    %s134 = sphi 0, %s118
  $region4: #{resnet_forward.10} parent=0 // loop_header_branch
    %13 = sbr.rel (%p11) target = $region8
  $region5: #{resnet_forward.10} parent=0 // loop_body
    %s15 = ssub.s32 %s10, 1
    %s16 = ssub.s32 %s10, 2
    %s17 = sadd.s32 %s10, 1
    %s18 = ssub.s32 %s10, %s17
    %p19 = scmp.eq.s32.totalorder %s18, 0
    %s21 = sadd.s32 %s20, 1
    %s22 = scalar_select %p19, %s20, %s21
    %p25 = pneg %p19
    %p26 = scmp.eq.s32.totalorder %s10, 1
    %p27 = por %p25, %p26
    %p28 = scmp.ne.s32.totalorder %s20, %s23
    %p29 = scmp.eq.s32.totalorder %s10, 0
    %p30 = por %p28, %p29
    %p31 = scmp.ne.s32.totalorder %s20, %s23
    %p32 = scmp.eq.s32.totalorder %s15, 1
    %p33 = por %p31, %p32
    %p34 = scmp.ne.s32.totalorder %s23, %s24
    %p35 = scmp.eq.s32.totalorder %s15, 0
    %p36 = por %p34, %p35
    %p37 = scmp.ne.s32.totalorder %s23, %s24
    %p38 = scmp.eq.s32.totalorder %s16, 1
    %p39 = por %p37, %p38
    %p41 = scmp.ne.s32.totalorder %s24, %s40
    %p42 = scmp.eq.s32.totalorder %s16, 0
    %p43 = por %p41, %p42
    %s45 = sadd.s32 %s44, 1
    %p48 = scmp.eq.s32.totalorder %s10, 1
    %p49 = scmp.ne.s32.totalorder %s44, %s46
    %p50 = scmp.eq.s32.totalorder %s10, 0
    %p51 = por %p49, %p50
    %p52 = scmp.ne.s32.totalorder %s44, %s46
    %p53 = scmp.eq.s32.totalorder %s15, 1
    %p54 = por %p52, %p53
    %p55 = scmp.ne.s32.totalorder %s46, %s47
    %p56 = scmp.eq.s32.totalorder %s15, 0
    %p57 = por %p55, %p56
    %p58 = scmp.ne.s32.totalorder %s46, %s47
    %p59 = scmp.eq.s32.totalorder %s16, 1
    %p60 = por %p58, %p59
    %p62 = scmp.ne.s32.totalorder %s47, %s61
    %p63 = scmp.eq.s32.totalorder %s16, 0
    %p64 = por %p62, %p63
    %s66 = sadd.s32 %s65, 1
    %p69 = scmp.eq.s32.totalorder %s10, 1
    %p70 = scmp.ne.s32.totalorder %s65, %s67
    %p71 = scmp.eq.s32.totalorder %s10, 0
    %p72 = por %p70, %p71
    %p73 = scmp.ne.s32.totalorder %s65, %s67
    %p74 = scmp.eq.s32.totalorder %s15, 1
    %p75 = por %p73, %p74
    %p76 = scmp.ne.s32.totalorder %s67, %s68
    %p77 = scmp.eq.s32.totalorder %s15, 0
    %p78 = por %p76, %p77
    %p79 = scmp.ne.s32.totalorder %s67, %s68
    %p80 = scmp.eq.s32.totalorder %s16, 1
    %p81 = por %p79, %p80
    %p83 = scmp.ne.s32.totalorder %s68, %s82
    %p84 = scmp.eq.s32.totalorder %s16, 0
    %p85 = por %p83, %p84
    %s86 = ssub.s32 %s10, %s17
    %p87 = scmp.eq.s32.totalorder %s86, 0
    %s89 = sadd.s32 %s88, 1
    %s90 = scalar_select %p87, %s88, %s89
    %p93 = pneg %p87
    %p94 = scmp.eq.s32.totalorder %s10, 1
    %p95 = por %p93, %p94
    %p96 = scmp.ne.s32.totalorder %s88, %s91
    %p97 = scmp.eq.s32.totalorder %s10, 0
    %p98 = por %p96, %p97
    %p99 = scmp.ne.s32.totalorder %s88, %s91
    %p100 = scmp.eq.s32.totalorder %s15, 1
    %p101 = por %p99, %p100
    %p102 = scmp.ne.s32.totalorder %s91, %s92
    %p103 = scmp.eq.s32.totalorder %s15, 0
    %p104 = por %p102, %p103
    %p105 = scmp.ne.s32.totalorder %s91, %s92
    %p106 = scmp.eq.s32.totalorder %s16, 1
    %p107 = por %p105, %p106
    %p109 = scmp.ne.s32.totalorder %s92, %s108
    %p110 = scmp.eq.s32.totalorder %s16, 0
    %p111 = por %p109, %p110
    %s112 = ssub.s32 %s10, %s17
    %p113 = scmp.eq.s32.totalorder %s112, 0
    %s115 = sadd.s32 %s114, 1
    %s116 = scalar_select %p113, %s114, %s115
    %p119 = pneg %p113
    %p120 = scmp.eq.s32.totalorder %s10, 1
    %p121 = por %p119, %p120
    %p122 = scmp.ne.s32.totalorder %s114, %s117
    %p123 = scmp.eq.s32.totalorder %s10, 0
    %p124 = por %p122, %p123
    %p125 = scmp.ne.s32.totalorder %s114, %s117
    %p126 = scmp.eq.s32.totalorder %s15, 1
    %p127 = por %p125, %p126
    %p128 = scmp.ne.s32.totalorder %s117, %s118
    %p129 = scmp.eq.s32.totalorder %s15, 0
    %p130 = por %p128, %p129
    %p131 = scmp.ne.s32.totalorder %s117, %s118
    %p132 = scmp.eq.s32.totalorder %s16, 1
    %p133 = por %p131, %p132
    %p135 = scmp.ne.s32.totalorder %s118, %s134
    %p136 = scmp.eq.s32.totalorder %s16, 0
    %p137 = por %p135, %p136
    %p138 = scmp.le.s32.totalorder 1, %s10
    %p139 = scmp.lt.s32.totalorder %s10, 3
    %p140 = pnand %p138, %p139
    %p141 = pneg %p140
    // Predicated region
    $region9: #{resnet_forward.10} parent=5 // pred_check
      _
    $region10: #{resnet_forward.10} parent=5 // pred_check_branch
      %143 = sbr.rel (%p140) target = $region12
    $region11: #{resnet_forward.10} parent=5 // pred_region
      %s144 = ssub.s32 %s10, 1
      // Predicated region
      $region13: #{resnet_forward.10} parent=11 // pred_check
        %p145 = pneg %p57
      $region14: #{resnet_forward.10} parent=11 // pred_check_branch
        %147 = sbr.rel (%p145) target = $region16
      $region15: #{resnet_forward.10} parent=11 // pred_region
        _
      $region16: #{resnet_forward.10} parent=11 // pred_fallthru
        _
      // Predicated region
      $region17: #{resnet_forward.10} parent=11 // pred_check
        %p148 = pneg %p78
      $region18: #{resnet_forward.10} parent=11 // pred_check_branch
        %150 = sbr.rel (%p148) target = $region20
      $region19: #{resnet_forward.10} parent=11 // pred_region
        _
      $region20: #{resnet_forward.10} parent=11 // pred_fallthru
        _
    $region12: #{resnet_forward.10} parent=5 // pred_fallthru
      _
    %p151 = scmp.lt.s32.totalorder %s10, 2
    // Predicated region
    $region21: #{resnet_forward.10} parent=5 // pred_check
      %p152 = pneg %p151
    $region22: #{resnet_forward.10} parent=5 // pred_check_branch
      %154 = sbr.rel (%p152) target = $region24
    $region23: #{resnet_forward.10} parent=5 // pred_region
      // Predicated region
      $region25: #{resnet_forward.10} parent=23 // pred_check
        %p155 = pneg %p30
      $region26: #{resnet_forward.10} parent=23 // pred_check_branch
        %157 = sbr.rel (%p155) target = $region28
      $region27: #{resnet_forward.10} parent=23 // pred_region
        %p158 = scmp.lt.s32.totalorder %s10, 1
        %s159 = scalar_select %p158, %s10, 1
        %s160 = smul.addr %s159, 6
        %s161 = smul.addr %s160, 4
        %s162 = scalar_lea.vmem %s0, %s161
      $region28: #{resnet_forward.10} parent=23 // pred_fallthru
        _
      // Predicated region
      $region29: #{resnet_forward.10} parent=23 // pred_check
        %p163 = pneg %p98
      $region30: #{resnet_forward.10} parent=23 // pred_check_branch
        %165 = sbr.rel (%p163) target = $region32
      $region31: #{resnet_forward.10} parent=23 // pred_region
        %p166 = scmp.lt.s32.totalorder %s10, 1
        %s167 = scalar_select %p166, %s10, 1
        %s168 = smul.addr %s167, 6
        %s169 = smul.addr %s168, 4
        %s170 = scalar_lea.vmem %s3, %s169
      $region32: #{resnet_forward.10} parent=23 // pred_fallthru
        _
    $region24: #{resnet_forward.10} parent=5 // pred_fallthru
      _
    %p171 = scmp.le.s32.totalorder 1, %s10
    %p172 = scmp.lt.s32.totalorder %s10, 3
    %p173 = pnand %p171, %p172
    %p174 = pneg %p173
    // Predicated region
    $region33: #{resnet_forward.10} parent=5 // pred_check
      _
    $region34: #{resnet_forward.10} parent=5 // pred_check_branch
      %176 = sbr.rel (%p173) target = $region36
    $region35: #{resnet_forward.10} parent=5 // pred_region
      %s177 = ssub.s32 %s10, 1
      %p178 = scmp.lt.s32.totalorder %s15, 1
      %s179 = scalar_select %p178, %s15, 1
      %s180 = smul.addr %s179, 6
      %s181 = smul.addr %s180, 4
      %s182 = scalar_lea.vmem %s0, %s181
      %p183 = pneg %p36
      %p184 = pneg %p33
      %p185 = pneg %p57
      %p186 = pneg %p54
      %p187 = pneg %p78
      %p188 = pneg %p75
      %p189 = scmp.lt.s32.totalorder %s15, 1
      %s190 = scalar_select %p189, %s15, 1
      %s191 = smul.addr %s190, 6
      %s192 = smul.addr %s191, 4
      %s193 = scalar_lea.vmem %s3, %s192
      %p194 = pneg %p104
      %p195 = pneg %p101
      %p196 = pneg %p130
      %p197 = pneg %p127
      %p198 = scmp.lt.s32.totalorder %s15, 1
      %s199 = scalar_select %p198, %s15, 1
      %s200 = smul.addr %s199, 6
      %s201 = smul.addr %s200, 4
      %s202 = scalar_lea.vmem %s4, %s201
      %p203 = scmp.lt.s32.totalorder %s15, 1
      %s204 = scalar_select %p203, %s15, 1
      %s205 = smul.addr %s204, 6
      %s206 = smul.addr %s205, 4
      %s207 = scalar_lea.vmem %s0, %s206
      %p208 = scmp.lt.s32.totalorder %s15, 1
      %s209 = scalar_select %p208, %s15, 1
      %s210 = smul.addr %s209, 6
      %s211 = smul.addr %s210, 4
      %s212 = scalar_lea.vmem %s3, %s211
      %p213 = scmp.lt.s32.totalorder %s15, 1
      %s214 = scalar_select %p213, %s15, 1
      %s215 = smul.addr %s214, 6
      %s216 = smul.addr %s215, 4
      %s217 = scalar_lea.vmem %s4, %s216
      %v219 = vld [vmem:[%s207] sm:$0xff]
      %v220 = vld [vmem:[%s207 + $0x8] sm:$0xf]
      %v221 = vld [vmem:[%s207 + $0xc] sm:$0xff]
      %v222 = vld [vmem:[%s207 + $0x14] sm:$0xf]
      %v227 = vunpack.c.l.b16 %v219
      %v228 = vunpack.c.h.b16 %v219
      %v229 = vunpack.c.l.b16 %v220
      %v230 = vunpack.c.l.b16 %v221
      %v231 = vunpack.c.h.b16 %v221
      %v232 = vunpack.c.l.b16 %v222
      %v233 = vpack.c.b16 %v230, %v227
      %v234 = vpack.c.b16 %v231, %v228
      %v235 = vpack.c.b16 %v232, %v229
      %239 = vrot.lane.b32.xlu0 %v233, 127
      %v240 = vpop.permute.xlu0 %239
      %241 = vrot.lane.b32.xlu0 %v234, 127
      %v242 = vpop.permute.xlu0 %241
      %243 = vrot.lane.b32.xlu0 %v235, 127
      %v244 = vpop.permute.xlu0 %243
      %vm245 = vcmask 1039360
      %v246 = vsel %vm245, %v240, %v242
      %v247 = vsel %vm245, %v242, %v244
      %251 = vrot.lane.b32.xlu0 %v233, 126
      %v252 = vpop.permute.xlu0 %251
      %253 = vrot.lane.b32.xlu0 %v234, 126
      %v254 = vpop.permute.xlu0 %253
      %255 = vrot.lane.b32.xlu0 %v235, 126
      %v256 = vpop.permute.xlu0 %255
      %vm257 = vcmask 1031168
      %v258 = vsel %vm257, %v252, %v254
      %v259 = vsel %vm257, %v254, %v256
      %263 = vrot.lane.b32.xlu0 %v233, 110
      %v264 = vpop.permute.xlu0 %263
      %265 = vrot.lane.b32.xlu0 %v234, 110
      %v266 = vpop.permute.xlu0 %265
      %267 = vrot.lane.b32.xlu0 %v235, 110
      %v268 = vpop.permute.xlu0 %267
      %vm269 = vcmask 900096
      %v270 = vsel %vm269, %v264, %v266
      %v271 = vsel %vm269, %v266, %v268
      %275 = vrot.lane.b32.xlu0 %v233, 109
      %v276 = vpop.permute.xlu0 %275
      %277 = vrot.lane.b32.xlu0 %v234, 109
      %v278 = vpop.permute.xlu0 %277
      %279 = vrot.lane.b32.xlu0 %v235, 109
      %v280 = vpop.permute.xlu0 %279
      %vm281 = vcmask 891904
      %v282 = vsel %vm281, %v276, %v278
      %v283 = vsel %vm281, %v278, %v280
      %287 = vrot.lane.b32.xlu0 %v233, 108
      %v288 = vpop.permute.xlu0 %287
      %289 = vrot.lane.b32.xlu0 %v234, 108
      %v290 = vpop.permute.xlu0 %289
      %291 = vrot.lane.b32.xlu0 %v235, 108
      %v292 = vpop.permute.xlu0 %291
      %vm293 = vcmask 883712
      %v294 = vsel %vm293, %v288, %v290
      %v295 = vsel %vm293, %v290, %v292
      %299 = vrot.lane.b32.xlu0 %v233, 92
      %v300 = vpop.permute.xlu0 %299
      %301 = vrot.lane.b32.xlu0 %v234, 92
      %v302 = vpop.permute.xlu0 %301
      %303 = vrot.lane.b32.xlu0 %v235, 92
      %v304 = vpop.permute.xlu0 %303
      %vm305 = vcmask 752640
      %v306 = vsel %vm305, %v300, %v302
      %v307 = vsel %vm305, %v302, %v304
      %311 = vrot.lane.b32.xlu0 %v233, 91
      %v312 = vpop.permute.xlu0 %311
      %313 = vrot.lane.b32.xlu0 %v234, 91
      %v314 = vpop.permute.xlu0 %313
      %315 = vrot.lane.b32.xlu0 %v235, 91
      %v316 = vpop.permute.xlu0 %315
      %vm317 = vcmask 744448
      %v318 = vsel %vm317, %v312, %v314
      %v319 = vsel %vm317, %v314, %v316
      %323 = vrot.lane.b32.xlu0 %v233, 90
      %v324 = vpop.permute.xlu0 %323
      %325 = vrot.lane.b32.xlu0 %v234, 90
      %v326 = vpop.permute.xlu0 %325
      %327 = vrot.lane.b32.xlu0 %v235, 90
      %v328 = vpop.permute.xlu0 %327
      %vm329 = vcmask 736256
      %v330 = vsel %vm329, %v324, %v326
      %v331 = vsel %vm329, %v326, %v328
      %v335 = vld [vmem:[%s1] sm:$0xff]
      %v336 = vld [vmem:[%s1 + $0x8] sm:$0xff]
      %v337 = vld [vmem:[%s2] sm:$0xff]
      %v338 = vld [vmem:[%s2 + $0x8] sm:$0xff]
      %340 = vset.pattern.permute.xlu0 0
      %341 = vperm.xlu0 %340, %v337
      %v342 = vpop.permute.xlu0 %341
      %345 = vset.pattern.permute.xlu0 0
      %346 = vperm.xlu0 %345, %v338
      %v347 = vpop.permute.xlu0 %346
      %v351 = vunpack.c.l.b16 %v335
      %v352 = vunpack.c.h.b16 %v335
      %v353 = vunpack.c.l.b16 %v336
      %v354 = vunpack.c.h.b16 %v336
      %v355 = vpack.c.b16 %v353, %v351
      %v356 = vpack.c.b16 %v354, %v352
      %vm358 = vcmask 130048
      %v360 = vsel %vm358, %v356, 0
      %362 = vmatprep.subr.bf16.mxu0 %v234
      %363 = vmatpush1.bf16.msra.mxu0 %v233
      %364 = vmatprep.subr.bf16.mxu0 %v247
      %365 = vmatpush1.bf16.msra.mxu0 %v246
      %366 = vmatprep.subr.bf16.mxu0 %v259
      %367 = vmatpush1.bf16.msra.mxu0 %v258
      %368 = vmatprep.subr.bf16.mxu0 %v271
      %369 = vmatpush1.bf16.msra.mxu0 %v270
      %370 = vmatprep.subr.bf16.mxu0 %v283
      %371 = vmatpush1.bf16.msra.mxu0 %v282
      %372 = vmatprep.subr.bf16.mxu0 %v295
      %373 = vmatpush1.bf16.msra.mxu0 %v294
      %374 = vmatprep.subr.bf16.mxu0 %v307
      %375 = vmatpush1.bf16.msra.mxu0 %v306
      %376 = vmatprep.subr.bf16.mxu0 %v319
      %377 = vmatpush1.bf16.msra.mxu0 %v318
      %378 = vmatprep.subr.bf16.mxu0 %v331
      %379 = vmatpush1.bf16.msra.mxu0 %v330
      %380 = vmatprep.subr.bf16.mxu0 0
      %381 = vmatpush1.bf16.msra.mxu0 0
      %382 = vmatprep.subr.bf16.mxu0 0
      %383 = vmatpush1.bf16.msra.mxu0 0
      %384 = vmatprep.subr.bf16.mxu0 0
      %385 = vmatpush1.bf16.msra.mxu0 0
      %386 = vmatprep.subr.bf16.mxu0 0
      %387 = vmatpush1.bf16.msra.mxu0 0
      %388 = vmatprep.subr.bf16.mxu0 0
      %389 = vmatpush1.bf16.msra.mxu0 0
      %390 = vmatprep.subr.bf16.mxu0 0
      %391 = vmatpush1.bf16.msra.mxu0 0
      %392 = vmatprep.subr.bf16.mxu0 0
      %393 = vmatpush1.bf16.msra.mxu0 0
      %394 = vmatprep.mubr.bf16.mxu0 %v360
      %395 = vmatmul.mubr.bf16.gmra.mrb[0].mxu0 %v355
      %v396 = vpop.f32.mrb[0].mxu0
      %v397 = vadd.f32 %v342, %v396
      %v398 = vpop.f32.mrb[0].mxu0
      %v399 = vadd.f32 %v342, %v398
      %v400 = vpop.f32.mrb[0].mxu0
      %v401 = vadd.f32 %v347, %v400
      %v402 = vpop.f32.mrb[0].mxu0
      %v403 = vadd.f32 %v347, %v402
      %404 = vdwg.mxu0
      %405 = vmatprep.subr.bf16.mxu0 0
      %406 = vmatpush1.bf16.msra.mxu0 %v235
      %407 = vmatprep.subr.bf16.mxu0 0
      %408 = vmatpush1.bf16.msra.mxu0 %v244
      %409 = vmatprep.subr.bf16.mxu0 0
      %410 = vmatpush1.bf16.msra.mxu0 %v256
      %411 = vmatprep.subr.bf16.mxu0 0
      %412 = vmatpush1.bf16.msra.mxu0 %v268
      %413 = vmatprep.subr.bf16.mxu0 0
      %414 = vmatpush1.bf16.msra.mxu0 %v280
      %415 = vmatprep.subr.bf16.mxu0 0
      %416 = vmatpush1.bf16.msra.mxu0 %v292
      %417 = vmatprep.subr.bf16.mxu0 0
      %418 = vmatpush1.bf16.msra.mxu0 %v304
      %419 = vmatprep.subr.bf16.mxu0 0
      %420 = vmatpush1.bf16.msra.mxu0 %v316
      %421 = vmatprep.subr.bf16.mxu0 0
      %422 = vmatpush1.bf16.msra.mxu0 %v328
      %423 = vmatprep.subr.bf16.mxu0 0
      %424 = vmatpush1.bf16.msra.mxu0 0
      %425 = vmatprep.subr.bf16.mxu0 0
      %426 = vmatpush1.bf16.msra.mxu0 0
      %427 = vmatprep.subr.bf16.mxu0 0
      %428 = vmatpush1.bf16.msra.mxu0 0
      %429 = vmatprep.subr.bf16.mxu0 0
      %430 = vmatpush1.bf16.msra.mxu0 0
      %431 = vmatprep.subr.bf16.mxu0 0
      %432 = vmatpush1.bf16.msra.mxu0 0
      %433 = vmatprep.subr.bf16.mxu0 0
      %434 = vmatpush1.bf16.msra.mxu0 0
      %435 = vmatprep.subr.bf16.mxu0 0
      %436 = vmatpush1.bf16.msra.mxu0 0
      %437 = vmatprep.mubr.bf16.mxu0 %v360
      %438 = vmatmul.mubr.bf16.gmra.mrb[0].mxu0 %v355
      %v439 = vpop.f32.mrb[0].mxu0
      %v440 = vadd.f32 %v342, %v439
      %v441 = vpop.f32.mrb[0].mxu0
      %v442 = vpop.f32.mrb[0].mxu0
      %v443 = vadd.f32 %v347, %v442
      %v444 = vpop.f32.mrb[0].mxu0
      %445 = vdwg.mxu0
      %v446 = vld [vmem:[%s212] sm:$0xff]
      %v447 = vld [vmem:[%s212 + $0x8] sm:$0xf]
      %v448 = vld [vmem:[%s212 + $0xc] sm:$0xff]
      %v449 = vld [vmem:[%s212 + $0x14] sm:$0xf]
      %v450 = vunpack.c.l.bf16 %v446
      %v451 = vunpack.c.h.bf16 %v446
      %v452 = vunpack.c.l.bf16 %v447
      %v453 = vunpack.c.l.bf16 %v448
      %v454 = vunpack.c.h.bf16 %v448
      %v455 = vunpack.c.l.bf16 %v449
      %v456 = vadd.f32 %v397, %v450
      %v457 = vadd.f32 %v399, %v451
      %v458 = vadd.f32 %v440, %v452
      %v459 = vadd.f32 %v401, %v453
      %v460 = vadd.f32 %v403, %v454
      %v461 = vadd.f32 %v443, %v455
      %v462 = vmax.f32 %v456, 0.0
      %v463 = vmax.f32 %v457, 0.0
      %v464 = vmax.f32 %v458, 0.0
      %v465 = vmax.f32 %v459, 0.0
      %v466 = vmax.f32 %v460, 0.0
      %v467 = vmax.f32 %v461, 0.0
      %v468 = vpack.c.bf16 %v465, %v462
      %v469 = vpack.c.bf16 %v466, %v463
      %v470 = vpack.c.bf16 %v467, %v464
      %v474 = vunpack.c.l.b16 %v468
      %v475 = vunpack.c.l.b16 %v469
      %v476 = vunpack.c.l.b16 %v470
      %v477 = vunpack.c.h.b16 %v468
      %v478 = vunpack.c.h.b16 %v469
      %v479 = vunpack.c.h.b16 %v470
      %v480 = vpack.c.b16 %v475, %v474
      %v481 = vpack.c.b16 %v476, %v476
      %v482 = vpack.c.b16 %v478, %v477
      %v483 = vpack.c.b16 %v479, %v479
      %488 = vst [vmem:[%s217] sm:$0xff] %v480
      %vm489 = vcmask 240640
      %490 = vst.msk [vmem:[%s217 + $0x8] sm:$0xf] %vm489, %v481
      %491 = vst [vmem:[%s217 + $0xc] sm:$0xff] %v482
      %492 = vst.msk [vmem:[%s217 + $0x14] sm:$0xf] %vm489, %v483
      %p493 = scmp.lt.s32.totalorder %s15, 1
      %s494 = scalar_select %p493, %s15, 1
      %s495 = smul.addr %s494, 6
      %s496 = smul.addr %s495, 4
      %s497 = scalar_lea.vmem %s4, %s496
      // Predicated region
      $region37: #{resnet_forward.10} parent=35 // pred_check
        %p498 = pneg %p127
      $region38: #{resnet_forward.10} parent=35 // pred_check_branch
        %500 = sbr.rel (%p498) target = $region40
      $region39: #{resnet_forward.10} parent=35 // pred_region
        _
      $region40: #{resnet_forward.10} parent=35 // pred_fallthru
        _
    $region36: #{resnet_forward.10} parent=5 // pred_fallthru
      _
    %p501 = scmp.le.s32.totalorder 2, %s10
    // Predicated region
    $region41: #{resnet_forward.10} parent=5 // pred_check
      %p502 = pneg %p501
    $region42: #{resnet_forward.10} parent=5 // pred_check_branch
      %504 = sbr.rel (%p502) target = $region44
    $region43: #{resnet_forward.10} parent=5 // pred_region
      %s505 = ssub.s32 %s10, 2
      // Predicated region
      $region45: #{resnet_forward.10} parent=43 // pred_check
        %p506 = pneg %p133
      $region46: #{resnet_forward.10} parent=43 // pred_check_branch
        %508 = sbr.rel (%p506) target = $region48
      $region47: #{resnet_forward.10} parent=43 // pred_region
        %p509 = scmp.lt.s32.totalorder %s16, 1
        %s510 = scalar_select %p509, %s16, 1
        %s511 = smul.addr %s510, 6
        %s512 = smul.addr %s511, 4
        %s513 = scalar_lea.vmem %s4, %s512
      $region48: #{resnet_forward.10} parent=43 // pred_fallthru
        _
    $region44: #{resnet_forward.10} parent=5 // pred_fallthru
      _
  $region6: #{resnet_forward.10} parent=0 // loop_footer
    %s14 = sadd.s32 1, %s10
  $region7: #{resnet_forward.10} parent=0 // loop_footer_branch
    %9 = sbr.rel target = $region3
  $region8: #{resnet_forward.10} parent=0 // loop_exit
    _

// kernel: resnet_forward.8
$region0: #{resnet_forward.8}
  #allocation0 [shape = 'u32[]', space=smem, size = 0x4, offset = 0x4, fixed_abs, tag = 'smem constant byte address 0x4 - core index']
  #allocation1 [shape = 'u32[144,128]{1,0:T(1,128)}', space=vmem, size = 0x12000, scoped, tag = 'internal scratch']
  %s0 = inlined_call_operand.vmem [shape: bf16[2,16,324], index: 0, kind: input, shape index: {}]
  %s1 = inlined_call_operand.vmem [shape: bf16[16,144], index: 1, kind: input, shape index: {}]
  %s2 = inlined_call_operand.vmem [shape: f32[16,1], index: 2, kind: input, shape index: {}]
  %s3 = inlined_call_operand.vmem [shape: bf16[2,16,286], index: 3, kind: output, shape index: {}]
  %s4 = sld [smem:[#allocation0]]
  $region45: #{resnet_forward.8} parent=0
    _
  %s6 = ssub.s32 1, %s4
  %s7 = scalar_select 0, %s6, %s4
  loop: start=0, step=1, limit=4
  $region2: #{resnet_forward.8} parent=0 // loop_pre_header
    _
  $region3: #{resnet_forward.8} parent=0 // loop_header
    %s9 = sphi 0, %s13
    %p10 = scmp.ge.s32.totalorder %s9, 4
    %s19 = sphi 0, %s21
    %s22 = sphi 0, %s19
    %s23 = sphi 0, %s22
    %s39 = sphi 0, %s23
    %s43 = sphi 0, %s43
    %s45 = sphi 0, %s43
    %s46 = sphi 0, %s45
    %s60 = sphi 0, %s46
    %s64 = sphi 0, %s64
    %s66 = sphi 0, %s64
    %s67 = sphi 0, %s66
    %s81 = sphi 0, %s67
    %s87 = sphi 0, %s89
    %s90 = sphi 0, %s87
    %s91 = sphi 0, %s90
    %s107 = sphi 0, %s91
  $region4: #{resnet_forward.8} parent=0 // loop_header_branch
    %12 = sbr.rel (%p10) target = $region8
  $region5: #{resnet_forward.8} parent=0 // loop_body
    %s14 = ssub.s32 %s9, 1
    %s15 = ssub.s32 %s9, 2
    %s16 = sadd.s32 %s9, 1
    %s17 = ssub.s32 %s9, %s16
    %p18 = scmp.eq.s32.totalorder %s17, 0
    %s20 = sadd.s32 %s19, 1
    %s21 = scalar_select %p18, %s19, %s20
    %p24 = pneg %p18
    %p25 = scmp.eq.s32.totalorder %s9, 1
    %p26 = por %p24, %p25
    %p27 = scmp.ne.s32.totalorder %s19, %s22
    %p28 = scmp.eq.s32.totalorder %s9, 0
    %p29 = por %p27, %p28
    %p30 = scmp.ne.s32.totalorder %s19, %s22
    %p31 = scmp.eq.s32.totalorder %s14, 1
    %p32 = por %p30, %p31
    %p33 = scmp.ne.s32.totalorder %s22, %s23
    %p34 = scmp.eq.s32.totalorder %s14, 0
    %p35 = por %p33, %p34
    %p36 = scmp.ne.s32.totalorder %s22, %s23
    %p37 = scmp.eq.s32.totalorder %s15, 1
    %p38 = por %p36, %p37
    %p40 = scmp.ne.s32.totalorder %s23, %s39
    %p41 = scmp.eq.s32.totalorder %s15, 0
    %p42 = por %p40, %p41
    %s44 = sadd.s32 %s43, 1
    %p47 = scmp.eq.s32.totalorder %s9, 1
    %p48 = scmp.ne.s32.totalorder %s43, %s45
    %p49 = scmp.eq.s32.totalorder %s9, 0
    %p50 = por %p48, %p49
    %p51 = scmp.ne.s32.totalorder %s43, %s45
    %p52 = scmp.eq.s32.totalorder %s14, 1
    %p53 = por %p51, %p52
    %p54 = scmp.ne.s32.totalorder %s45, %s46
    %p55 = scmp.eq.s32.totalorder %s14, 0
    %p56 = por %p54, %p55
    %p57 = scmp.ne.s32.totalorder %s45, %s46
    %p58 = scmp.eq.s32.totalorder %s15, 1
    %p59 = por %p57, %p58
    %p61 = scmp.ne.s32.totalorder %s46, %s60
    %p62 = scmp.eq.s32.totalorder %s15, 0
    %p63 = por %p61, %p62
    %s65 = sadd.s32 %s64, 1
    %p68 = scmp.eq.s32.totalorder %s9, 1
    %p69 = scmp.ne.s32.totalorder %s64, %s66
    %p70 = scmp.eq.s32.totalorder %s9, 0
    %p71 = por %p69, %p70
    %p72 = scmp.ne.s32.totalorder %s64, %s66
    %p73 = scmp.eq.s32.totalorder %s14, 1
    %p74 = por %p72, %p73
    %p75 = scmp.ne.s32.totalorder %s66, %s67
    %p76 = scmp.eq.s32.totalorder %s14, 0
    %p77 = por %p75, %p76
    %p78 = scmp.ne.s32.totalorder %s66, %s67
    %p79 = scmp.eq.s32.totalorder %s15, 1
    %p80 = por %p78, %p79
    %p82 = scmp.ne.s32.totalorder %s67, %s81
    %p83 = scmp.eq.s32.totalorder %s15, 0
    %p84 = por %p82, %p83
    %s85 = ssub.s32 %s9, %s16
    %p86 = scmp.eq.s32.totalorder %s85, 0
    %s88 = sadd.s32 %s87, 1
    %s89 = scalar_select %p86, %s87, %s88
    %p92 = pneg %p86
    %p93 = scmp.eq.s32.totalorder %s9, 1
    %p94 = por %p92, %p93
    %p95 = scmp.ne.s32.totalorder %s87, %s90
    %p96 = scmp.eq.s32.totalorder %s9, 0
    %p97 = por %p95, %p96
    %p98 = scmp.ne.s32.totalorder %s87, %s90
    %p99 = scmp.eq.s32.totalorder %s14, 1
    %p100 = por %p98, %p99
    %p101 = scmp.ne.s32.totalorder %s90, %s91
    %p102 = scmp.eq.s32.totalorder %s14, 0
    %p103 = por %p101, %p102
    %p104 = scmp.ne.s32.totalorder %s90, %s91
    %p105 = scmp.eq.s32.totalorder %s15, 1
    %p106 = por %p104, %p105
    %p108 = scmp.ne.s32.totalorder %s91, %s107
    %p109 = scmp.eq.s32.totalorder %s15, 0
    %p110 = por %p108, %p109
    %p111 = scmp.le.s32.totalorder 1, %s9
    %p112 = scmp.lt.s32.totalorder %s9, 3
    %p113 = pnand %p111, %p112
    %p114 = pneg %p113
    // Predicated region
    $region9: #{resnet_forward.8} parent=5 // pred_check
      _
    $region10: #{resnet_forward.8} parent=5 // pred_check_branch
      %116 = sbr.rel (%p113) target = $region12
    $region11: #{resnet_forward.8} parent=5 // pred_region
      %s117 = ssub.s32 %s9, 1
      // Predicated region
      $region13: #{resnet_forward.8} parent=11 // pred_check
        %p118 = pneg %p56
      $region14: #{resnet_forward.8} parent=11 // pred_check_branch
        %120 = sbr.rel (%p118) target = $region16
      $region15: #{resnet_forward.8} parent=11 // pred_region
        _
      $region16: #{resnet_forward.8} parent=11 // pred_fallthru
        _
      // Predicated region
      $region17: #{resnet_forward.8} parent=11 // pred_check
        %p121 = pneg %p77
      $region18: #{resnet_forward.8} parent=11 // pred_check_branch
        %123 = sbr.rel (%p121) target = $region20
      $region19: #{resnet_forward.8} parent=11 // pred_region
        _
      $region20: #{resnet_forward.8} parent=11 // pred_fallthru
        _
    $region12: #{resnet_forward.8} parent=5 // pred_fallthru
      _
    %p124 = scmp.lt.s32.totalorder %s9, 2
    // Predicated region
    $region21: #{resnet_forward.8} parent=5 // pred_check
      %p125 = pneg %p124
    $region22: #{resnet_forward.8} parent=5 // pred_check_branch
      %127 = sbr.rel (%p125) target = $region24
    $region23: #{resnet_forward.8} parent=5 // pred_region
      // Predicated region
      $region25: #{resnet_forward.8} parent=23 // pred_check
        %p128 = pneg %p29
      $region26: #{resnet_forward.8} parent=23 // pred_check_branch
        %130 = sbr.rel (%p128) target = $region28
      $region27: #{resnet_forward.8} parent=23 // pred_region
        %p131 = scmp.lt.s32.totalorder %s9, 1
        %s132 = scalar_select %p131, %s9, 1
        %s133 = smul.addr %s132, 6
        %s134 = smul.addr %s133, 4
        %s135 = scalar_lea.vmem %s0, %s134
      $region28: #{resnet_forward.8} parent=23 // pred_fallthru
        _
    $region24: #{resnet_forward.8} parent=5 // pred_fallthru
      _
    %p136 = scmp.le.s32.totalorder 1, %s9
    %p137 = scmp.lt.s32.totalorder %s9, 3
    %p138 = pnand %p136, %p137
    %p139 = pneg %p138
    // Predicated region
    $region29: #{resnet_forward.8} parent=5 // pred_check
      _
    $region30: #{resnet_forward.8} parent=5 // pred_check_branch
      %141 = sbr.rel (%p138) target = $region32
    $region31: #{resnet_forward.8} parent=5 // pred_region
      %s142 = ssub.s32 %s9, 1
      %p143 = scmp.lt.s32.totalorder %s14, 1
      %s144 = scalar_select %p143, %s14, 1
      %s145 = smul.addr %s144, 6
      %s146 = smul.addr %s145, 4
      %s147 = scalar_lea.vmem %s0, %s146
      %p148 = pneg %p35
      %p149 = pneg %p32
      %p150 = pneg %p56
      %p151 = pneg %p53
      %p152 = pneg %p77
      %p153 = pneg %p74
      %p154 = pneg %p103
      %p155 = pneg %p100
      %p156 = scmp.lt.s32.totalorder %s14, 1
      %s157 = scalar_select %p156, %s14, 1
      %s158 = smul.addr %s157, 6
      %s159 = smul.addr %s158, 4
      %s160 = scalar_lea.vmem %s3, %s159
      %p161 = scmp.lt.s32.totalorder %s14, 1
      %s162 = scalar_select %p161, %s14, 1
      %s163 = smul.addr %s162, 6
      %s164 = smul.addr %s163, 4
      %s165 = scalar_lea.vmem %s0, %s164
      %p166 = scmp.lt.s32.totalorder %s14, 1
      %s167 = scalar_select %p166, %s14, 1
      %s168 = smul.addr %s167, 6
      %s169 = smul.addr %s168, 4
      %s170 = scalar_lea.vmem %s3, %s169
      %v172 = vld [vmem:[%s165] sm:$0xff]
      %v173 = vld [vmem:[%s165 + $0x8] sm:$0xf]
      %v174 = vld [vmem:[%s165 + $0xc] sm:$0xff]
      %v175 = vld [vmem:[%s165 + $0x14] sm:$0xf]
      %v180 = vunpack.c.l.b16 %v172
      %v181 = vunpack.c.h.b16 %v172
      %v182 = vunpack.c.l.b16 %v173
      %v183 = vunpack.c.l.b16 %v174
      %v184 = vunpack.c.h.b16 %v174
      %v185 = vunpack.c.l.b16 %v175
      %v186 = vpack.c.b16 %v183, %v180
      %v187 = vpack.c.b16 %v184, %v181
      %v188 = vpack.c.b16 %v185, %v182
      %192 = vrot.lane.b32.xlu0 %v186, 127
      %v193 = vpop.permute.xlu0 %192
      %194 = vrot.lane.b32.xlu0 %v187, 127
      %v195 = vpop.permute.xlu0 %194
      %196 = vrot.lane.b32.xlu0 %v188, 127
      %v197 = vpop.permute.xlu0 %196
      %vm198 = vcmask 1039360
      %v199 = vsel %vm198, %v193, %v195
      %v200 = vsel %vm198, %v195, %v197
      %204 = vrot.lane.b32.xlu0 %v186, 126
      %v205 = vpop.permute.xlu0 %204
      %206 = vrot.lane.b32.xlu0 %v187, 126
      %v207 = vpop.permute.xlu0 %206
      %208 = vrot.lane.b32.xlu0 %v188, 126
      %v209 = vpop.permute.xlu0 %208
      %vm210 = vcmask 1031168
      %v211 = vsel %vm210, %v205, %v207
      %v212 = vsel %vm210, %v207, %v209
      %216 = vrot.lane.b32.xlu0 %v186, 110
      %v217 = vpop.permute.xlu0 %216
      %218 = vrot.lane.b32.xlu0 %v187, 110
      %v219 = vpop.permute.xlu0 %218
      %220 = vrot.lane.b32.xlu0 %v188, 110
      %v221 = vpop.permute.xlu0 %220
      %vm222 = vcmask 900096
      %v223 = vsel %vm222, %v217, %v219
      %v224 = vsel %vm222, %v219, %v221
      %228 = vrot.lane.b32.xlu0 %v186, 109
      %v229 = vpop.permute.xlu0 %228
      %230 = vrot.lane.b32.xlu0 %v187, 109
      %v231 = vpop.permute.xlu0 %230
      %232 = vrot.lane.b32.xlu0 %v188, 109
      %v233 = vpop.permute.xlu0 %232
      %vm234 = vcmask 891904
      %v235 = vsel %vm234, %v229, %v231
      %v236 = vsel %vm234, %v231, %v233
      %240 = vrot.lane.b32.xlu0 %v186, 108
      %v241 = vpop.permute.xlu0 %240
      %242 = vrot.lane.b32.xlu0 %v187, 108
      %v243 = vpop.permute.xlu0 %242
      %244 = vrot.lane.b32.xlu0 %v188, 108
      %v245 = vpop.permute.xlu0 %244
      %vm246 = vcmask 883712
      %v247 = vsel %vm246, %v241, %v243
      %v248 = vsel %vm246, %v243, %v245
      %252 = vrot.lane.b32.xlu0 %v186, 92
      %v253 = vpop.permute.xlu0 %252
      %254 = vrot.lane.b32.xlu0 %v187, 92
      %v255 = vpop.permute.xlu0 %254
      %256 = vrot.lane.b32.xlu0 %v188, 92
      %v257 = vpop.permute.xlu0 %256
      %vm258 = vcmask 752640
      %v259 = vsel %vm258, %v253, %v255
      %v260 = vsel %vm258, %v255, %v257
      %264 = vrot.lane.b32.xlu0 %v186, 91
      %v265 = vpop.permute.xlu0 %264
      %266 = vrot.lane.b32.xlu0 %v187, 91
      %v267 = vpop.permute.xlu0 %266
      %268 = vrot.lane.b32.xlu0 %v188, 91
      %v269 = vpop.permute.xlu0 %268
      %vm270 = vcmask 744448
      %v271 = vsel %vm270, %v265, %v267
      %v272 = vsel %vm270, %v267, %v269
      %276 = vrot.lane.b32.xlu0 %v186, 90
      %v277 = vpop.permute.xlu0 %276
      %278 = vrot.lane.b32.xlu0 %v187, 90
      %v279 = vpop.permute.xlu0 %278
      %280 = vrot.lane.b32.xlu0 %v188, 90
      %v281 = vpop.permute.xlu0 %280
      %vm282 = vcmask 736256
      %v283 = vsel %vm282, %v277, %v279
      %v284 = vsel %vm282, %v279, %v281
      %v288 = vld [vmem:[%s1] sm:$0xff]
      %v289 = vld [vmem:[%s1 + $0x8] sm:$0xff]
      %v290 = vld [vmem:[%s2] sm:$0xff]
      %v291 = vld [vmem:[%s2 + $0x8] sm:$0xff]
      %293 = vset.pattern.permute.xlu0 0
      %294 = vperm.xlu0 %293, %v290
      %v295 = vpop.permute.xlu0 %294
      %298 = vset.pattern.permute.xlu0 0
      %299 = vperm.xlu0 %298, %v291
      %v300 = vpop.permute.xlu0 %299
      %v304 = vunpack.c.l.b16 %v288
      %v305 = vunpack.c.h.b16 %v288
      %v306 = vunpack.c.l.b16 %v289
      %v307 = vunpack.c.h.b16 %v289
      %v308 = vpack.c.b16 %v306, %v304
      %v309 = vpack.c.b16 %v307, %v305
      %vm311 = vcmask 130048
      %v313 = vsel %vm311, %v309, 0
      %315 = vmatprep.subr.bf16.mxu0 %v187
      %316 = vmatpush1.bf16.msra.mxu0 %v186
      %317 = vmatprep.subr.bf16.mxu0 %v200
      %318 = vmatpush1.bf16.msra.mxu0 %v199
      %319 = vmatprep.subr.bf16.mxu0 %v212
      %320 = vmatpush1.bf16.msra.mxu0 %v211
      %321 = vmatprep.subr.bf16.mxu0 %v224
      %322 = vmatpush1.bf16.msra.mxu0 %v223
      %323 = vmatprep.subr.bf16.mxu0 %v236
      %324 = vmatpush1.bf16.msra.mxu0 %v235
      %325 = vmatprep.subr.bf16.mxu0 %v248
      %326 = vmatpush1.bf16.msra.mxu0 %v247
      %327 = vmatprep.subr.bf16.mxu0 %v260
      %328 = vmatpush1.bf16.msra.mxu0 %v259
      %329 = vmatprep.subr.bf16.mxu0 %v272
      %330 = vmatpush1.bf16.msra.mxu0 %v271
      %331 = vmatprep.subr.bf16.mxu0 %v284
      %332 = vmatpush1.bf16.msra.mxu0 %v283
      %333 = vmatprep.subr.bf16.mxu0 0
      %334 = vmatpush1.bf16.msra.mxu0 0
      %335 = vmatprep.subr.bf16.mxu0 0
      %336 = vmatpush1.bf16.msra.mxu0 0
      %337 = vmatprep.subr.bf16.mxu0 0
      %338 = vmatpush1.bf16.msra.mxu0 0
      %339 = vmatprep.subr.bf16.mxu0 0
      %340 = vmatpush1.bf16.msra.mxu0 0
      %341 = vmatprep.subr.bf16.mxu0 0
      %342 = vmatpush1.bf16.msra.mxu0 0
      %343 = vmatprep.subr.bf16.mxu0 0
      %344 = vmatpush1.bf16.msra.mxu0 0
      %345 = vmatprep.subr.bf16.mxu0 0
      %346 = vmatpush1.bf16.msra.mxu0 0
      %347 = vmatprep.mubr.bf16.mxu0 %v313
      %348 = vmatmul.mubr.bf16.gmra.mrb[0].mxu0 %v308
      %v349 = vpop.f32.mrb[0].mxu0
      %v350 = vadd.f32 %v295, %v349
      %v351 = vpop.f32.mrb[0].mxu0
      %v352 = vadd.f32 %v295, %v351
      %v353 = vpop.f32.mrb[0].mxu0
      %v354 = vadd.f32 %v300, %v353
      %v355 = vpop.f32.mrb[0].mxu0
      %v356 = vadd.f32 %v300, %v355
      %357 = vdwg.mxu0
      %358 = vmatprep.subr.bf16.mxu0 0
      %359 = vmatpush1.bf16.msra.mxu0 %v188
      %360 = vmatprep.subr.bf16.mxu0 0
      %361 = vmatpush1.bf16.msra.mxu0 %v197
      %362 = vmatprep.subr.bf16.mxu0 0
      %363 = vmatpush1.bf16.msra.mxu0 %v209
      %364 = vmatprep.subr.bf16.mxu0 0
      %365 = vmatpush1.bf16.msra.mxu0 %v221
      %366 = vmatprep.subr.bf16.mxu0 0
      %367 = vmatpush1.bf16.msra.mxu0 %v233
      %368 = vmatprep.subr.bf16.mxu0 0
      %369 = vmatpush1.bf16.msra.mxu0 %v245
      %370 = vmatprep.subr.bf16.mxu0 0
      %371 = vmatpush1.bf16.msra.mxu0 %v257
      %372 = vmatprep.subr.bf16.mxu0 0
      %373 = vmatpush1.bf16.msra.mxu0 %v269
      %374 = vmatprep.subr.bf16.mxu0 0
      %375 = vmatpush1.bf16.msra.mxu0 %v281
      %376 = vmatprep.subr.bf16.mxu0 0
      %377 = vmatpush1.bf16.msra.mxu0 0
      %378 = vmatprep.subr.bf16.mxu0 0
      %379 = vmatpush1.bf16.msra.mxu0 0
      %380 = vmatprep.subr.bf16.mxu0 0
      %381 = vmatpush1.bf16.msra.mxu0 0
      %382 = vmatprep.subr.bf16.mxu0 0
      %383 = vmatpush1.bf16.msra.mxu0 0
      %384 = vmatprep.subr.bf16.mxu0 0
      %385 = vmatpush1.bf16.msra.mxu0 0
      %386 = vmatprep.subr.bf16.mxu0 0
      %387 = vmatpush1.bf16.msra.mxu0 0
      %388 = vmatprep.subr.bf16.mxu0 0
      %389 = vmatpush1.bf16.msra.mxu0 0
      %390 = vmatprep.mubr.bf16.mxu0 %v313
      %391 = vmatmul.mubr.bf16.gmra.mrb[0].mxu0 %v308
      %v392 = vpop.f32.mrb[0].mxu0
      %v393 = vadd.f32 %v295, %v392
      %v394 = vpop.f32.mrb[0].mxu0
      %v395 = vpop.f32.mrb[0].mxu0
      %v396 = vadd.f32 %v300, %v395
      %v397 = vpop.f32.mrb[0].mxu0
      %398 = vdwg.mxu0
      %v399 = vmax.f32 %v350, 0.0
      %v400 = vmax.f32 %v352, 0.0
      %v401 = vmax.f32 %v393, 0.0
      %v402 = vmax.f32 %v354, 0.0
      %v403 = vmax.f32 %v356, 0.0
      %v404 = vmax.f32 %v396, 0.0
      %v405 = vpack.c.bf16 %v402, %v399
      %v406 = vpack.c.bf16 %v403, %v400
      %v407 = vpack.c.bf16 %v404, %v401
      %v411 = vunpack.c.l.b16 %v405
      %v412 = vunpack.c.l.b16 %v406
      %v413 = vunpack.c.l.b16 %v407
      %v414 = vunpack.c.h.b16 %v405
      %v415 = vunpack.c.h.b16 %v406
      %v416 = vunpack.c.h.b16 %v407
      %v417 = vpack.c.b16 %v412, %v411
      %v418 = vpack.c.b16 %v413, %v413
      %v419 = vpack.c.b16 %v415, %v414
      %v420 = vpack.c.b16 %v416, %v416
      %425 = vst [vmem:[%s170] sm:$0xff] %v417
      %vm426 = vcmask 240640
      %427 = vst.msk [vmem:[%s170 + $0x8] sm:$0xf] %vm426, %v418
      %428 = vst [vmem:[%s170 + $0xc] sm:$0xff] %v419
      %429 = vst.msk [vmem:[%s170 + $0x14] sm:$0xf] %vm426, %v420
      %p430 = scmp.lt.s32.totalorder %s14, 1
      %s431 = scalar_select %p430, %s14, 1
      %s432 = smul.addr %s431, 6
      %s433 = smul.addr %s432, 4
      %s434 = scalar_lea.vmem %s3, %s433
      // Predicated region
      $region33: #{resnet_forward.8} parent=31 // pred_check
        %p435 = pneg %p100
      $region34: #{resnet_forward.8} parent=31 // pred_check_branch
        %437 = sbr.rel (%p435) target = $region36
      $region35: #{resnet_forward.8} parent=31 // pred_region
        _
      $region36: #{resnet_forward.8} parent=31 // pred_fallthru
        _
    $region32: #{resnet_forward.8} parent=5 // pred_fallthru
      _
    %p438 = scmp.le.s32.totalorder 2, %s9
    // Predicated region
    $region37: #{resnet_forward.8} parent=5 // pred_check
      %p439 = pneg %p438
    $region38: #{resnet_forward.8} parent=5 // pred_check_branch
      %441 = sbr.rel (%p439) target = $region40
    $region39: #{resnet_forward.8} parent=5 // pred_region
      %s442 = ssub.s32 %s9, 2
      // Predicated region
      $region41: #{resnet_forward.8} parent=39 // pred_check
        %p443 = pneg %p106
      $region42: #{resnet_forward.8} parent=39 // pred_check_branch
        %445 = sbr.rel (%p443) target = $region44
      $region43: #{resnet_forward.8} parent=39 // pred_region
        %p446 = scmp.lt.s32.totalorder %s15, 1
        %s447 = scalar_select %p446, %s15, 1
        %s448 = smul.addr %s447, 6
        %s449 = smul.addr %s448, 4
        %s450 = scalar_lea.vmem %s3, %s449
      $region44: #{resnet_forward.8} parent=39 // pred_fallthru
        _
    $region40: #{resnet_forward.8} parent=5 // pred_fallthru
      _
  $region6: #{resnet_forward.8} parent=0 // loop_footer
    %s13 = sadd.s32 1, %s9
  $region7: #{resnet_forward.8} parent=0 // loop_footer_branch
    %8 = sbr.rel target = $region3
  $region8: #{resnet_forward.8} parent=0 // loop_exit
    _

// kernel: resnet_forward.11
$region0: #{resnet_forward.11}
  #allocation0 [shape = 'u32[]', space=smem, size = 0x4, offset = 0x4, fixed_abs, tag = 'smem constant byte address 0x4 - core index']
  #allocation1 [shape = 'u32[144,128]{1,0:T(1,128)}', space=vmem, size = 0x12000, scoped, tag = 'internal scratch']
  %s0 = inlined_call_operand.vmem [shape: bf16[2,64,81], index: 0, kind: input, shape index: {}]
  %s1 = inlined_call_operand.vmem [shape: bf16[32,256], index: 1, kind: input, shape index: {}]
  %s2 = inlined_call_operand.vmem [shape: f32[32,1], index: 2, kind: input, shape index: {}]
  %s3 = inlined_call_operand.vmem [shape: bf16[2,32,71], index: 3, kind: output, shape index: {}]
  %s4 = sld [smem:[#allocation0]]
  $region45: #{resnet_forward.11} parent=0
    _
  %s6 = ssub.s32 1, %s4
  %s7 = scalar_select 0, %s6, %s4
  loop: start=0, step=1, limit=4
  $region2: #{resnet_forward.11} parent=0 // loop_pre_header
    _
  $region3: #{resnet_forward.11} parent=0 // loop_header
    %s9 = sphi 0, %s13
    %p10 = scmp.ge.s32.totalorder %s9, 4
    %s19 = sphi 0, %s21
    %s22 = sphi 0, %s19
    %s23 = sphi 0, %s22
    %s39 = sphi 0, %s23
    %s43 = sphi 0, %s43
    %s45 = sphi 0, %s43
    %s46 = sphi 0, %s45
    %s60 = sphi 0, %s46
    %s64 = sphi 0, %s64
    %s66 = sphi 0, %s64
    %s67 = sphi 0, %s66
    %s81 = sphi 0, %s67
    %s87 = sphi 0, %s89
    %s90 = sphi 0, %s87
    %s91 = sphi 0, %s90
    %s107 = sphi 0, %s91
  $region4: #{resnet_forward.11} parent=0 // loop_header_branch
    %12 = sbr.rel (%p10) target = $region8
  $region5: #{resnet_forward.11} parent=0 // loop_body
    %s14 = ssub.s32 %s9, 1
    %s15 = ssub.s32 %s9, 2
    %s16 = sadd.s32 %s9, 1
    %s17 = ssub.s32 %s9, %s16
    %p18 = scmp.eq.s32.totalorder %s17, 0
    %s20 = sadd.s32 %s19, 1
    %s21 = scalar_select %p18, %s19, %s20
    %p24 = pneg %p18
    %p25 = scmp.eq.s32.totalorder %s9, 1
    %p26 = por %p24, %p25
    %p27 = scmp.ne.s32.totalorder %s19, %s22
    %p28 = scmp.eq.s32.totalorder %s9, 0
    %p29 = por %p27, %p28
    %p30 = scmp.ne.s32.totalorder %s19, %s22
    %p31 = scmp.eq.s32.totalorder %s14, 1
    %p32 = por %p30, %p31
    %p33 = scmp.ne.s32.totalorder %s22, %s23
    %p34 = scmp.eq.s32.totalorder %s14, 0
    %p35 = por %p33, %p34
    %p36 = scmp.ne.s32.totalorder %s22, %s23
    %p37 = scmp.eq.s32.totalorder %s15, 1
    %p38 = por %p36, %p37
    %p40 = scmp.ne.s32.totalorder %s23, %s39
    %p41 = scmp.eq.s32.totalorder %s15, 0
    %p42 = por %p40, %p41
    %s44 = sadd.s32 %s43, 1
    %p47 = scmp.eq.s32.totalorder %s9, 1
    %p48 = scmp.ne.s32.totalorder %s43, %s45
    %p49 = scmp.eq.s32.totalorder %s9, 0
    %p50 = por %p48, %p49
    %p51 = scmp.ne.s32.totalorder %s43, %s45
    %p52 = scmp.eq.s32.totalorder %s14, 1
    %p53 = por %p51, %p52
    %p54 = scmp.ne.s32.totalorder %s45, %s46
    %p55 = scmp.eq.s32.totalorder %s14, 0
    %p56 = por %p54, %p55
    %p57 = scmp.ne.s32.totalorder %s45, %s46
    %p58 = scmp.eq.s32.totalorder %s15, 1
    %p59 = por %p57, %p58
    %p61 = scmp.ne.s32.totalorder %s46, %s60
    %p62 = scmp.eq.s32.totalorder %s15, 0
    %p63 = por %p61, %p62
    %s65 = sadd.s32 %s64, 1
    %p68 = scmp.eq.s32.totalorder %s9, 1
    %p69 = scmp.ne.s32.totalorder %s64, %s66
    %p70 = scmp.eq.s32.totalorder %s9, 0
    %p71 = por %p69, %p70
    %p72 = scmp.ne.s32.totalorder %s64, %s66
    %p73 = scmp.eq.s32.totalorder %s14, 1
    %p74 = por %p72, %p73
    %p75 = scmp.ne.s32.totalorder %s66, %s67
    %p76 = scmp.eq.s32.totalorder %s14, 0
    %p77 = por %p75, %p76
    %p78 = scmp.ne.s32.totalorder %s66, %s67
    %p79 = scmp.eq.s32.totalorder %s15, 1
    %p80 = por %p78, %p79
    %p82 = scmp.ne.s32.totalorder %s67, %s81
    %p83 = scmp.eq.s32.totalorder %s15, 0
    %p84 = por %p82, %p83
    %s85 = ssub.s32 %s9, %s16
    %p86 = scmp.eq.s32.totalorder %s85, 0
    %s88 = sadd.s32 %s87, 1
    %s89 = scalar_select %p86, %s87, %s88
    %p92 = pneg %p86
    %p93 = scmp.eq.s32.totalorder %s9, 1
    %p94 = por %p92, %p93
    %p95 = scmp.ne.s32.totalorder %s87, %s90
    %p96 = scmp.eq.s32.totalorder %s9, 0
    %p97 = por %p95, %p96
    %p98 = scmp.ne.s32.totalorder %s87, %s90
    %p99 = scmp.eq.s32.totalorder %s14, 1
    %p100 = por %p98, %p99
    %p101 = scmp.ne.s32.totalorder %s90, %s91
    %p102 = scmp.eq.s32.totalorder %s14, 0
    %p103 = por %p101, %p102
    %p104 = scmp.ne.s32.totalorder %s90, %s91
    %p105 = scmp.eq.s32.totalorder %s15, 1
    %p106 = por %p104, %p105
    %p108 = scmp.ne.s32.totalorder %s91, %s107
    %p109 = scmp.eq.s32.totalorder %s15, 0
    %p110 = por %p108, %p109
    %p111 = scmp.le.s32.totalorder 1, %s9
    %p112 = scmp.lt.s32.totalorder %s9, 3
    %p113 = pnand %p111, %p112
    %p114 = pneg %p113
    // Predicated region
    $region9: #{resnet_forward.11} parent=5 // pred_check
      _
    $region10: #{resnet_forward.11} parent=5 // pred_check_branch
      %116 = sbr.rel (%p113) target = $region12
    $region11: #{resnet_forward.11} parent=5 // pred_region
      %s117 = ssub.s32 %s9, 1
      // Predicated region
      $region13: #{resnet_forward.11} parent=11 // pred_check
        %p118 = pneg %p56
      $region14: #{resnet_forward.11} parent=11 // pred_check_branch
        %120 = sbr.rel (%p118) target = $region16
      $region15: #{resnet_forward.11} parent=11 // pred_region
        _
      $region16: #{resnet_forward.11} parent=11 // pred_fallthru
        _
      // Predicated region
      $region17: #{resnet_forward.11} parent=11 // pred_check
        %p121 = pneg %p77
      $region18: #{resnet_forward.11} parent=11 // pred_check_branch
        %123 = sbr.rel (%p121) target = $region20
      $region19: #{resnet_forward.11} parent=11 // pred_region
        _
      $region20: #{resnet_forward.11} parent=11 // pred_fallthru
        _
    $region12: #{resnet_forward.11} parent=5 // pred_fallthru
      _
    %p124 = scmp.lt.s32.totalorder %s9, 2
    // Predicated region
    $region21: #{resnet_forward.11} parent=5 // pred_check
      %p125 = pneg %p124
    $region22: #{resnet_forward.11} parent=5 // pred_check_branch
      %127 = sbr.rel (%p125) target = $region24
    $region23: #{resnet_forward.11} parent=5 // pred_region
      // Predicated region
      $region25: #{resnet_forward.11} parent=23 // pred_check
        %p128 = pneg %p29
      $region26: #{resnet_forward.11} parent=23 // pred_check_branch
        %130 = sbr.rel (%p128) target = $region28
      $region27: #{resnet_forward.11} parent=23 // pred_region
        %p131 = scmp.lt.s32.totalorder %s9, 1
        %s132 = scalar_select %p131, %s9, 1
        %s133 = smul.addr %s132, 8
        %s134 = smul.addr %s133, 4
        %s135 = scalar_lea.vmem %s0, %s134
      $region28: #{resnet_forward.11} parent=23 // pred_fallthru
        _
    $region24: #{resnet_forward.11} parent=5 // pred_fallthru
      _
    %p136 = scmp.le.s32.totalorder 1, %s9
    %p137 = scmp.lt.s32.totalorder %s9, 3
    %p138 = pnand %p136, %p137
    %p139 = pneg %p138
    // Predicated region
    $region29: #{resnet_forward.11} parent=5 // pred_check
      _
    $region30: #{resnet_forward.11} parent=5 // pred_check_branch
      %141 = sbr.rel (%p138) target = $region32
    $region31: #{resnet_forward.11} parent=5 // pred_region
      %s142 = ssub.s32 %s9, 1
      %p143 = scmp.lt.s32.totalorder %s14, 1
      %s144 = scalar_select %p143, %s14, 1
      %s145 = smul.addr %s144, 8
      %s146 = smul.addr %s145, 4
      %s147 = scalar_lea.vmem %s0, %s146
      %p148 = pneg %p35
      %p149 = pneg %p32
      %p150 = pneg %p56
      %p151 = pneg %p53
      %p152 = pneg %p77
      %p153 = pneg %p74
      %p154 = pneg %p103
      %p155 = pneg %p100
      %p156 = scmp.lt.s32.totalorder %s14, 1
      %s157 = scalar_select %p156, %s14, 1
      %s158 = smul.addr %s157, 4
      %s159 = smul.addr %s158, 4
      %s160 = scalar_lea.vmem %s3, %s159
      %p161 = scmp.lt.s32.totalorder %s14, 1
      %s162 = scalar_select %p161, %s14, 1
      %s163 = smul.addr %s162, 8
      %s164 = smul.addr %s163, 4
      %s165 = scalar_lea.vmem %s0, %s164
      %p166 = scmp.lt.s32.totalorder %s14, 1
      %s167 = scalar_select %p166, %s14, 1
      %s168 = smul.addr %s167, 4
      %s169 = smul.addr %s168, 4
      %s170 = scalar_lea.vmem %s3, %s169
      %v172 = vld [vmem:[%s165] sm:$0xf]
      %v173 = vld [vmem:[%s165 + $0x4] sm:$0xf]
      %v174 = vld [vmem:[%s165 + $0x8] sm:$0xf]
      %v175 = vld [vmem:[%s165 + $0xc] sm:$0xf]
      %v176 = vld [vmem:[%s165 + $0x10] sm:$0xf]
      %v177 = vld [vmem:[%s165 + $0x14] sm:$0xf]
      %v178 = vld [vmem:[%s165 + $0x18] sm:$0xf]
      %v179 = vld [vmem:[%s165 + $0x1c] sm:$0xf]
      %v188 = vunpack.c.l.b16 %v172
      %v189 = vunpack.c.l.b16 %v173
      %v190 = vunpack.c.l.b16 %v174
      %v191 = vunpack.c.l.b16 %v175
      %v192 = vunpack.c.l.b16 %v176
      %v193 = vunpack.c.l.b16 %v177
      %v194 = vunpack.c.l.b16 %v178
      %v195 = vunpack.c.l.b16 %v179
      %v196 = vpack.c.b16 %v189, %v188
      %v197 = vpack.c.b16 %v191, %v190
      %v198 = vpack.c.b16 %v193, %v192
      %v199 = vpack.c.b16 %v195, %v194
      %204 = vrot.lane.b32.xlu0 %v196, 127
      %v205 = vpop.permute.xlu0 %204
      %206 = vrot.lane.b32.xlu0 %v197, 127
      %v207 = vpop.permute.xlu0 %206
      %208 = vrot.lane.b32.xlu0 %v198, 127
      %v209 = vpop.permute.xlu0 %208
      %210 = vrot.lane.b32.xlu0 %v199, 127
      %v211 = vpop.permute.xlu0 %210
      %216 = vrot.lane.b32.xlu0 %v196, 119
      %v217 = vpop.permute.xlu0 %216
      %218 = vrot.lane.b32.xlu0 %v197, 119
      %v219 = vpop.permute.xlu0 %218
      %220 = vrot.lane.b32.xlu0 %v198, 119
      %v221 = vpop.permute.xlu0 %220
      %222 = vrot.lane.b32.xlu0 %v199, 119
      %v223 = vpop.permute.xlu0 %222
      %228 = vrot.lane.b32.xlu0 %v196, 118
      %v229 = vpop.permute.xlu0 %228
      %230 = vrot.lane.b32.xlu0 %v197, 118
      %v231 = vpop.permute.xlu0 %230
      %232 = vrot.lane.b32.xlu0 %v198, 118
      %v233 = vpop.permute.xlu0 %232
      %234 = vrot.lane.b32.xlu0 %v199, 118
      %v235 = vpop.permute.xlu0 %234
      %v240 = vld [vmem:[%s1] sm:$0xff]
      %v241 = vld [vmem:[%s1 + $0x8] sm:$0xff]
      %v242 = vld [vmem:[%s1 + $0x10] sm:$0xff]
      %v243 = vld [vmem:[%s1 + $0x18] sm:$0xff]
      %v244 = vld [vmem:[%s2] sm:$0xff]
      %v245 = vld [vmem:[%s2 + $0x8] sm:$0xff]
      %v246 = vld [vmem:[%s2 + $0x10] sm:$0xff]
      %v247 = vld [vmem:[%s2 + $0x18] sm:$0xff]
      %249 = vset.pattern.permute.xlu0 0
      %250 = vperm.xlu0 %249, %v244
      %v251 = vpop.permute.xlu0 %250
      %254 = vset.pattern.permute.xlu0 0
      %255 = vperm.xlu0 %254, %v245
      %v256 = vpop.permute.xlu0 %255
      %259 = vset.pattern.permute.xlu0 0
      %260 = vperm.xlu0 %259, %v246
      %v261 = vpop.permute.xlu0 %260
      %264 = vset.pattern.permute.xlu0 0
      %265 = vperm.xlu0 %264, %v247
      %v266 = vpop.permute.xlu0 %265
      %v272 = vunpack.c.l.b16 %v240
      %v273 = vunpack.c.h.b16 %v240
      %v274 = vunpack.c.l.b16 %v241
      %v275 = vunpack.c.h.b16 %v241
      %v276 = vunpack.c.l.b16 %v242
      %v277 = vunpack.c.h.b16 %v242
      %v278 = vunpack.c.l.b16 %v243
      %v279 = vunpack.c.h.b16 %v243
      %v280 = vpack.c.b16 %v274, %v272
      %v281 = vpack.c.b16 %v275, %v273
      %v282 = vpack.c.b16 %v278, %v276
      %v283 = vpack.c.b16 %v279, %v277
      %288 = vmatprep.subr.bf16.mxu0 0
      %289 = vmatpush1.bf16.msra.mxu0 %v196
      %290 = vmatprep.subr.bf16.mxu0 0
      %291 = vmatpush1.bf16.msra.mxu0 %v197
      %292 = vmatprep.subr.bf16.mxu0 0
      %293 = vmatpush1.bf16.msra.mxu0 %v198
      %294 = vmatprep.subr.bf16.mxu0 0
      %295 = vmatpush1.bf16.msra.mxu0 %v199
      %296 = vmatprep.subr.bf16.mxu0 0
      %297 = vmatpush1.bf16.msra.mxu0 %v205
      %298 = vmatprep.subr.bf16.mxu0 0
      %299 = vmatpush1.bf16.msra.mxu0 %v207
      %300 = vmatprep.subr.bf16.mxu0 0
      %301 = vmatpush1.bf16.msra.mxu0 %v209
      %302 = vmatprep.subr.bf16.mxu0 0
      %303 = vmatpush1.bf16.msra.mxu0 %v211
      %304 = vmatprep.subr.bf16.mxu0 0
      %305 = vmatpush1.bf16.msra.mxu0 %v217
      %306 = vmatprep.subr.bf16.mxu0 0
      %307 = vmatpush1.bf16.msra.mxu0 %v219
      %308 = vmatprep.subr.bf16.mxu0 0
      %309 = vmatpush1.bf16.msra.mxu0 %v221
      %310 = vmatprep.subr.bf16.mxu0 0
      %311 = vmatpush1.bf16.msra.mxu0 %v223
      %312 = vmatprep.subr.bf16.mxu0 0
      %313 = vmatpush1.bf16.msra.mxu0 %v229
      %314 = vmatprep.subr.bf16.mxu0 0
      %315 = vmatpush1.bf16.msra.mxu0 %v231
      %316 = vmatprep.subr.bf16.mxu0 0
      %317 = vmatpush1.bf16.msra.mxu0 %v233
      %318 = vmatprep.subr.bf16.mxu0 0
      %319 = vmatpush1.bf16.msra.mxu0 %v235
      %320 = vmatprep.mubr.bf16.mxu0 %v281
      %321 = vmatmul.mubr.bf16.gmra.mrb[0].mxu0 %v280
      %v322 = vpop.f32.mrb[0].mxu0
      %v323 = vadd.f32 %v251, %v322
      %v324 = vpop.f32.mrb[0].mxu0
      %v325 = vpop.f32.mrb[0].mxu0
      %v326 = vadd.f32 %v256, %v325
      %v327 = vpop.f32.mrb[0].mxu0
      %328 = vmatprep.mubr.bf16.mxu0 %v283
      %329 = vmatmul.mubr.bf16.gmra.mrb[0].mxu0 %v282
      %v330 = vpop.f32.mrb[0].mxu0
      %v331 = vadd.f32 %v261, %v330
      %v332 = vpop.f32.mrb[0].mxu0
      %v333 = vpop.f32.mrb[0].mxu0
      %v334 = vadd.f32 %v266, %v333
      %v335 = vpop.f32.mrb[0].mxu0
      %336 = vdwg.mxu0
      %v337 = vmax.f32 %v323, 0.0
      %v338 = vmax.f32 %v326, 0.0
      %v339 = vmax.f32 %v331, 0.0
      %v340 = vmax.f32 %v334, 0.0
      %v341 = vpack.c.bf16 %v338, %v337
      %v342 = vpack.c.bf16 %v340, %v339
      %v345 = vunpack.c.l.b16 %v341
      %v346 = vunpack.c.h.b16 %v341
      %v347 = vunpack.c.l.b16 %v342
      %v348 = vunpack.c.h.b16 %v342
      %v349 = vpack.c.b16 %v345, %v345
      %v350 = vpack.c.b16 %v346, %v346
      %v351 = vpack.c.b16 %v347, %v347
      %v352 = vpack.c.b16 %v348, %v348
      %vm357 = vcmask 576512
      %358 = vst.msk [vmem:[%s170] sm:$0xf] %vm357, %v349
      %359 = vst.msk [vmem:[%s170 + $0x4] sm:$0xf] %vm357, %v350
      %360 = vst.msk [vmem:[%s170 + $0x8] sm:$0xf] %vm357, %v351
      %361 = vst.msk [vmem:[%s170 + $0xc] sm:$0xf] %vm357, %v352
      %p362 = scmp.lt.s32.totalorder %s14, 1
      %s363 = scalar_select %p362, %s14, 1
      %s364 = smul.addr %s363, 4
      %s365 = smul.addr %s364, 4
      %s366 = scalar_lea.vmem %s3, %s365
      // Predicated region
      $region33: #{resnet_forward.11} parent=31 // pred_check
        %p367 = pneg %p100
      $region34: #{resnet_forward.11} parent=31 // pred_check_branch
        %369 = sbr.rel (%p367) target = $region36
      $region35: #{resnet_forward.11} parent=31 // pred_region
        _
      $region36: #{resnet_forward.11} parent=31 // pred_fallthru
        _
    $region32: #{resnet_forward.11} parent=5 // pred_fallthru
      _
    %p370 = scmp.le.s32.totalorder 2, %s9
    // Predicated region
    $region37: #{resnet_forward.11} parent=5 // pred_check
      %p371 = pneg %p370
    $region38: #{resnet_forward.11} parent=5 // pred_check_branch
      %373 = sbr.rel (%p371) target = $region40
    $region39: #{resnet_forward.11} parent=5 // pred_region
      %s374 = ssub.s32 %s9, 2
      // Predicated region
      $region41: #{resnet_forward.11} parent=39 // pred_check
        %p375 = pneg %p106
      $region42: #{resnet_forward.11} parent=39 // pred_check_branch
        %377 = sbr.rel (%p375) target = $region44
      $region43: #{resnet_forward.11} parent=39 // pred_region
        %p378 = scmp.lt.s32.totalorder %s15, 1
        %s379 = scalar_select %p378, %s15, 1
        %s380 = smul.addr %s379, 4
        %s381 = smul.addr %s380, 4
        %s382 = scalar_lea.vmem %s3, %s381
      $region44: #{resnet_forward.11} parent=39 // pred_fallthru
        _
    $region40: #{resnet_forward.11} parent=5 // pred_fallthru
      _
  $region6: #{resnet_forward.11} parent=0 // loop_footer
    %s13 = sadd.s32 1, %s9
  $region7: #{resnet_forward.11} parent=0 // loop_footer_branch
    %8 = sbr.rel target = $region3
  $region8: #{resnet_forward.11} parent=0 // loop_exit
    _

// kernel: resnet_forward.12
$region0: #{resnet_forward.12}
  #allocation0 [shape = 'u32[]', space=smem, size = 0x4, offset = 0x4, fixed_abs, tag = 'smem constant byte address 0x4 - core index']
  #allocation1 [shape = 'u32[144,128]{1,0:T(1,128)}', space=vmem, size = 0x12000, scoped, tag = 'internal scratch']
  %s0 = inlined_call_operand.vmem [shape: bf16[2,32,100], index: 0, kind: input, shape index: {}]
  %s1 = inlined_call_operand.vmem [shape: bf16[32,288], index: 1, kind: input, shape index: {}]
  %s2 = inlined_call_operand.vmem [shape: f32[32,1], index: 2, kind: input, shape index: {}]
  %s3 = inlined_call_operand.vmem [shape: bf16[2,16,78], index: 3, kind: input, shape index: {}]
  %s4 = inlined_call_operand.vmem [shape: bf16[2,32,78], index: 4, kind: output, shape index: {}]
  %s5 = sld [smem:[#allocation0]]
  $region49: #{resnet_forward.12} parent=0
    _
  %s7 = ssub.s32 1, %s5
  %s8 = scalar_select 0, %s7, %s5
  loop: start=0, step=1, limit=4
  $region2: #{resnet_forward.12} parent=0 // loop_pre_header
    _
  $region3: #{resnet_forward.12} parent=0 // loop_header
    %s10 = sphi 0, %s14
    %p11 = scmp.ge.s32.totalorder %s10, 4
    %s20 = sphi 0, %s22
    %s23 = sphi 0, %s20
    %s24 = sphi 0, %s23
    %s40 = sphi 0, %s24
    %s44 = sphi 0, %s44
    %s46 = sphi 0, %s44
    %s47 = sphi 0, %s46
    %s61 = sphi 0, %s47
    %s65 = sphi 0, %s65
    %s67 = sphi 0, %s65
    %s68 = sphi 0, %s67
    %s82 = sphi 0, %s68
    %s88 = sphi 0, %s90
    %s91 = sphi 0, %s88
    %s92 = sphi 0, %s91
    %s108 = sphi 0, %s92
    %s114 = sphi 0, %s116
    %s117 = sphi 0, %s114
    %s118 = sphi 0, %s117
    %s134 = sphi 0, %s118
  $region4: #{resnet_forward.12} parent=0 // loop_header_branch
    %13 = sbr.rel (%p11) target = $region8
  $region5: #{resnet_forward.12} parent=0 // loop_body
    %s15 = ssub.s32 %s10, 1
    %s16 = ssub.s32 %s10, 2
    %s17 = sadd.s32 %s10, 1
    %s18 = ssub.s32 %s10, %s17
    %p19 = scmp.eq.s32.totalorder %s18, 0
    %s21 = sadd.s32 %s20, 1
    %s22 = scalar_select %p19, %s20, %s21
    %p25 = pneg %p19
    %p26 = scmp.eq.s32.totalorder %s10, 1
    %p27 = por %p25, %p26
    %p28 = scmp.ne.s32.totalorder %s20, %s23
    %p29 = scmp.eq.s32.totalorder %s10, 0
    %p30 = por %p28, %p29
    %p31 = scmp.ne.s32.totalorder %s20, %s23
    %p32 = scmp.eq.s32.totalorder %s15, 1
    %p33 = por %p31, %p32
    %p34 = scmp.ne.s32.totalorder %s23, %s24
    %p35 = scmp.eq.s32.totalorder %s15, 0
    %p36 = por %p34, %p35
    %p37 = scmp.ne.s32.totalorder %s23, %s24
    %p38 = scmp.eq.s32.totalorder %s16, 1
    %p39 = por %p37, %p38
    %p41 = scmp.ne.s32.totalorder %s24, %s40
    %p42 = scmp.eq.s32.totalorder %s16, 0
    %p43 = por %p41, %p42
    %s45 = sadd.s32 %s44, 1
    %p48 = scmp.eq.s32.totalorder %s10, 1
    %p49 = scmp.ne.s32.totalorder %s44, %s46
    %p50 = scmp.eq.s32.totalorder %s10, 0
    %p51 = por %p49, %p50
    %p52 = scmp.ne.s32.totalorder %s44, %s46
    %p53 = scmp.eq.s32.totalorder %s15, 1
    %p54 = por %p52, %p53
    %p55 = scmp.ne.s32.totalorder %s46, %s47
    %p56 = scmp.eq.s32.totalorder %s15, 0
    %p57 = por %p55, %p56
    %p58 = scmp.ne.s32.totalorder %s46, %s47
    %p59 = scmp.eq.s32.totalorder %s16, 1
    %p60 = por %p58, %p59
    %p62 = scmp.ne.s32.totalorder %s47, %s61
    %p63 = scmp.eq.s32.totalorder %s16, 0
    %p64 = por %p62, %p63
    %s66 = sadd.s32 %s65, 1
    %p69 = scmp.eq.s32.totalorder %s10, 1
    %p70 = scmp.ne.s32.totalorder %s65, %s67
    %p71 = scmp.eq.s32.totalorder %s10, 0
    %p72 = por %p70, %p71
    %p73 = scmp.ne.s32.totalorder %s65, %s67
    %p74 = scmp.eq.s32.totalorder %s15, 1
    %p75 = por %p73, %p74
    %p76 = scmp.ne.s32.totalorder %s67, %s68
    %p77 = scmp.eq.s32.totalorder %s15, 0
    %p78 = por %p76, %p77
    %p79 = scmp.ne.s32.totalorder %s67, %s68
    %p80 = scmp.eq.s32.totalorder %s16, 1
    %p81 = por %p79, %p80
    %p83 = scmp.ne.s32.totalorder %s68, %s82
    %p84 = scmp.eq.s32.totalorder %s16, 0
    %p85 = por %p83, %p84
    %s86 = ssub.s32 %s10, %s17
    %p87 = scmp.eq.s32.totalorder %s86, 0
    %s89 = sadd.s32 %s88, 1
    %s90 = scalar_select %p87, %s88, %s89
    %p93 = pneg %p87
    %p94 = scmp.eq.s32.totalorder %s10, 1
    %p95 = por %p93, %p94
    %p96 = scmp.ne.s32.totalorder %s88, %s91
    %p97 = scmp.eq.s32.totalorder %s10, 0
    %p98 = por %p96, %p97
    %p99 = scmp.ne.s32.totalorder %s88, %s91
    %p100 = scmp.eq.s32.totalorder %s15, 1
    %p101 = por %p99, %p100
    %p102 = scmp.ne.s32.totalorder %s91, %s92
    %p103 = scmp.eq.s32.totalorder %s15, 0
    %p104 = por %p102, %p103
    %p105 = scmp.ne.s32.totalorder %s91, %s92
    %p106 = scmp.eq.s32.totalorder %s16, 1
    %p107 = por %p105, %p106
    %p109 = scmp.ne.s32.totalorder %s92, %s108
    %p110 = scmp.eq.s32.totalorder %s16, 0
    %p111 = por %p109, %p110
    %s112 = ssub.s32 %s10, %s17
    %p113 = scmp.eq.s32.totalorder %s112, 0
    %s115 = sadd.s32 %s114, 1
    %s116 = scalar_select %p113, %s114, %s115
    %p119 = pneg %p113
    %p120 = scmp.eq.s32.totalorder %s10, 1
    %p121 = por %p119, %p120
    %p122 = scmp.ne.s32.totalorder %s114, %s117
    %p123 = scmp.eq.s32.totalorder %s10, 0
    %p124 = por %p122, %p123
    %p125 = scmp.ne.s32.totalorder %s114, %s117
    %p126 = scmp.eq.s32.totalorder %s15, 1
    %p127 = por %p125, %p126
    %p128 = scmp.ne.s32.totalorder %s117, %s118
    %p129 = scmp.eq.s32.totalorder %s15, 0
    %p130 = por %p128, %p129
    %p131 = scmp.ne.s32.totalorder %s117, %s118
    %p132 = scmp.eq.s32.totalorder %s16, 1
    %p133 = por %p131, %p132
    %p135 = scmp.ne.s32.totalorder %s118, %s134
    %p136 = scmp.eq.s32.totalorder %s16, 0
    %p137 = por %p135, %p136
    %p138 = scmp.le.s32.totalorder 1, %s10
    %p139 = scmp.lt.s32.totalorder %s10, 3
    %p140 = pnand %p138, %p139
    %p141 = pneg %p140
    // Predicated region
    $region9: #{resnet_forward.12} parent=5 // pred_check
      _
    $region10: #{resnet_forward.12} parent=5 // pred_check_branch
      %143 = sbr.rel (%p140) target = $region12
    $region11: #{resnet_forward.12} parent=5 // pred_region
      %s144 = ssub.s32 %s10, 1
      // Predicated region
      $region13: #{resnet_forward.12} parent=11 // pred_check
        %p145 = pneg %p57
      $region14: #{resnet_forward.12} parent=11 // pred_check_branch
        %147 = sbr.rel (%p145) target = $region16
      $region15: #{resnet_forward.12} parent=11 // pred_region
        _
      $region16: #{resnet_forward.12} parent=11 // pred_fallthru
        _
      // Predicated region
      $region17: #{resnet_forward.12} parent=11 // pred_check
        %p148 = pneg %p78
      $region18: #{resnet_forward.12} parent=11 // pred_check_branch
        %150 = sbr.rel (%p148) target = $region20
      $region19: #{resnet_forward.12} parent=11 // pred_region
        _
      $region20: #{resnet_forward.12} parent=11 // pred_fallthru
        _
    $region12: #{resnet_forward.12} parent=5 // pred_fallthru
      _
    %p151 = scmp.lt.s32.totalorder %s10, 2
    // Predicated region
    $region21: #{resnet_forward.12} parent=5 // pred_check
      %p152 = pneg %p151
    $region22: #{resnet_forward.12} parent=5 // pred_check_branch
      %154 = sbr.rel (%p152) target = $region24
    $region23: #{resnet_forward.12} parent=5 // pred_region
      // Predicated region
      $region25: #{resnet_forward.12} parent=23 // pred_check
        %p155 = pneg %p30
      $region26: #{resnet_forward.12} parent=23 // pred_check_branch
        %157 = sbr.rel (%p155) target = $region28
      $region27: #{resnet_forward.12} parent=23 // pred_region
        %p158 = scmp.lt.s32.totalorder %s10, 1
        %s159 = scalar_select %p158, %s10, 1
        %s160 = smul.addr %s159, 4
        %s161 = smul.addr %s160, 4
        %s162 = scalar_lea.vmem %s0, %s161
      $region28: #{resnet_forward.12} parent=23 // pred_fallthru
        _
      // Predicated region
      $region29: #{resnet_forward.12} parent=23 // pred_check
        %p163 = pneg %p98
      $region30: #{resnet_forward.12} parent=23 // pred_check_branch
        %165 = sbr.rel (%p163) target = $region32
      $region31: #{resnet_forward.12} parent=23 // pred_region
        %p166 = scmp.lt.s32.totalorder %s10, 1
        %s167 = scalar_select %p166, %s10, 1
        %s168 = smul.addr %s167, 2
        %s169 = smul.addr %s168, 4
        %s170 = scalar_lea.vmem %s3, %s169
      $region32: #{resnet_forward.12} parent=23 // pred_fallthru
        _
    $region24: #{resnet_forward.12} parent=5 // pred_fallthru
      _
    %p171 = scmp.le.s32.totalorder 1, %s10
    %p172 = scmp.lt.s32.totalorder %s10, 3
    %p173 = pnand %p171, %p172
    %p174 = pneg %p173
    // Predicated region
    $region33: #{resnet_forward.12} parent=5 // pred_check
      _
    $region34: #{resnet_forward.12} parent=5 // pred_check_branch
      %176 = sbr.rel (%p173) target = $region36
    $region35: #{resnet_forward.12} parent=5 // pred_region
      %s177 = ssub.s32 %s10, 1
      %p178 = scmp.lt.s32.totalorder %s15, 1
      %s179 = scalar_select %p178, %s15, 1
      %s180 = smul.addr %s179, 4
      %s181 = smul.addr %s180, 4
      %s182 = scalar_lea.vmem %s0, %s181
      %p183 = pneg %p36
      %p184 = pneg %p33
      %p185 = pneg %p57
      %p186 = pneg %p54
      %p187 = pneg %p78
      %p188 = pneg %p75
      %p189 = scmp.lt.s32.totalorder %s15, 1
      %s190 = scalar_select %p189, %s15, 1
      %s191 = smul.addr %s190, 2
      %s192 = smul.addr %s191, 4
      %s193 = scalar_lea.vmem %s3, %s192
      %p194 = pneg %p104
      %p195 = pneg %p101
      %p196 = pneg %p130
      %p197 = pneg %p127
      %p198 = scmp.lt.s32.totalorder %s15, 1
      %s199 = scalar_select %p198, %s15, 1
      %s200 = smul.addr %s199, 4
      %s201 = smul.addr %s200, 4
      %s202 = scalar_lea.vmem %s4, %s201
      %p203 = scmp.lt.s32.totalorder %s15, 1
      %s204 = scalar_select %p203, %s15, 1
      %s205 = smul.addr %s204, 4
      %s206 = smul.addr %s205, 4
      %s207 = scalar_lea.vmem %s0, %s206
      %p208 = scmp.lt.s32.totalorder %s15, 1
      %s209 = scalar_select %p208, %s15, 1
      %s210 = smul.addr %s209, 2
      %s211 = smul.addr %s210, 4
      %s212 = scalar_lea.vmem %s3, %s211
      %p213 = scmp.lt.s32.totalorder %s15, 1
      %s214 = scalar_select %p213, %s15, 1
      %s215 = smul.addr %s214, 4
      %s216 = smul.addr %s215, 4
      %s217 = scalar_lea.vmem %s4, %s216
      %v219 = vld [vmem:[%s207] sm:$0xf]
      %v220 = vld [vmem:[%s207 + $0x4] sm:$0xf]
      %v221 = vld [vmem:[%s207 + $0x8] sm:$0xf]
      %v222 = vld [vmem:[%s207 + $0xc] sm:$0xf]
      %v227 = vunpack.c.l.b16 %v219
      %v228 = vunpack.c.l.b16 %v220
      %v229 = vunpack.c.l.b16 %v221
      %v230 = vunpack.c.l.b16 %v222
      %v231 = vpack.c.b16 %v228, %v227
      %v232 = vpack.c.b16 %v230, %v229
      %235 = vrot.lane.b32.xlu0 %v231, 127
      %v236 = vpop.permute.xlu0 %235
      %237 = vrot.lane.b32.xlu0 %v232, 127
      %v238 = vpop.permute.xlu0 %237
      %241 = vrot.lane.b32.xlu0 %v231, 126
      %v242 = vpop.permute.xlu0 %241
      %243 = vrot.lane.b32.xlu0 %v232, 126
      %v244 = vpop.permute.xlu0 %243
      %247 = vrot.lane.b32.xlu0 %v231, 118
      %v248 = vpop.permute.xlu0 %247
      %249 = vrot.lane.b32.xlu0 %v232, 118
      %v250 = vpop.permute.xlu0 %249
      %253 = vrot.lane.b32.xlu0 %v231, 117
      %v254 = vpop.permute.xlu0 %253
      %255 = vrot.lane.b32.xlu0 %v232, 117
      %v256 = vpop.permute.xlu0 %255
      %259 = vrot.lane.b32.xlu0 %v231, 116
      %v260 = vpop.permute.xlu0 %259
      %261 = vrot.lane.b32.xlu0 %v232, 116
      %v262 = vpop.permute.xlu0 %261
      %265 = vrot.lane.b32.xlu0 %v231, 108
      %v266 = vpop.permute.xlu0 %265
      %267 = vrot.lane.b32.xlu0 %v232, 108
      %v268 = vpop.permute.xlu0 %267
      %271 = vrot.lane.b32.xlu0 %v231, 107
      %v272 = vpop.permute.xlu0 %271
      %273 = vrot.lane.b32.xlu0 %v232, 107
      %v274 = vpop.permute.xlu0 %273
      %277 = vrot.lane.b32.xlu0 %v231, 106
      %v278 = vpop.permute.xlu0 %277
      %279 = vrot.lane.b32.xlu0 %v232, 106
      %v280 = vpop.permute.xlu0 %279
      %v283 = vld [vmem:[%s1] sm:$0xff]
      %v284 = vld [vmem:[%s1 + $0x8] sm:$0xf]
      %v285 = vld [vmem:[%s1 + $0xc] sm:$0xff]
      %v286 = vld [vmem:[%s1 + $0x14] sm:$0xf]
      %v287 = vld [vmem:[%s1 + $0x18] sm:$0xff]
      %v288 = vld [vmem:[%s1 + $0x20] sm:$0xf]
      %v289 = vld [vmem:[%s1 + $0x24] sm:$0xff]
      %v290 = vld [vmem:[%s1 + $0x2c] sm:$0xf]
      %v291 = vld [vmem:[%s2] sm:$0xff]
      %v292 = vld [vmem:[%s2 + $0x8] sm:$0xff]
      %v293 = vld [vmem:[%s2 + $0x10] sm:$0xff]
      %v294 = vld [vmem:[%s2 + $0x18] sm:$0xff]
      %296 = vset.pattern.permute.xlu0 0
      %297 = vperm.xlu0 %296, %v291
      %v298 = vpop.permute.xlu0 %297
      %301 = vset.pattern.permute.xlu0 0
      %302 = vperm.xlu0 %301, %v292
      %v303 = vpop.permute.xlu0 %302
      %306 = vset.pattern.permute.xlu0 0
      %307 = vperm.xlu0 %306, %v293
      %v308 = vpop.permute.xlu0 %307
      %311 = vset.pattern.permute.xlu0 0
      %312 = vperm.xlu0 %311, %v294
      %v313 = vpop.permute.xlu0 %312
      %v323 = vunpack.c.l.b16 %v283
      %v324 = vunpack.c.h.b16 %v283
      %v325 = vunpack.c.l.b16 %v284
      %v326 = vunpack.c.l.b16 %v285
      %v327 = vunpack.c.h.b16 %v285
      %v328 = vunpack.c.l.b16 %v286
      %v329 = vunpack.c.l.b16 %v287
      %v330 = vunpack.c.h.b16 %v287
      %v331 = vunpack.c.l.b16 %v288
      %v332 = vunpack.c.l.b16 %v289
      %v333 = vunpack.c.h.b16 %v289
      %v334 = vunpack.c.l.b16 %v290
      %v335 = vpack.c.b16 %v326, %v323
      %v336 = vpack.c.b16 %v327, %v324
      %v337 = vpack.c.b16 %v328, %v325
      %v338 = vpack.c.b16 %v332, %v329
      %v339 = vpack.c.b16 %v333, %v330
      %v340 = vpack.c.b16 %v334, %v331
      %vm345 = vcmask 261120
      %v347 = vsel %vm345, %v337, 0
      %v350 = vsel %vm345, %v340, 0
      %352 = vmatprep.subr.bf16.mxu0 0
      %353 = vmatpush1.bf16.msra.mxu0 %v231
      %354 = vmatprep.subr.bf16.mxu0 0
      %355 = vmatpush1.bf16.msra.mxu0 %v232
      %356 = vmatprep.subr.bf16.mxu0 0
      %357 = vmatpush1.bf16.msra.mxu0 %v236
      %358 = vmatprep.subr.bf16.mxu0 0
      %359 = vmatpush1.bf16.msra.mxu0 %v238
      %360 = vmatprep.subr.bf16.mxu0 0
      %361 = vmatpush1.bf16.msra.mxu0 %v242
      %362 = vmatprep.subr.bf16.mxu0 0
      %363 = vmatpush1.bf16.msra.mxu0 %v244
      %364 = vmatprep.subr.bf16.mxu0 0
      %365 = vmatpush1.bf16.msra.mxu0 %v248
      %366 = vmatprep.subr.bf16.mxu0 0
      %367 = vmatpush1.bf16.msra.mxu0 %v250
      %368 = vmatprep.subr.bf16.mxu0 0
      %369 = vmatpush1.bf16.msra.mxu0 %v254
      %370 = vmatprep.subr.bf16.mxu0 0
      %371 = vmatpush1.bf16.msra.mxu0 %v256
      %372 = vmatprep.subr.bf16.mxu0 0
      %373 = vmatpush1.bf16.msra.mxu0 %v260
      %374 = vmatprep.subr.bf16.mxu0 0
      %375 = vmatpush1.bf16.msra.mxu0 %v262
      %376 = vmatprep.subr.bf16.mxu0 0
      %377 = vmatpush1.bf16.msra.mxu0 %v266
      %378 = vmatprep.subr.bf16.mxu0 0
      %379 = vmatpush1.bf16.msra.mxu0 %v268
      %380 = vmatprep.subr.bf16.mxu0 0
      %381 = vmatpush1.bf16.msra.mxu0 %v272
      %382 = vmatprep.subr.bf16.mxu0 0
      %383 = vmatpush1.bf16.msra.mxu0 %v274
      %384 = vmatprep.mubr.bf16.mxu0 %v336
      %385 = vmatmul.mubr.bf16.gmra.mrb[0].mxu0 %v335
      %v386 = vpop.f32.mrb[0].mxu0
      %v387 = vadd.f32 %v298, %v386
      %v388 = vpop.f32.mrb[0].mxu0
      %v389 = vpop.f32.mrb[0].mxu0
      %v390 = vadd.f32 %v303, %v389
      %v391 = vpop.f32.mrb[0].mxu0
      %392 = vmatprep.mubr.bf16.mxu0 %v339
      %393 = vmatmul.mubr.bf16.gmra.mrb[0].mxu0 %v338
      %v394 = vpop.f32.mrb[0].mxu0
      %v395 = vadd.f32 %v308, %v394
      %v396 = vpop.f32.mrb[0].mxu0
      %v397 = vpop.f32.mrb[0].mxu0
      %v398 = vadd.f32 %v313, %v397
      %v399 = vpop.f32.mrb[0].mxu0
      %400 = vdwg.mxu0
      %401 = vmatprep.subr.bf16.mxu0 0
      %402 = vmatpush1.bf16.msra.mxu0 %v278
      %403 = vmatprep.subr.bf16.mxu0 0
      %404 = vmatpush1.bf16.msra.mxu0 %v280
      %405 = vmatprep.subr.bf16.mxu0 0
      %406 = vmatpush1.bf16.msra.mxu0 0
      %407 = vmatprep.subr.bf16.mxu0 0
      %408 = vmatpush1.bf16.msra.mxu0 0
      %409 = vmatprep.subr.bf16.mxu0 0
      %410 = vmatpush1.bf16.msra.mxu0 0
      %411 = vmatprep.subr.bf16.mxu0 0
      %412 = vmatpush1.bf16.msra.mxu0 0
      %413 = vmatprep.subr.bf16.mxu0 0
      %414 = vmatpush1.bf16.msra.mxu0 0
      %415 = vmatprep.subr.bf16.mxu0 0
      %416 = vmatpush1.bf16.msra.mxu0 0
      %417 = vmatprep.subr.bf16.mxu0 0
      %418 = vmatpush1.bf16.msra.mxu0 0
      %419 = vmatprep.subr.bf16.mxu0 0
      %420 = vmatpush1.bf16.msra.mxu0 0
      %421 = vmatprep.subr.bf16.mxu0 0
      %422 = vmatpush1.bf16.msra.mxu0 0
      %423 = vmatprep.subr.bf16.mxu0 0
      %424 = vmatpush1.bf16.msra.mxu0 0
      %425 = vmatprep.subr.bf16.mxu0 0
      %426 = vmatpush1.bf16.msra.mxu0 0
      %427 = vmatprep.subr.bf16.mxu0 0
      %428 = vmatpush1.bf16.msra.mxu0 0
      %429 = vmatprep.subr.bf16.mxu0 0
      %430 = vmatpush1.bf16.msra.mxu0 0
      %431 = vmatprep.subr.bf16.mxu0 0
      %432 = vmatpush1.bf16.msra.mxu0 0
      %433 = vmatprep.mubr.bf16.mxu0 0
      %434 = vmatmul.mubr.bf16.gmra.mrb[0].mxu0 %v347
      %v435 = vpop.f32.mrb[0].mxu0
      %v436 = vadd.f32 %v387, %v435
      %v437 = vpop.f32.mrb[0].mxu0
      %v438 = vpop.f32.mrb[0].mxu0
      %v439 = vadd.f32 %v390, %v438
      %v440 = vpop.f32.mrb[0].mxu0
      %441 = vmatprep.mubr.bf16.mxu0 0
      %442 = vmatmul.mubr.bf16.gmra.mrb[0].mxu0 %v350
      %v443 = vpop.f32.mrb[0].mxu0
      %v444 = vadd.f32 %v395, %v443
      %v445 = vpop.f32.mrb[0].mxu0
      %v446 = vpop.f32.mrb[0].mxu0
      %v447 = vadd.f32 %v398, %v446
      %v448 = vpop.f32.mrb[0].mxu0
      %449 = vdwg.mxu0
      %v450 = vld [vmem:[%s212] sm:$0xf]
      %v451 = vld [vmem:[%s212 + $0x4] sm:$0xf]
      %v452 = vunpack.c.l.bf16 %v450
      %v453 = vunpack.c.l.bf16 %v451
      %v454 = vadd.f32 %v436, 0.0
      %v455 = vadd.f32 %v439, %v452
      %v456 = vadd.f32 %v444, %v453
      %v457 = vadd.f32 %v447, 0.0
      %v458 = vmax.f32 %v454, 0.0
      %v459 = vmax.f32 %v455, 0.0
      %v460 = vmax.f32 %v456, 0.0
      %v461 = vmax.f32 %v457, 0.0
      %v462 = vpack.c.bf16 %v459, %v458
      %v463 = vpack.c.bf16 %v461, %v460
      %v466 = vunpack.c.l.b16 %v462
      %v467 = vunpack.c.h.b16 %v462
      %v468 = vunpack.c.l.b16 %v463
      %v469 = vunpack.c.h.b16 %v463
      %v470 = vpack.c.b16 %v466, %v466
      %v471 = vpack.c.b16 %v467, %v467
      %v472 = vpack.c.b16 %v468, %v468
      %v473 = vpack.c.b16 %v469, %v469
      %vm478 = vcmask 633856
      %479 = vst.msk [vmem:[%s217] sm:$0xf] %vm478, %v470
      %480 = vst.msk [vmem:[%s217 + $0x4] sm:$0xf] %vm478, %v471
      %481 = vst.msk [vmem:[%s217 + $0x8] sm:$0xf] %vm478, %v472
      %482 = vst.msk [vmem:[%s217 + $0xc] sm:$0xf] %vm478, %v473
      %p483 = scmp.lt.s32.totalorder %s15, 1
      %s484 = scalar_select %p483, %s15, 1
      %s485 = smul.addr %s484, 4
      %s486 = smul.addr %s485, 4
      %s487 = scalar_lea.vmem %s4, %s486
      // Predicated region
      $region37: #{resnet_forward.12} parent=35 // pred_check
        %p488 = pneg %p127
      $region38: #{resnet_forward.12} parent=35 // pred_check_branch
        %490 = sbr.rel (%p488) target = $region40
      $region39: #{resnet_forward.12} parent=35 // pred_region
        _
      $region40: #{resnet_forward.12} parent=35 // pred_fallthru
        _
    $region36: #{resnet_forward.12} parent=5 // pred_fallthru
      _
    %p491 = scmp.le.s32.totalorder 2, %s10
    // Predicated region
    $region41: #{resnet_forward.12} parent=5 // pred_check
      %p492 = pneg %p491
    $region42: #{resnet_forward.12} parent=5 // pred_check_branch
      %494 = sbr.rel (%p492) target = $region44
    $region43: #{resnet_forward.12} parent=5 // pred_region
      %s495 = ssub.s32 %s10, 2
      // Predicated region
      $region45: #{resnet_forward.12} parent=43 // pred_check
        %p496 = pneg %p133
      $region46: #{resnet_forward.12} parent=43 // pred_check_branch
        %498 = sbr.rel (%p496) target = $region48
      $region47: #{resnet_forward.12} parent=43 // pred_region
        %p499 = scmp.lt.s32.totalorder %s16, 1
        %s500 = scalar_select %p499, %s16, 1
        %s501 = smul.addr %s500, 4
        %s502 = smul.addr %s501, 4
        %s503 = scalar_lea.vmem %s4, %s502
      $region48: #{resnet_forward.12} parent=43 // pred_fallthru
        _
    $region44: #{resnet_forward.12} parent=5 // pred_fallthru
      _
  $region6: #{resnet_forward.12} parent=0 // loop_footer
    %s14 = sadd.s32 1, %s10
  $region7: #{resnet_forward.12} parent=0 // loop_footer_branch
    %9 = sbr.rel target = $region3
  $region8: #{resnet_forward.12} parent=0 // loop_exit
    _

// kernel: resnet_forward.13
$region0: #{resnet_forward.13}
  #allocation0 [shape = 'u32[]', space=smem, size = 0x4, offset = 0x4, fixed_abs, tag = 'smem constant byte address 0x4 - core index']
  #allocation1 [shape = 'u32[144,128]{1,0:T(1,128)}', space=vmem, size = 0x12000, scoped, tag = 'internal scratch']
  %s0 = inlined_call_operand.vmem [shape: bf16[2,128,25], index: 0, kind: input, shape index: {}]
  %s1 = inlined_call_operand.vmem [shape: bf16[64,512], index: 1, kind: input, shape index: {}]
  %s2 = inlined_call_operand.vmem [shape: f32[64,1], index: 2, kind: input, shape index: {}]
  %s3 = inlined_call_operand.vmem [shape: bf16[2,64,19], index: 3, kind: output, shape index: {}]
  %s4 = sld [smem:[#allocation0]]
  $region45: #{resnet_forward.13} parent=0
    _
  %s6 = ssub.s32 1, %s4
  %s7 = scalar_select 0, %s6, %s4
  loop: start=0, step=1, limit=4
  $region2: #{resnet_forward.13} parent=0 // loop_pre_header
    _
  $region3: #{resnet_forward.13} parent=0 // loop_header
    %s9 = sphi 0, %s13
    %p10 = scmp.ge.s32.totalorder %s9, 4
    %s19 = sphi 0, %s21
    %s22 = sphi 0, %s19
    %s23 = sphi 0, %s22
    %s39 = sphi 0, %s23
    %s43 = sphi 0, %s43
    %s45 = sphi 0, %s43
    %s46 = sphi 0, %s45
    %s60 = sphi 0, %s46
    %s64 = sphi 0, %s64
    %s66 = sphi 0, %s64
    %s67 = sphi 0, %s66
    %s81 = sphi 0, %s67
    %s87 = sphi 0, %s89
    %s90 = sphi 0, %s87
    %s91 = sphi 0, %s90
    %s107 = sphi 0, %s91
  $region4: #{resnet_forward.13} parent=0 // loop_header_branch
    %12 = sbr.rel (%p10) target = $region8
  $region5: #{resnet_forward.13} parent=0 // loop_body
    %s14 = ssub.s32 %s9, 1
    %s15 = ssub.s32 %s9, 2
    %s16 = sadd.s32 %s9, 1
    %s17 = ssub.s32 %s9, %s16
    %p18 = scmp.eq.s32.totalorder %s17, 0
    %s20 = sadd.s32 %s19, 1
    %s21 = scalar_select %p18, %s19, %s20
    %p24 = pneg %p18
    %p25 = scmp.eq.s32.totalorder %s9, 1
    %p26 = por %p24, %p25
    %p27 = scmp.ne.s32.totalorder %s19, %s22
    %p28 = scmp.eq.s32.totalorder %s9, 0
    %p29 = por %p27, %p28
    %p30 = scmp.ne.s32.totalorder %s19, %s22
    %p31 = scmp.eq.s32.totalorder %s14, 1
    %p32 = por %p30, %p31
    %p33 = scmp.ne.s32.totalorder %s22, %s23
    %p34 = scmp.eq.s32.totalorder %s14, 0
    %p35 = por %p33, %p34
    %p36 = scmp.ne.s32.totalorder %s22, %s23
    %p37 = scmp.eq.s32.totalorder %s15, 1
    %p38 = por %p36, %p37
    %p40 = scmp.ne.s32.totalorder %s23, %s39
    %p41 = scmp.eq.s32.totalorder %s15, 0
    %p42 = por %p40, %p41
    %s44 = sadd.s32 %s43, 1
    %p47 = scmp.eq.s32.totalorder %s9, 1
    %p48 = scmp.ne.s32.totalorder %s43, %s45
    %p49 = scmp.eq.s32.totalorder %s9, 0
    %p50 = por %p48, %p49
    %p51 = scmp.ne.s32.totalorder %s43, %s45
    %p52 = scmp.eq.s32.totalorder %s14, 1
    %p53 = por %p51, %p52
    %p54 = scmp.ne.s32.totalorder %s45, %s46
    %p55 = scmp.eq.s32.totalorder %s14, 0
    %p56 = por %p54, %p55
    %p57 = scmp.ne.s32.totalorder %s45, %s46
    %p58 = scmp.eq.s32.totalorder %s15, 1
    %p59 = por %p57, %p58
    %p61 = scmp.ne.s32.totalorder %s46, %s60
    %p62 = scmp.eq.s32.totalorder %s15, 0
    %p63 = por %p61, %p62
    %s65 = sadd.s32 %s64, 1
    %p68 = scmp.eq.s32.totalorder %s9, 1
    %p69 = scmp.ne.s32.totalorder %s64, %s66
    %p70 = scmp.eq.s32.totalorder %s9, 0
    %p71 = por %p69, %p70
    %p72 = scmp.ne.s32.totalorder %s64, %s66
    %p73 = scmp.eq.s32.totalorder %s14, 1
    %p74 = por %p72, %p73
    %p75 = scmp.ne.s32.totalorder %s66, %s67
    %p76 = scmp.eq.s32.totalorder %s14, 0
    %p77 = por %p75, %p76
    %p78 = scmp.ne.s32.totalorder %s66, %s67
    %p79 = scmp.eq.s32.totalorder %s15, 1
    %p80 = por %p78, %p79
    %p82 = scmp.ne.s32.totalorder %s67, %s81
    %p83 = scmp.eq.s32.totalorder %s15, 0
    %p84 = por %p82, %p83
    %s85 = ssub.s32 %s9, %s16
    %p86 = scmp.eq.s32.totalorder %s85, 0
    %s88 = sadd.s32 %s87, 1
    %s89 = scalar_select %p86, %s87, %s88
    %p92 = pneg %p86
    %p93 = scmp.eq.s32.totalorder %s9, 1
    %p94 = por %p92, %p93
    %p95 = scmp.ne.s32.totalorder %s87, %s90
    %p96 = scmp.eq.s32.totalorder %s9, 0
    %p97 = por %p95, %p96
    %p98 = scmp.ne.s32.totalorder %s87, %s90
    %p99 = scmp.eq.s32.totalorder %s14, 1
    %p100 = por %p98, %p99
    %p101 = scmp.ne.s32.totalorder %s90, %s91
    %p102 = scmp.eq.s32.totalorder %s14, 0
    %p103 = por %p101, %p102
    %p104 = scmp.ne.s32.totalorder %s90, %s91
    %p105 = scmp.eq.s32.totalorder %s15, 1
    %p106 = por %p104, %p105
    %p108 = scmp.ne.s32.totalorder %s91, %s107
    %p109 = scmp.eq.s32.totalorder %s15, 0
    %p110 = por %p108, %p109
    %p111 = scmp.le.s32.totalorder 1, %s9
    %p112 = scmp.lt.s32.totalorder %s9, 3
    %p113 = pnand %p111, %p112
    %p114 = pneg %p113
    // Predicated region
    $region9: #{resnet_forward.13} parent=5 // pred_check
      _
    $region10: #{resnet_forward.13} parent=5 // pred_check_branch
      %116 = sbr.rel (%p113) target = $region12
    $region11: #{resnet_forward.13} parent=5 // pred_region
      %s117 = ssub.s32 %s9, 1
      // Predicated region
      $region13: #{resnet_forward.13} parent=11 // pred_check
        %p118 = pneg %p56
      $region14: #{resnet_forward.13} parent=11 // pred_check_branch
        %120 = sbr.rel (%p118) target = $region16
      $region15: #{resnet_forward.13} parent=11 // pred_region
        _
      $region16: #{resnet_forward.13} parent=11 // pred_fallthru
        _
      // Predicated region
      $region17: #{resnet_forward.13} parent=11 // pred_check
        %p121 = pneg %p77
      $region18: #{resnet_forward.13} parent=11 // pred_check_branch
        %123 = sbr.rel (%p121) target = $region20
      $region19: #{resnet_forward.13} parent=11 // pred_region
        _
      $region20: #{resnet_forward.13} parent=11 // pred_fallthru
        _
    $region12: #{resnet_forward.13} parent=5 // pred_fallthru
      _
    %p124 = scmp.lt.s32.totalorder %s9, 2
    // Predicated region
    $region21: #{resnet_forward.13} parent=5 // pred_check
      %p125 = pneg %p124
    $region22: #{resnet_forward.13} parent=5 // pred_check_branch
      %127 = sbr.rel (%p125) target = $region24
    $region23: #{resnet_forward.13} parent=5 // pred_region
      // Predicated region
      $region25: #{resnet_forward.13} parent=23 // pred_check
        %p128 = pneg %p29
      $region26: #{resnet_forward.13} parent=23 // pred_check_branch
        %130 = sbr.rel (%p128) target = $region28
      $region27: #{resnet_forward.13} parent=23 // pred_region
        %p131 = scmp.lt.s32.totalorder %s9, 1
        %s132 = scalar_select %p131, %s9, 1
        %s133 = smul.addr %s132, 16
        %s134 = smul.addr %s133, 4
        %s135 = scalar_lea.vmem %s0, %s134
      $region28: #{resnet_forward.13} parent=23 // pred_fallthru
        _
    $region24: #{resnet_forward.13} parent=5 // pred_fallthru
      _
    %p136 = scmp.le.s32.totalorder 1, %s9
    %p137 = scmp.lt.s32.totalorder %s9, 3
    %p138 = pnand %p136, %p137
    %p139 = pneg %p138
    // Predicated region
    $region29: #{resnet_forward.13} parent=5 // pred_check
      _
    $region30: #{resnet_forward.13} parent=5 // pred_check_branch
      %141 = sbr.rel (%p138) target = $region32
    $region31: #{resnet_forward.13} parent=5 // pred_region
      %s142 = ssub.s32 %s9, 1
      %p143 = scmp.lt.s32.totalorder %s14, 1
      %s144 = scalar_select %p143, %s14, 1
      %s145 = smul.addr %s144, 16
      %s146 = smul.addr %s145, 4
      %s147 = scalar_lea.vmem %s0, %s146
      %p148 = pneg %p35
      %p149 = pneg %p32
      %p150 = pneg %p56
      %p151 = pneg %p53
      %p152 = pneg %p77
      %p153 = pneg %p74
      %p154 = pneg %p103
      %p155 = pneg %p100
      %p156 = scmp.lt.s32.totalorder %s14, 1
      %s157 = scalar_select %p156, %s14, 1
      %s158 = smul.addr %s157, 8
      %s159 = smul.addr %s158, 4
      %s160 = scalar_lea.vmem %s3, %s159
      %p161 = scmp.lt.s32.totalorder %s14, 1
      %s162 = scalar_select %p161, %s14, 1
      %s163 = smul.addr %s162, 16
      %s164 = smul.addr %s163, 4
      %s165 = scalar_lea.vmem %s0, %s164
      %p166 = scmp.lt.s32.totalorder %s14, 1
      %s167 = scalar_select %p166, %s14, 1
      %s168 = smul.addr %s167, 8
      %s169 = smul.addr %s168, 4
      %s170 = scalar_lea.vmem %s3, %s169
      %v172 = vld [vmem:[%s165] sm:$0xf]
      %v173 = vld [vmem:[%s165 + $0x4] sm:$0xf]
      %v174 = vld [vmem:[%s165 + $0x8] sm:$0xf]
      %v175 = vld [vmem:[%s165 + $0xc] sm:$0xf]
      %v176 = vld [vmem:[%s165 + $0x10] sm:$0xf]
      %v177 = vld [vmem:[%s165 + $0x14] sm:$0xf]
      %v178 = vld [vmem:[%s165 + $0x18] sm:$0xf]
      %v179 = vld [vmem:[%s165 + $0x1c] sm:$0xf]
      %v180 = vld [vmem:[%s165 + $0x20] sm:$0xf]
      %v181 = vld [vmem:[%s165 + $0x24] sm:$0xf]
      %v182 = vld [vmem:[%s165 + $0x28] sm:$0xf]
      %v183 = vld [vmem:[%s165 + $0x2c] sm:$0xf]
      %v184 = vld [vmem:[%s165 + $0x30] sm:$0xf]
      %v185 = vld [vmem:[%s165 + $0x34] sm:$0xf]
      %v186 = vld [vmem:[%s165 + $0x38] sm:$0xf]
      %v187 = vld [vmem:[%s165 + $0x3c] sm:$0xf]
      %v204 = vunpack.c.l.b16 %v172
      %v205 = vunpack.c.l.b16 %v173
      %v206 = vunpack.c.l.b16 %v174
      %v207 = vunpack.c.l.b16 %v175
      %v208 = vunpack.c.l.b16 %v176
      %v209 = vunpack.c.l.b16 %v177
      %v210 = vunpack.c.l.b16 %v178
      %v211 = vunpack.c.l.b16 %v179
      %v212 = vunpack.c.l.b16 %v180
      %v213 = vunpack.c.l.b16 %v181
      %v214 = vunpack.c.l.b16 %v182
      %v215 = vunpack.c.l.b16 %v183
      %v216 = vunpack.c.l.b16 %v184
      %v217 = vunpack.c.l.b16 %v185
      %v218 = vunpack.c.l.b16 %v186
      %v219 = vunpack.c.l.b16 %v187
      %v220 = vpack.c.b16 %v205, %v204
      %v221 = vpack.c.b16 %v207, %v206
      %v222 = vpack.c.b16 %v209, %v208
      %v223 = vpack.c.b16 %v211, %v210
      %v224 = vpack.c.b16 %v213, %v212
      %v225 = vpack.c.b16 %v215, %v214
      %v226 = vpack.c.b16 %v217, %v216
      %v227 = vpack.c.b16 %v219, %v218
      %236 = vrot.lane.b32.xlu0 %v220, 127
      %v237 = vpop.permute.xlu0 %236
      %238 = vrot.lane.b32.xlu0 %v221, 127
      %v239 = vpop.permute.xlu0 %238
      %240 = vrot.lane.b32.xlu0 %v222, 127
      %v241 = vpop.permute.xlu0 %240
      %242 = vrot.lane.b32.xlu0 %v223, 127
      %v243 = vpop.permute.xlu0 %242
      %244 = vrot.lane.b32.xlu0 %v224, 127
      %v245 = vpop.permute.xlu0 %244
      %246 = vrot.lane.b32.xlu0 %v225, 127
      %v247 = vpop.permute.xlu0 %246
      %248 = vrot.lane.b32.xlu0 %v226, 127
      %v249 = vpop.permute.xlu0 %248
      %250 = vrot.lane.b32.xlu0 %v227, 127
      %v251 = vpop.permute.xlu0 %250
      %260 = vrot.lane.b32.xlu0 %v220, 123
      %v261 = vpop.permute.xlu0 %260
      %262 = vrot.lane.b32.xlu0 %v221, 123
      %v263 = vpop.permute.xlu0 %262
      %264 = vrot.lane.b32.xlu0 %v222, 123
      %v265 = vpop.permute.xlu0 %264
      %266 = vrot.lane.b32.xlu0 %v223, 123
      %v267 = vpop.permute.xlu0 %266
      %268 = vrot.lane.b32.xlu0 %v224, 123
      %v269 = vpop.permute.xlu0 %268
      %270 = vrot.lane.b32.xlu0 %v225, 123
      %v271 = vpop.permute.xlu0 %270
      %272 = vrot.lane.b32.xlu0 %v226, 123
      %v273 = vpop.permute.xlu0 %272
      %274 = vrot.lane.b32.xlu0 %v227, 123
      %v275 = vpop.permute.xlu0 %274
      %284 = vrot.lane.b32.xlu0 %v220, 122
      %v285 = vpop.permute.xlu0 %284
      %286 = vrot.lane.b32.xlu0 %v221, 122
      %v287 = vpop.permute.xlu0 %286
      %288 = vrot.lane.b32.xlu0 %v222, 122
      %v289 = vpop.permute.xlu0 %288
      %290 = vrot.lane.b32.xlu0 %v223, 122
      %v291 = vpop.permute.xlu0 %290
      %292 = vrot.lane.b32.xlu0 %v224, 122
      %v293 = vpop.permute.xlu0 %292
      %294 = vrot.lane.b32.xlu0 %v225, 122
      %v295 = vpop.permute.xlu0 %294
      %296 = vrot.lane.b32.xlu0 %v226, 122
      %v297 = vpop.permute.xlu0 %296
      %298 = vrot.lane.b32.xlu0 %v227, 122
      %v299 = vpop.permute.xlu0 %298
      %v308 = vld [vmem:[%s1] sm:$0xff]
      %v309 = vld [vmem:[%s1 + $0x8] sm:$0xff]
      %v310 = vld [vmem:[%s1 + $0x10] sm:$0xff]
      %v311 = vld [vmem:[%s1 + $0x18] sm:$0xff]
      %v312 = vld [vmem:[%s1 + $0x20] sm:$0xff]
      %v313 = vld [vmem:[%s1 + $0x28] sm:$0xff]
      %v314 = vld [vmem:[%s1 + $0x30] sm:$0xff]
      %v315 = vld [vmem:[%s1 + $0x38] sm:$0xff]
      %v316 = vld [vmem:[%s1 + $0x40] sm:$0xff]
      %v317 = vld [vmem:[%s1 + $0x48] sm:$0xff]
      %v318 = vld [vmem:[%s1 + $0x50] sm:$0xff]
      %v319 = vld [vmem:[%s1 + $0x58] sm:$0xff]
      %v320 = vld [vmem:[%s1 + $0x60] sm:$0xff]
      %v321 = vld [vmem:[%s1 + $0x68] sm:$0xff]
      %v322 = vld [vmem:[%s1 + $0x70] sm:$0xff]
      %v323 = vld [vmem:[%s1 + $0x78] sm:$0xff]
      %v324 = vld [vmem:[%s2] sm:$0xff]
      %v325 = vld [vmem:[%s2 + $0x8] sm:$0xff]
      %v326 = vld [vmem:[%s2 + $0x10] sm:$0xff]
      %v327 = vld [vmem:[%s2 + $0x18] sm:$0xff]
      %v328 = vld [vmem:[%s2 + $0x20] sm:$0xff]
      %v329 = vld [vmem:[%s2 + $0x28] sm:$0xff]
      %v330 = vld [vmem:[%s2 + $0x30] sm:$0xff]
      %v331 = vld [vmem:[%s2 + $0x38] sm:$0xff]
      %333 = vset.pattern.permute.xlu0 0
      %334 = vperm.xlu0 %333, %v324
      %v335 = vpop.permute.xlu0 %334
      %338 = vset.pattern.permute.xlu0 0
      %339 = vperm.xlu0 %338, %v325
      %v340 = vpop.permute.xlu0 %339
      %343 = vset.pattern.permute.xlu0 0
      %344 = vperm.xlu0 %343, %v326
      %v345 = vpop.permute.xlu0 %344
      %348 = vset.pattern.permute.xlu0 0
      %349 = vperm.xlu0 %348, %v327
      %v350 = vpop.permute.xlu0 %349
      %353 = vset.pattern.permute.xlu0 0
      %354 = vperm.xlu0 %353, %v328
      %v355 = vpop.permute.xlu0 %354
      %358 = vset.pattern.permute.xlu0 0
      %359 = vperm.xlu0 %358, %v329
      %v360 = vpop.permute.xlu0 %359
      %363 = vset.pattern.permute.xlu0 0
      %364 = vperm.xlu0 %363, %v330
      %v365 = vpop.permute.xlu0 %364
      %368 = vset.pattern.permute.xlu0 0
      %369 = vperm.xlu0 %368, %v331
      %v370 = vpop.permute.xlu0 %369
      %v388 = vunpack.c.l.b16 %v308
      %v389 = vunpack.c.h.b16 %v308
      %v390 = vunpack.c.l.b16 %v309
      %v391 = vunpack.c.h.b16 %v309
      %v392 = vunpack.c.l.b16 %v310
      %v393 = vunpack.c.h.b16 %v310
      %v394 = vunpack.c.l.b16 %v311
      %v395 = vunpack.c.h.b16 %v311
      %v396 = vunpack.c.l.b16 %v312
      %v397 = vunpack.c.h.b16 %v312
      %v398 = vunpack.c.l.b16 %v313
      %v399 = vunpack.c.h.b16 %v313
      %v400 = vunpack.c.l.b16 %v314
      %v401 = vunpack.c.h.b16 %v314
      %v402 = vunpack.c.l.b16 %v315
      %v403 = vunpack.c.h.b16 %v315
      %v404 = vunpack.c.l.b16 %v316
      %v405 = vunpack.c.h.b16 %v316
      %v406 = vunpack.c.l.b16 %v317
      %v407 = vunpack.c.h.b16 %v317
      %v408 = vunpack.c.l.b16 %v318
      %v409 = vunpack.c.h.b16 %v318
      %v410 = vunpack.c.l.b16 %v319
      %v411 = vunpack.c.h.b16 %v319
      %v412 = vunpack.c.l.b16 %v320
      %v413 = vunpack.c.h.b16 %v320
      %v414 = vunpack.c.l.b16 %v321
      %v415 = vunpack.c.h.b16 %v321
      %v416 = vunpack.c.l.b16 %v322
      %v417 = vunpack.c.h.b16 %v322
      %v418 = vunpack.c.l.b16 %v323
      %v419 = vunpack.c.h.b16 %v323
      %v420 = vpack.c.b16 %v392, %v388
      %v421 = vpack.c.b16 %v393, %v389
      %v422 = vpack.c.b16 %v394, %v390
      %v423 = vpack.c.b16 %v395, %v391
      %v424 = vpack.c.b16 %v400, %v396
      %v425 = vpack.c.b16 %v401, %v397
      %v426 = vpack.c.b16 %v402, %v398
      %v427 = vpack.c.b16 %v403, %v399
      %v428 = vpack.c.b16 %v408, %v404
      %v429 = vpack.c.b16 %v409, %v405
      %v430 = vpack.c.b16 %v410, %v406
      %v431 = vpack.c.b16 %v411, %v407
      %v432 = vpack.c.b16 %v416, %v412
      %v433 = vpack.c.b16 %v417, %v413
      %v434 = vpack.c.b16 %v418, %v414
      %v435 = vpack.c.b16 %v419, %v415
      %452 = vmatprep.subr.bf16.mxu0 0
      %453 = vmatpush1.bf16.msra.mxu0 %v220
      %454 = vmatprep.subr.bf16.mxu0 0
      %455 = vmatpush1.bf16.msra.mxu0 %v221
      %456 = vmatprep.subr.bf16.mxu0 0
      %457 = vmatpush1.bf16.msra.mxu0 %v222
      %458 = vmatprep.subr.bf16.mxu0 0
      %459 = vmatpush1.bf16.msra.mxu0 %v223
      %460 = vmatprep.subr.bf16.mxu0 0
      %461 = vmatpush1.bf16.msra.mxu0 %v224
      %462 = vmatprep.subr.bf16.mxu0 0
      %463 = vmatpush1.bf16.msra.mxu0 %v225
      %464 = vmatprep.subr.bf16.mxu0 0
      %465 = vmatpush1.bf16.msra.mxu0 %v226
      %466 = vmatprep.subr.bf16.mxu0 0
      %467 = vmatpush1.bf16.msra.mxu0 %v227
      %468 = vmatprep.subr.bf16.mxu0 0
      %469 = vmatpush1.bf16.msra.mxu0 %v237
      %470 = vmatprep.subr.bf16.mxu0 0
      %471 = vmatpush1.bf16.msra.mxu0 %v239
      %472 = vmatprep.subr.bf16.mxu0 0
      %473 = vmatpush1.bf16.msra.mxu0 %v241
      %474 = vmatprep.subr.bf16.mxu0 0
      %475 = vmatpush1.bf16.msra.mxu0 %v243
      %476 = vmatprep.subr.bf16.mxu0 0
      %477 = vmatpush1.bf16.msra.mxu0 %v245
      %478 = vmatprep.subr.bf16.mxu0 0
      %479 = vmatpush1.bf16.msra.mxu0 %v247
      %480 = vmatprep.subr.bf16.mxu0 0
      %481 = vmatpush1.bf16.msra.mxu0 %v249
      %482 = vmatprep.subr.bf16.mxu0 0
      %483 = vmatpush1.bf16.msra.mxu0 %v251
      %484 = vmatprep.mubr.bf16.mxu0 %v421
      %485 = vmatmul.mubr.bf16.gmra.mrb[0].mxu0 %v420
      %v486 = vpop.f32.mrb[0].mxu0
      %v487 = vadd.f32 %v335, %v486
      %v488 = vpop.f32.mrb[0].mxu0
      %v489 = vpop.f32.mrb[0].mxu0
      %v490 = vadd.f32 %v340, %v489
      %v491 = vpop.f32.mrb[0].mxu0
      %492 = vmatprep.mubr.bf16.mxu0 %v425
      %493 = vmatmul.mubr.bf16.gmra.mrb[0].mxu0 %v424
      %v494 = vpop.f32.mrb[0].mxu0
      %v495 = vadd.f32 %v345, %v494
      %v496 = vpop.f32.mrb[0].mxu0
      %v497 = vpop.f32.mrb[0].mxu0
      %v498 = vadd.f32 %v350, %v497
      %v499 = vpop.f32.mrb[0].mxu0
      %500 = vmatprep.mubr.bf16.mxu0 %v429
      %501 = vmatmul.mubr.bf16.gmra.mrb[0].mxu0 %v428
      %v502 = vpop.f32.mrb[0].mxu0
      %v503 = vadd.f32 %v355, %v502
      %v504 = vpop.f32.mrb[0].mxu0
      %v505 = vpop.f32.mrb[0].mxu0
      %v506 = vadd.f32 %v360, %v505
      %v507 = vpop.f32.mrb[0].mxu0
      %508 = vmatprep.mubr.bf16.mxu0 %v433
      %509 = vmatmul.mubr.bf16.gmra.mrb[0].mxu0 %v432
      %v510 = vpop.f32.mrb[0].mxu0
      %v511 = vadd.f32 %v365, %v510
      %v512 = vpop.f32.mrb[0].mxu0
      %v513 = vpop.f32.mrb[0].mxu0
      %v514 = vadd.f32 %v370, %v513
      %v515 = vpop.f32.mrb[0].mxu0
      %516 = vdwg.mxu0
      %517 = vmatprep.subr.bf16.mxu0 0
      %518 = vmatpush1.bf16.msra.mxu0 %v261
      %519 = vmatprep.subr.bf16.mxu0 0
      %520 = vmatpush1.bf16.msra.mxu0 %v263
      %521 = vmatprep.subr.bf16.mxu0 0
      %522 = vmatpush1.bf16.msra.mxu0 %v265
      %523 = vmatprep.subr.bf16.mxu0 0
      %524 = vmatpush1.bf16.msra.mxu0 %v267
      %525 = vmatprep.subr.bf16.mxu0 0
      %526 = vmatpush1.bf16.msra.mxu0 %v269
      %527 = vmatprep.subr.bf16.mxu0 0
      %528 = vmatpush1.bf16.msra.mxu0 %v271
      %529 = vmatprep.subr.bf16.mxu0 0
      %530 = vmatpush1.bf16.msra.mxu0 %v273
      %531 = vmatprep.subr.bf16.mxu0 0
      %532 = vmatpush1.bf16.msra.mxu0 %v275
      %533 = vmatprep.subr.bf16.mxu0 0
      %534 = vmatpush1.bf16.msra.mxu0 %v285
      %535 = vmatprep.subr.bf16.mxu0 0
      %536 = vmatpush1.bf16.msra.mxu0 %v287
      %537 = vmatprep.subr.bf16.mxu0 0
      %538 = vmatpush1.bf16.msra.mxu0 %v289
      %539 = vmatprep.subr.bf16.mxu0 0
      %540 = vmatpush1.bf16.msra.mxu0 %v291
      %541 = vmatprep.subr.bf16.mxu0 0
      %542 = vmatpush1.bf16.msra.mxu0 %v293
      %543 = vmatprep.subr.bf16.mxu0 0
      %544 = vmatpush1.bf16.msra.mxu0 %v295
      %545 = vmatprep.subr.bf16.mxu0 0
      %546 = vmatpush1.bf16.msra.mxu0 %v297
      %547 = vmatprep.subr.bf16.mxu0 0
      %548 = vmatpush1.bf16.msra.mxu0 %v299
      %549 = vmatprep.mubr.bf16.mxu0 %v423
      %550 = vmatmul.mubr.bf16.gmra.mrb[0].mxu0 %v422
      %v551 = vpop.f32.mrb[0].mxu0
      %v552 = vadd.f32 %v487, %v551
      %v553 = vpop.f32.mrb[0].mxu0
      %v554 = vpop.f32.mrb[0].mxu0
      %v555 = vadd.f32 %v490, %v554
      %v556 = vpop.f32.mrb[0].mxu0
      %557 = vmatprep.mubr.bf16.mxu0 %v427
      %558 = vmatmul.mubr.bf16.gmra.mrb[0].mxu0 %v426
      %v559 = vpop.f32.mrb[0].mxu0
      %v560 = vadd.f32 %v495, %v559
      %v561 = vpop.f32.mrb[0].mxu0
      %v562 = vpop.f32.mrb[0].mxu0
      %v563 = vadd.f32 %v498, %v562
      %v564 = vpop.f32.mrb[0].mxu0
      %565 = vmatprep.mubr.bf16.mxu0 %v431
      %566 = vmatmul.mubr.bf16.gmra.mrb[0].mxu0 %v430
      %v567 = vpop.f32.mrb[0].mxu0
      %v568 = vadd.f32 %v503, %v567
      %v569 = vpop.f32.mrb[0].mxu0
      %v570 = vpop.f32.mrb[0].mxu0
      %v571 = vadd.f32 %v506, %v570
      %v572 = vpop.f32.mrb[0].mxu0
      %573 = vmatprep.mubr.bf16.mxu0 %v435
      %574 = vmatmul.mubr.bf16.gmra.mrb[0].mxu0 %v434
      %v575 = vpop.f32.mrb[0].mxu0
      %v576 = vadd.f32 %v511, %v575
      %v577 = vpop.f32.mrb[0].mxu0
      %v578 = vpop.f32.mrb[0].mxu0
      %v579 = vadd.f32 %v514, %v578
      %v580 = vpop.f32.mrb[0].mxu0
      %581 = vdwg.mxu0
      %v582 = vmax.f32 %v552, 0.0
      %v583 = vmax.f32 %v555, 0.0
      %v584 = vmax.f32 %v560, 0.0
      %v585 = vmax.f32 %v563, 0.0
      %v586 = vmax.f32 %v568, 0.0
      %v587 = vmax.f32 %v571, 0.0
      %v588 = vmax.f32 %v576, 0.0
      %v589 = vmax.f32 %v579, 0.0
      %v590 = vpack.c.bf16 %v583, %v582
      %v591 = vpack.c.bf16 %v585, %v584
      %v592 = vpack.c.bf16 %v587, %v586
      %v593 = vpack.c.bf16 %v589, %v588
      %v598 = vunpack.c.l.b16 %v590
      %v599 = vunpack.c.h.b16 %v590
      %v600 = vunpack.c.l.b16 %v591
      %v601 = vunpack.c.h.b16 %v591
      %v602 = vunpack.c.l.b16 %v592
      %v603 = vunpack.c.h.b16 %v592
      %v604 = vunpack.c.l.b16 %v593
      %v605 = vunpack.c.h.b16 %v593
      %v606 = vpack.c.b16 %v598, %v598
      %v607 = vpack.c.b16 %v599, %v599
      %v608 = vpack.c.b16 %v600, %v600
      %v609 = vpack.c.b16 %v601, %v601
      %v610 = vpack.c.b16 %v602, %v602
      %v611 = vpack.c.b16 %v603, %v603
      %v612 = vpack.c.b16 %v604, %v604
      %v613 = vpack.c.b16 %v605, %v605
      %vm622 = vcmask 150528
      %623 = vst.msk [vmem:[%s170] sm:$0xf] %vm622, %v606
      %624 = vst.msk [vmem:[%s170 + $0x4] sm:$0xf] %vm622, %v607
      %625 = vst.msk [vmem:[%s170 + $0x8] sm:$0xf] %vm622, %v608
      %626 = vst.msk [vmem:[%s170 + $0xc] sm:$0xf] %vm622, %v609
      %627 = vst.msk [vmem:[%s170 + $0x10] sm:$0xf] %vm622, %v610
      %628 = vst.msk [vmem:[%s170 + $0x14] sm:$0xf] %vm622, %v611
      %629 = vst.msk [vmem:[%s170 + $0x18] sm:$0xf] %vm622, %v612
      %630 = vst.msk [vmem:[%s170 + $0x1c] sm:$0xf] %vm622, %v613
      %p631 = scmp.lt.s32.totalorder %s14, 1
      %s632 = scalar_select %p631, %s14, 1
      %s633 = smul.addr %s632, 8
      %s634 = smul.addr %s633, 4
      %s635 = scalar_lea.vmem %s3, %s634
      // Predicated region
      $region33: #{resnet_forward.13} parent=31 // pred_check
        %p636 = pneg %p100
      $region34: #{resnet_forward.13} parent=31 // pred_check_branch
        %638 = sbr.rel (%p636) target = $region36
      $region35: #{resnet_forward.13} parent=31 // pred_region
        _
      $region36: #{resnet_forward.13} parent=31 // pred_fallthru
        _
    $region32: #{resnet_forward.13} parent=5 // pred_fallthru
      _
    %p639 = scmp.le.s32.totalorder 2, %s9
    // Predicated region
    $region37: #{resnet_forward.13} parent=5 // pred_check
      %p640 = pneg %p639
    $region38: #{resnet_forward.13} parent=5 // pred_check_branch
      %642 = sbr.rel (%p640) target = $region40
    $region39: #{resnet_forward.13} parent=5 // pred_region
      %s643 = ssub.s32 %s9, 2
      // Predicated region
      $region41: #{resnet_forward.13} parent=39 // pred_check
        %p644 = pneg %p106
      $region42: #{resnet_forward.13} parent=39 // pred_check_branch
        %646 = sbr.rel (%p644) target = $region44
      $region43: #{resnet_forward.13} parent=39 // pred_region
        %p647 = scmp.lt.s32.totalorder %s15, 1
        %s648 = scalar_select %p647, %s15, 1
        %s649 = smul.addr %s648, 8
        %s650 = smul.addr %s649, 4
        %s651 = scalar_lea.vmem %s3, %s650
      $region44: #{resnet_forward.13} parent=39 // pred_fallthru
        _
    $region40: #{resnet_forward.13} parent=5 // pred_fallthru
      _
  $region6: #{resnet_forward.13} parent=0 // loop_footer
    %s13 = sadd.s32 1, %s9
  $region7: #{resnet_forward.13} parent=0 // loop_footer_branch
    %8 = sbr.rel target = $region3
  $region8: #{resnet_forward.13} parent=0 // loop_exit
    _

// kernel: resnet_forward.14
$region0: #{resnet_forward.14}
  #allocation0 [shape = 'u32[]', space=smem, size = 0x4, offset = 0x4, fixed_abs, tag = 'smem constant byte address 0x4 - core index']
  #allocation1 [shape = 'u32[144,128]{1,0:T(1,128)}', space=vmem, size = 0x12000, scoped, tag = 'internal scratch']
  %s0 = inlined_call_operand.vmem [shape: bf16[2,64,36], index: 0, kind: input, shape index: {}]
  %s1 = inlined_call_operand.vmem [shape: bf16[64,576], index: 1, kind: input, shape index: {}]
  %s2 = inlined_call_operand.vmem [shape: f32[64,1], index: 2, kind: input, shape index: {}]
  %s3 = inlined_call_operand.vmem [shape: bf16[2,32,22], index: 3, kind: input, shape index: {}]
  %s4 = inlined_call_operand.vmem [shape: bf16[2,64,22], index: 4, kind: output, shape index: {}]
  %s5 = sld [smem:[#allocation0]]
  $region49: #{resnet_forward.14} parent=0
    _
  %s7 = ssub.s32 1, %s5
  %s8 = scalar_select 0, %s7, %s5
  loop: start=0, step=1, limit=4
  $region2: #{resnet_forward.14} parent=0 // loop_pre_header
    _
  $region3: #{resnet_forward.14} parent=0 // loop_header
    %s10 = sphi 0, %s14
    %p11 = scmp.ge.s32.totalorder %s10, 4
    %s20 = sphi 0, %s22
    %s23 = sphi 0, %s20
    %s24 = sphi 0, %s23
    %s40 = sphi 0, %s24
    %s44 = sphi 0, %s44
    %s46 = sphi 0, %s44
    %s47 = sphi 0, %s46
    %s61 = sphi 0, %s47
    %s65 = sphi 0, %s65
    %s67 = sphi 0, %s65
    %s68 = sphi 0, %s67
    %s82 = sphi 0, %s68
    %s88 = sphi 0, %s90
    %s91 = sphi 0, %s88
    %s92 = sphi 0, %s91
    %s108 = sphi 0, %s92
    %s114 = sphi 0, %s116
    %s117 = sphi 0, %s114
    %s118 = sphi 0, %s117
    %s134 = sphi 0, %s118
  $region4: #{resnet_forward.14} parent=0 // loop_header_branch
    %13 = sbr.rel (%p11) target = $region8
  $region5: #{resnet_forward.14} parent=0 // loop_body
    %s15 = ssub.s32 %s10, 1
    %s16 = ssub.s32 %s10, 2
    %s17 = sadd.s32 %s10, 1
    %s18 = ssub.s32 %s10, %s17
    %p19 = scmp.eq.s32.totalorder %s18, 0
    %s21 = sadd.s32 %s20, 1
    %s22 = scalar_select %p19, %s20, %s21
    %p25 = pneg %p19
    %p26 = scmp.eq.s32.totalorder %s10, 1
    %p27 = por %p25, %p26
    %p28 = scmp.ne.s32.totalorder %s20, %s23
    %p29 = scmp.eq.s32.totalorder %s10, 0
    %p30 = por %p28, %p29
    %p31 = scmp.ne.s32.totalorder %s20, %s23
    %p32 = scmp.eq.s32.totalorder %s15, 1
    %p33 = por %p31, %p32
    %p34 = scmp.ne.s32.totalorder %s23, %s24
    %p35 = scmp.eq.s32.totalorder %s15, 0
    %p36 = por %p34, %p35
    %p37 = scmp.ne.s32.totalorder %s23, %s24
    %p38 = scmp.eq.s32.totalorder %s16, 1
    %p39 = por %p37, %p38
    %p41 = scmp.ne.s32.totalorder %s24, %s40
    %p42 = scmp.eq.s32.totalorder %s16, 0
    %p43 = por %p41, %p42
    %s45 = sadd.s32 %s44, 1
    %p48 = scmp.eq.s32.totalorder %s10, 1
    %p49 = scmp.ne.s32.totalorder %s44, %s46
    %p50 = scmp.eq.s32.totalorder %s10, 0
    %p51 = por %p49, %p50
    %p52 = scmp.ne.s32.totalorder %s44, %s46
    %p53 = scmp.eq.s32.totalorder %s15, 1
    %p54 = por %p52, %p53
    %p55 = scmp.ne.s32.totalorder %s46, %s47
    %p56 = scmp.eq.s32.totalorder %s15, 0
    %p57 = por %p55, %p56
    %p58 = scmp.ne.s32.totalorder %s46, %s47
    %p59 = scmp.eq.s32.totalorder %s16, 1
    %p60 = por %p58, %p59
    %p62 = scmp.ne.s32.totalorder %s47, %s61
    %p63 = scmp.eq.s32.totalorder %s16, 0
    %p64 = por %p62, %p63
    %s66 = sadd.s32 %s65, 1
    %p69 = scmp.eq.s32.totalorder %s10, 1
    %p70 = scmp.ne.s32.totalorder %s65, %s67
    %p71 = scmp.eq.s32.totalorder %s10, 0
    %p72 = por %p70, %p71
    %p73 = scmp.ne.s32.totalorder %s65, %s67
    %p74 = scmp.eq.s32.totalorder %s15, 1
    %p75 = por %p73, %p74
    %p76 = scmp.ne.s32.totalorder %s67, %s68
    %p77 = scmp.eq.s32.totalorder %s15, 0
    %p78 = por %p76, %p77
    %p79 = scmp.ne.s32.totalorder %s67, %s68
    %p80 = scmp.eq.s32.totalorder %s16, 1
    %p81 = por %p79, %p80
    %p83 = scmp.ne.s32.totalorder %s68, %s82
    %p84 = scmp.eq.s32.totalorder %s16, 0
    %p85 = por %p83, %p84
    %s86 = ssub.s32 %s10, %s17
    %p87 = scmp.eq.s32.totalorder %s86, 0
    %s89 = sadd.s32 %s88, 1
    %s90 = scalar_select %p87, %s88, %s89
    %p93 = pneg %p87
    %p94 = scmp.eq.s32.totalorder %s10, 1
    %p95 = por %p93, %p94
    %p96 = scmp.ne.s32.totalorder %s88, %s91
    %p97 = scmp.eq.s32.totalorder %s10, 0
    %p98 = por %p96, %p97
    %p99 = scmp.ne.s32.totalorder %s88, %s91
    %p100 = scmp.eq.s32.totalorder %s15, 1
    %p101 = por %p99, %p100
    %p102 = scmp.ne.s32.totalorder %s91, %s92
    %p103 = scmp.eq.s32.totalorder %s15, 0
    %p104 = por %p102, %p103
    %p105 = scmp.ne.s32.totalorder %s91, %s92
    %p106 = scmp.eq.s32.totalorder %s16, 1
    %p107 = por %p105, %p106
    %p109 = scmp.ne.s32.totalorder %s92, %s108
    %p110 = scmp.eq.s32.totalorder %s16, 0
    %p111 = por %p109, %p110
    %s112 = ssub.s32 %s10, %s17
    %p113 = scmp.eq.s32.totalorder %s112, 0
    %s115 = sadd.s32 %s114, 1
    %s116 = scalar_select %p113, %s114, %s115
    %p119 = pneg %p113
    %p120 = scmp.eq.s32.totalorder %s10, 1
    %p121 = por %p119, %p120
    %p122 = scmp.ne.s32.totalorder %s114, %s117
    %p123 = scmp.eq.s32.totalorder %s10, 0
    %p124 = por %p122, %p123
    %p125 = scmp.ne.s32.totalorder %s114, %s117
    %p126 = scmp.eq.s32.totalorder %s15, 1
    %p127 = por %p125, %p126
    %p128 = scmp.ne.s32.totalorder %s117, %s118
    %p129 = scmp.eq.s32.totalorder %s15, 0
    %p130 = por %p128, %p129
    %p131 = scmp.ne.s32.totalorder %s117, %s118
    %p132 = scmp.eq.s32.totalorder %s16, 1
    %p133 = por %p131, %p132
    %p135 = scmp.ne.s32.totalorder %s118, %s134
    %p136 = scmp.eq.s32.totalorder %s16, 0
    %p137 = por %p135, %p136
    %p138 = scmp.le.s32.totalorder 1, %s10
    %p139 = scmp.lt.s32.totalorder %s10, 3
    %p140 = pnand %p138, %p139
    %p141 = pneg %p140
    // Predicated region
    $region9: #{resnet_forward.14} parent=5 // pred_check
      _
    $region10: #{resnet_forward.14} parent=5 // pred_check_branch
      %143 = sbr.rel (%p140) target = $region12
    $region11: #{resnet_forward.14} parent=5 // pred_region
      %s144 = ssub.s32 %s10, 1
      // Predicated region
      $region13: #{resnet_forward.14} parent=11 // pred_check
        %p145 = pneg %p57
      $region14: #{resnet_forward.14} parent=11 // pred_check_branch
        %147 = sbr.rel (%p145) target = $region16
      $region15: #{resnet_forward.14} parent=11 // pred_region
        _
      $region16: #{resnet_forward.14} parent=11 // pred_fallthru
        _
      // Predicated region
      $region17: #{resnet_forward.14} parent=11 // pred_check
        %p148 = pneg %p78
      $region18: #{resnet_forward.14} parent=11 // pred_check_branch
        %150 = sbr.rel (%p148) target = $region20
      $region19: #{resnet_forward.14} parent=11 // pred_region
        _
      $region20: #{resnet_forward.14} parent=11 // pred_fallthru
        _
    $region12: #{resnet_forward.14} parent=5 // pred_fallthru
      _
    %p151 = scmp.lt.s32.totalorder %s10, 2
    // Predicated region
    $region21: #{resnet_forward.14} parent=5 // pred_check
      %p152 = pneg %p151
    $region22: #{resnet_forward.14} parent=5 // pred_check_branch
      %154 = sbr.rel (%p152) target = $region24
    $region23: #{resnet_forward.14} parent=5 // pred_region
      // Predicated region
      $region25: #{resnet_forward.14} parent=23 // pred_check
        %p155 = pneg %p30
      $region26: #{resnet_forward.14} parent=23 // pred_check_branch
        %157 = sbr.rel (%p155) target = $region28
      $region27: #{resnet_forward.14} parent=23 // pred_region
        %p158 = scmp.lt.s32.totalorder %s10, 1
        %s159 = scalar_select %p158, %s10, 1
        %s160 = smul.addr %s159, 8
        %s161 = smul.addr %s160, 4
        %s162 = scalar_lea.vmem %s0, %s161
      $region28: #{resnet_forward.14} parent=23 // pred_fallthru
        _
      // Predicated region
      $region29: #{resnet_forward.14} parent=23 // pred_check
        %p163 = pneg %p98
      $region30: #{resnet_forward.14} parent=23 // pred_check_branch
        %165 = sbr.rel (%p163) target = $region32
      $region31: #{resnet_forward.14} parent=23 // pred_region
        %p166 = scmp.lt.s32.totalorder %s10, 1
        %s167 = scalar_select %p166, %s10, 1
        %s168 = smul.addr %s167, 4
        %s169 = smul.addr %s168, 4
        %s170 = scalar_lea.vmem %s3, %s169
      $region32: #{resnet_forward.14} parent=23 // pred_fallthru
        _
    $region24: #{resnet_forward.14} parent=5 // pred_fallthru
      _
    %p171 = scmp.le.s32.totalorder 1, %s10
    %p172 = scmp.lt.s32.totalorder %s10, 3
    %p173 = pnand %p171, %p172
    %p174 = pneg %p173
    // Predicated region
    $region33: #{resnet_forward.14} parent=5 // pred_check
      _
    $region34: #{resnet_forward.14} parent=5 // pred_check_branch
      %176 = sbr.rel (%p173) target = $region36
    $region35: #{resnet_forward.14} parent=5 // pred_region
      %s177 = ssub.s32 %s10, 1
      %p178 = scmp.lt.s32.totalorder %s15, 1
      %s179 = scalar_select %p178, %s15, 1
      %s180 = smul.addr %s179, 8
      %s181 = smul.addr %s180, 4
      %s182 = scalar_lea.vmem %s0, %s181
      %p183 = pneg %p36
      %p184 = pneg %p33
      %p185 = pneg %p57
      %p186 = pneg %p54
      %p187 = pneg %p78
      %p188 = pneg %p75
      %p189 = scmp.lt.s32.totalorder %s15, 1
      %s190 = scalar_select %p189, %s15, 1
      %s191 = smul.addr %s190, 4
      %s192 = smul.addr %s191, 4
      %s193 = scalar_lea.vmem %s3, %s192
      %p194 = pneg %p104
      %p195 = pneg %p101
      %p196 = pneg %p130
      %p197 = pneg %p127
      %p198 = scmp.lt.s32.totalorder %s15, 1
      %s199 = scalar_select %p198, %s15, 1
      %s200 = smul.addr %s199, 8
      %s201 = smul.addr %s200, 4
      %s202 = scalar_lea.vmem %s4, %s201
      %p203 = scmp.lt.s32.totalorder %s15, 1
      %s204 = scalar_select %p203, %s15, 1
      %s205 = smul.addr %s204, 8
      %s206 = smul.addr %s205, 4
      %s207 = scalar_lea.vmem %s0, %s206
      %p208 = scmp.lt.s32.totalorder %s15, 1
      %s209 = scalar_select %p208, %s15, 1
      %s210 = smul.addr %s209, 4
      %s211 = smul.addr %s210, 4
      %s212 = scalar_lea.vmem %s3, %s211
      %p213 = scmp.lt.s32.totalorder %s15, 1
      %s214 = scalar_select %p213, %s15, 1
      %s215 = smul.addr %s214, 8
      %s216 = smul.addr %s215, 4
      %s217 = scalar_lea.vmem %s4, %s216
      %v219 = vld [vmem:[%s207] sm:$0xf]
      %v220 = vld [vmem:[%s207 + $0x4] sm:$0xf]
      %v221 = vld [vmem:[%s207 + $0x8] sm:$0xf]
      %v222 = vld [vmem:[%s207 + $0xc] sm:$0xf]
      %v223 = vld [vmem:[%s207 + $0x10] sm:$0xf]
      %v224 = vld [vmem:[%s207 + $0x14] sm:$0xf]
      %v225 = vld [vmem:[%s207 + $0x18] sm:$0xf]
      %v226 = vld [vmem:[%s207 + $0x1c] sm:$0xf]
      %v235 = vunpack.c.l.b16 %v219
      %v236 = vunpack.c.l.b16 %v220
      %v237 = vunpack.c.l.b16 %v221
      %v238 = vunpack.c.l.b16 %v222
      %v239 = vunpack.c.l.b16 %v223
      %v240 = vunpack.c.l.b16 %v224
      %v241 = vunpack.c.l.b16 %v225
      %v242 = vunpack.c.l.b16 %v226
      %v243 = vpack.c.b16 %v236, %v235
      %v244 = vpack.c.b16 %v238, %v237
      %v245 = vpack.c.b16 %v240, %v239
      %v246 = vpack.c.b16 %v242, %v241
      %251 = vrot.lane.b32.xlu0 %v243, 127
      %v252 = vpop.permute.xlu0 %251
      %253 = vrot.lane.b32.xlu0 %v244, 127
      %v254 = vpop.permute.xlu0 %253
      %255 = vrot.lane.b32.xlu0 %v245, 127
      %v256 = vpop.permute.xlu0 %255
      %257 = vrot.lane.b32.xlu0 %v246, 127
      %v258 = vpop.permute.xlu0 %257
      %263 = vrot.lane.b32.xlu0 %v243, 126
      %v264 = vpop.permute.xlu0 %263
      %265 = vrot.lane.b32.xlu0 %v244, 126
      %v266 = vpop.permute.xlu0 %265
      %267 = vrot.lane.b32.xlu0 %v245, 126
      %v268 = vpop.permute.xlu0 %267
      %269 = vrot.lane.b32.xlu0 %v246, 126
      %v270 = vpop.permute.xlu0 %269
      %275 = vrot.lane.b32.xlu0 %v243, 122
      %v276 = vpop.permute.xlu0 %275
      %277 = vrot.lane.b32.xlu0 %v244, 122
      %v278 = vpop.permute.xlu0 %277
      %279 = vrot.lane.b32.xlu0 %v245, 122
      %v280 = vpop.permute.xlu0 %279
      %281 = vrot.lane.b32.xlu0 %v246, 122
      %v282 = vpop.permute.xlu0 %281
      %287 = vrot.lane.b32.xlu0 %v243, 121
      %v288 = vpop.permute.xlu0 %287
      %289 = vrot.lane.b32.xlu0 %v244, 121
      %v290 = vpop.permute.xlu0 %289
      %291 = vrot.lane.b32.xlu0 %v245, 121
      %v292 = vpop.permute.xlu0 %291
      %293 = vrot.lane.b32.xlu0 %v246, 121
      %v294 = vpop.permute.xlu0 %293
      %299 = vrot.lane.b32.xlu0 %v243, 120
      %v300 = vpop.permute.xlu0 %299
      %301 = vrot.lane.b32.xlu0 %v244, 120
      %v302 = vpop.permute.xlu0 %301
      %303 = vrot.lane.b32.xlu0 %v245, 120
      %v304 = vpop.permute.xlu0 %303
      %305 = vrot.lane.b32.xlu0 %v246, 120
      %v306 = vpop.permute.xlu0 %305
      %311 = vrot.lane.b32.xlu0 %v243, 116
      %v312 = vpop.permute.xlu0 %311
      %313 = vrot.lane.b32.xlu0 %v244, 116
      %v314 = vpop.permute.xlu0 %313
      %315 = vrot.lane.b32.xlu0 %v245, 116
      %v316 = vpop.permute.xlu0 %315
      %317 = vrot.lane.b32.xlu0 %v246, 116
      %v318 = vpop.permute.xlu0 %317
      %323 = vrot.lane.b32.xlu0 %v243, 115
      %v324 = vpop.permute.xlu0 %323
      %325 = vrot.lane.b32.xlu0 %v244, 115
      %v326 = vpop.permute.xlu0 %325
      %327 = vrot.lane.b32.xlu0 %v245, 115
      %v328 = vpop.permute.xlu0 %327
      %329 = vrot.lane.b32.xlu0 %v246, 115
      %v330 = vpop.permute.xlu0 %329
      %335 = vrot.lane.b32.xlu0 %v243, 114
      %v336 = vpop.permute.xlu0 %335
      %337 = vrot.lane.b32.xlu0 %v244, 114
      %v338 = vpop.permute.xlu0 %337
      %339 = vrot.lane.b32.xlu0 %v245, 114
      %v340 = vpop.permute.xlu0 %339
      %341 = vrot.lane.b32.xlu0 %v246, 114
      %v342 = vpop.permute.xlu0 %341
      %v347 = vld [vmem:[%s1] sm:$0xff]
      %v348 = vld [vmem:[%s1 + $0x8] sm:$0xff]
      %v349 = vld [vmem:[%s1 + $0x10] sm:$0xf]
      %v350 = vld [vmem:[%s1 + $0x14] sm:$0xff]
      %v351 = vld [vmem:[%s1 + $0x1c] sm:$0xff]
      %v352 = vld [vmem:[%s1 + $0x24] sm:$0xf]
      %v353 = vld [vmem:[%s1 + $0x28] sm:$0xff]
      %v354 = vld [vmem:[%s1 + $0x30] sm:$0xff]
      %v355 = vld [vmem:[%s1 + $0x38] sm:$0xf]
      %v356 = vld [vmem:[%s1 + $0x3c] sm:$0xff]
      %v357 = vld [vmem:[%s1 + $0x44] sm:$0xff]
      %v358 = vld [vmem:[%s1 + $0x4c] sm:$0xf]
      %v359 = vld [vmem:[%s1 + $0x50] sm:$0xff]
      %v360 = vld [vmem:[%s1 + $0x58] sm:$0xff]
      %v361 = vld [vmem:[%s1 + $0x60] sm:$0xf]
      %v362 = vld [vmem:[%s1 + $0x64] sm:$0xff]
      %v363 = vld [vmem:[%s1 + $0x6c] sm:$0xff]
      %v364 = vld [vmem:[%s1 + $0x74] sm:$0xf]
      %v365 = vld [vmem:[%s1 + $0x78] sm:$0xff]
      %v366 = vld [vmem:[%s1 + $0x80] sm:$0xff]
      %v367 = vld [vmem:[%s1 + $0x88] sm:$0xf]
      %v368 = vld [vmem:[%s1 + $0x8c] sm:$0xff]
      %v369 = vld [vmem:[%s1 + $0x94] sm:$0xff]
      %v370 = vld [vmem:[%s1 + $0x9c] sm:$0xf]
      %v371 = vld [vmem:[%s2] sm:$0xff]
      %v372 = vld [vmem:[%s2 + $0x8] sm:$0xff]
      %v373 = vld [vmem:[%s2 + $0x10] sm:$0xff]
      %v374 = vld [vmem:[%s2 + $0x18] sm:$0xff]
      %v375 = vld [vmem:[%s2 + $0x20] sm:$0xff]
      %v376 = vld [vmem:[%s2 + $0x28] sm:$0xff]
      %v377 = vld [vmem:[%s2 + $0x30] sm:$0xff]
      %v378 = vld [vmem:[%s2 + $0x38] sm:$0xff]
      %380 = vset.pattern.permute.xlu0 0
      %381 = vperm.xlu0 %380, %v371
      %v382 = vpop.permute.xlu0 %381
      %385 = vset.pattern.permute.xlu0 0
      %386 = vperm.xlu0 %385, %v372
      %v387 = vpop.permute.xlu0 %386
      %390 = vset.pattern.permute.xlu0 0
      %391 = vperm.xlu0 %390, %v373
      %v392 = vpop.permute.xlu0 %391
      %395 = vset.pattern.permute.xlu0 0
      %396 = vperm.xlu0 %395, %v374
      %v397 = vpop.permute.xlu0 %396
      %400 = vset.pattern.permute.xlu0 0
      %401 = vperm.xlu0 %400, %v375
      %v402 = vpop.permute.xlu0 %401
      %405 = vset.pattern.permute.xlu0 0
      %406 = vperm.xlu0 %405, %v376
      %v407 = vpop.permute.xlu0 %406
      %410 = vset.pattern.permute.xlu0 0
      %411 = vperm.xlu0 %410, %v377
      %v412 = vpop.permute.xlu0 %411
      %415 = vset.pattern.permute.xlu0 0
      %416 = vperm.xlu0 %415, %v378
      %v417 = vpop.permute.xlu0 %416
      %v443 = vunpack.c.l.b16 %v347
      %v444 = vunpack.c.h.b16 %v347
      %v445 = vunpack.c.l.b16 %v348
      %v446 = vunpack.c.h.b16 %v348
      %v447 = vunpack.c.l.b16 %v349
      %v448 = vunpack.c.l.b16 %v350
      %v449 = vunpack.c.h.b16 %v350
      %v450 = vunpack.c.l.b16 %v351
      %v451 = vunpack.c.h.b16 %v351
      %v452 = vunpack.c.l.b16 %v352
      %v453 = vunpack.c.l.b16 %v353
      %v454 = vunpack.c.h.b16 %v353
      %v455 = vunpack.c.l.b16 %v354
      %v456 = vunpack.c.h.b16 %v354
      %v457 = vunpack.c.l.b16 %v355
      %v458 = vunpack.c.l.b16 %v356
      %v459 = vunpack.c.h.b16 %v356
      %v460 = vunpack.c.l.b16 %v357
      %v461 = vunpack.c.h.b16 %v357
      %v462 = vunpack.c.l.b16 %v358
      %v463 = vunpack.c.l.b16 %v359
      %v464 = vunpack.c.h.b16 %v359
      %v465 = vunpack.c.l.b16 %v360
      %v466 = vunpack.c.h.b16 %v360
      %v467 = vunpack.c.l.b16 %v361
      %v468 = vunpack.c.l.b16 %v362
      %v469 = vunpack.c.h.b16 %v362
      %v470 = vunpack.c.l.b16 %v363
      %v471 = vunpack.c.h.b16 %v363
      %v472 = vunpack.c.l.b16 %v364
      %v473 = vunpack.c.l.b16 %v365
      %v474 = vunpack.c.h.b16 %v365
      %v475 = vunpack.c.l.b16 %v366
      %v476 = vunpack.c.h.b16 %v366
      %v477 = vunpack.c.l.b16 %v367
      %v478 = vunpack.c.l.b16 %v368
      %v479 = vunpack.c.h.b16 %v368
      %v480 = vunpack.c.l.b16 %v369
      %v481 = vunpack.c.h.b16 %v369
      %v482 = vunpack.c.l.b16 %v370
      %v483 = vpack.c.b16 %v448, %v443
      %v484 = vpack.c.b16 %v449, %v444
      %v485 = vpack.c.b16 %v450, %v445
      %v486 = vpack.c.b16 %v451, %v446
      %v487 = vpack.c.b16 %v452, %v447
      %v488 = vpack.c.b16 %v458, %v453
      %v489 = vpack.c.b16 %v459, %v454
      %v490 = vpack.c.b16 %v460, %v455
      %v491 = vpack.c.b16 %v461, %v456
      %v492 = vpack.c.b16 %v462, %v457
      %v493 = vpack.c.b16 %v468, %v463
      %v494 = vpack.c.b16 %v469, %v464
      %v495 = vpack.c.b16 %v470, %v465
      %v496 = vpack.c.b16 %v471, %v466
      %v497 = vpack.c.b16 %v472, %v467
      %v498 = vpack.c.b16 %v478, %v473
      %v499 = vpack.c.b16 %v479, %v474
      %v500 = vpack.c.b16 %v480, %v475
      %v501 = vpack.c.b16 %v481, %v476
      %v502 = vpack.c.b16 %v482, %v477
      %vm519 = vcmask 523264
      %v521 = vsel %vm519, %v487, 0
      %v524 = vsel %vm519, %v492, 0
      %v527 = vsel %vm519, %v497, 0
      %v530 = vsel %vm519, %v502, 0
      %532 = vmatprep.subr.bf16.mxu0 0
      %533 = vmatpush1.bf16.msra.mxu0 %v243
      %534 = vmatprep.subr.bf16.mxu0 0
      %535 = vmatpush1.bf16.msra.mxu0 %v244
      %536 = vmatprep.subr.bf16.mxu0 0
      %537 = vmatpush1.bf16.msra.mxu0 %v245
      %538 = vmatprep.subr.bf16.mxu0 0
      %539 = vmatpush1.bf16.msra.mxu0 %v246
      %540 = vmatprep.subr.bf16.mxu0 0
      %541 = vmatpush1.bf16.msra.mxu0 %v252
      %542 = vmatprep.subr.bf16.mxu0 0
      %543 = vmatpush1.bf16.msra.mxu0 %v254
      %544 = vmatprep.subr.bf16.mxu0 0
      %545 = vmatpush1.bf16.msra.mxu0 %v256
      %546 = vmatprep.subr.bf16.mxu0 0
      %547 = vmatpush1.bf16.msra.mxu0 %v258
      %548 = vmatprep.subr.bf16.mxu0 0
      %549 = vmatpush1.bf16.msra.mxu0 %v264
      %550 = vmatprep.subr.bf16.mxu0 0
      %551 = vmatpush1.bf16.msra.mxu0 %v266
      %552 = vmatprep.subr.bf16.mxu0 0
      %553 = vmatpush1.bf16.msra.mxu0 %v268
      %554 = vmatprep.subr.bf16.mxu0 0
      %555 = vmatpush1.bf16.msra.mxu0 %v270
      %556 = vmatprep.subr.bf16.mxu0 0
      %557 = vmatpush1.bf16.msra.mxu0 %v276
      %558 = vmatprep.subr.bf16.mxu0 0
      %559 = vmatpush1.bf16.msra.mxu0 %v278
      %560 = vmatprep.subr.bf16.mxu0 0
      %561 = vmatpush1.bf16.msra.mxu0 %v280
      %562 = vmatprep.subr.bf16.mxu0 0
      %563 = vmatpush1.bf16.msra.mxu0 %v282
      %564 = vmatprep.mubr.bf16.mxu0 %v484
      %565 = vmatmul.mubr.bf16.gmra.mrb[0].mxu0 %v483
      %v566 = vpop.f32.mrb[0].mxu0
      %v567 = vadd.f32 %v382, %v566
      %v568 = vpop.f32.mrb[0].mxu0
      %v569 = vpop.f32.mrb[0].mxu0
      %v570 = vadd.f32 %v387, %v569
      %v571 = vpop.f32.mrb[0].mxu0
      %572 = vmatprep.mubr.bf16.mxu0 %v489
      %573 = vmatmul.mubr.bf16.gmra.mrb[0].mxu0 %v488
      %v574 = vpop.f32.mrb[0].mxu0
      %v575 = vadd.f32 %v392, %v574
      %v576 = vpop.f32.mrb[0].mxu0
      %v577 = vpop.f32.mrb[0].mxu0
      %v578 = vadd.f32 %v397, %v577
      %v579 = vpop.f32.mrb[0].mxu0
      %580 = vmatprep.mubr.bf16.mxu0 %v494
      %581 = vmatmul.mubr.bf16.gmra.mrb[0].mxu0 %v493
      %v582 = vpop.f32.mrb[0].mxu0
      %v583 = vadd.f32 %v402, %v582
      %v584 = vpop.f32.mrb[0].mxu0
      %v585 = vpop.f32.mrb[0].mxu0
      %v586 = vadd.f32 %v407, %v585
      %v587 = vpop.f32.mrb[0].mxu0
      %588 = vmatprep.mubr.bf16.mxu0 %v499
      %589 = vmatmul.mubr.bf16.gmra.mrb[0].mxu0 %v498
      %v590 = vpop.f32.mrb[0].mxu0
      %v591 = vadd.f32 %v412, %v590
      %v592 = vpop.f32.mrb[0].mxu0
      %v593 = vpop.f32.mrb[0].mxu0
      %v594 = vadd.f32 %v417, %v593
      %v595 = vpop.f32.mrb[0].mxu0
      %596 = vdwg.mxu0
      %597 = vmatprep.subr.bf16.mxu0 0
      %598 = vmatpush1.bf16.msra.mxu0 %v288
      %599 = vmatprep.subr.bf16.mxu0 0
      %600 = vmatpush1.bf16.msra.mxu0 %v290
      %601 = vmatprep.subr.bf16.mxu0 0
      %602 = vmatpush1.bf16.msra.mxu0 %v292
      %603 = vmatprep.subr.bf16.mxu0 0
      %604 = vmatpush1.bf16.msra.mxu0 %v294
      %605 = vmatprep.subr.bf16.mxu0 0
      %606 = vmatpush1.bf16.msra.mxu0 %v300
      %607 = vmatprep.subr.bf16.mxu0 0
      %608 = vmatpush1.bf16.msra.mxu0 %v302
      %609 = vmatprep.subr.bf16.mxu0 0
      %610 = vmatpush1.bf16.msra.mxu0 %v304
      %611 = vmatprep.subr.bf16.mxu0 0
      %612 = vmatpush1.bf16.msra.mxu0 %v306
      %613 = vmatprep.subr.bf16.mxu0 0
      %614 = vmatpush1.bf16.msra.mxu0 %v312
      %615 = vmatprep.subr.bf16.mxu0 0
      %616 = vmatpush1.bf16.msra.mxu0 %v314
      %617 = vmatprep.subr.bf16.mxu0 0
      %618 = vmatpush1.bf16.msra.mxu0 %v316
      %619 = vmatprep.subr.bf16.mxu0 0
      %620 = vmatpush1.bf16.msra.mxu0 %v318
      %621 = vmatprep.subr.bf16.mxu0 0
      %622 = vmatpush1.bf16.msra.mxu0 %v324
      %623 = vmatprep.subr.bf16.mxu0 0
      %624 = vmatpush1.bf16.msra.mxu0 %v326
      %625 = vmatprep.subr.bf16.mxu0 0
      %626 = vmatpush1.bf16.msra.mxu0 %v328
      %627 = vmatprep.subr.bf16.mxu0 0
      %628 = vmatpush1.bf16.msra.mxu0 %v330
      %629 = vmatprep.mubr.bf16.mxu0 %v486
      %630 = vmatmul.mubr.bf16.gmra.mrb[0].mxu0 %v485
      %v631 = vpop.f32.mrb[0].mxu0
      %v632 = vadd.f32 %v567, %v631
      %v633 = vpop.f32.mrb[0].mxu0
      %v634 = vpop.f32.mrb[0].mxu0
      %v635 = vadd.f32 %v570, %v634
      %v636 = vpop.f32.mrb[0].mxu0
      %637 = vmatprep.mubr.bf16.mxu0 %v491
      %638 = vmatmul.mubr.bf16.gmra.mrb[0].mxu0 %v490
      %v639 = vpop.f32.mrb[0].mxu0
      %v640 = vadd.f32 %v575, %v639
      %v641 = vpop.f32.mrb[0].mxu0
      %v642 = vpop.f32.mrb[0].mxu0
      %v643 = vadd.f32 %v578, %v642
      %v644 = vpop.f32.mrb[0].mxu0
      %645 = vmatprep.mubr.bf16.mxu0 %v496
      %646 = vmatmul.mubr.bf16.gmra.mrb[0].mxu0 %v495
      %v647 = vpop.f32.mrb[0].mxu0
      %v648 = vadd.f32 %v583, %v647
      %v649 = vpop.f32.mrb[0].mxu0
      %v650 = vpop.f32.mrb[0].mxu0
      %v651 = vadd.f32 %v586, %v650
      %v652 = vpop.f32.mrb[0].mxu0
      %653 = vmatprep.mubr.bf16.mxu0 %v501
      %654 = vmatmul.mubr.bf16.gmra.mrb[0].mxu0 %v500
      %v655 = vpop.f32.mrb[0].mxu0
      %v656 = vadd.f32 %v591, %v655
      %v657 = vpop.f32.mrb[0].mxu0
      %v658 = vpop.f32.mrb[0].mxu0
      %v659 = vadd.f32 %v594, %v658
      %v660 = vpop.f32.mrb[0].mxu0
      %661 = vdwg.mxu0
      %662 = vmatprep.subr.bf16.mxu0 0
      %663 = vmatpush1.bf16.msra.mxu0 %v336
      %664 = vmatprep.subr.bf16.mxu0 0
      %665 = vmatpush1.bf16.msra.mxu0 %v338
      %666 = vmatprep.subr.bf16.mxu0 0
      %667 = vmatpush1.bf16.msra.mxu0 %v340
      %668 = vmatprep.subr.bf16.mxu0 0
      %669 = vmatpush1.bf16.msra.mxu0 %v342
      %670 = vmatprep.subr.bf16.mxu0 0
      %671 = vmatpush1.bf16.msra.mxu0 0
      %672 = vmatprep.subr.bf16.mxu0 0
      %673 = vmatpush1.bf16.msra.mxu0 0
      %674 = vmatprep.subr.bf16.mxu0 0
      %675 = vmatpush1.bf16.msra.mxu0 0
      %676 = vmatprep.subr.bf16.mxu0 0
      %677 = vmatpush1.bf16.msra.mxu0 0
      %678 = vmatprep.subr.bf16.mxu0 0
      %679 = vmatpush1.bf16.msra.mxu0 0
      %680 = vmatprep.subr.bf16.mxu0 0
      %681 = vmatpush1.bf16.msra.mxu0 0
      %682 = vmatprep.subr.bf16.mxu0 0
      %683 = vmatpush1.bf16.msra.mxu0 0
      %684 = vmatprep.subr.bf16.mxu0 0
      %685 = vmatpush1.bf16.msra.mxu0 0
      %686 = vmatprep.subr.bf16.mxu0 0
      %687 = vmatpush1.bf16.msra.mxu0 0
      %688 = vmatprep.subr.bf16.mxu0 0
      %689 = vmatpush1.bf16.msra.mxu0 0
      %690 = vmatprep.subr.bf16.mxu0 0
      %691 = vmatpush1.bf16.msra.mxu0 0
      %692 = vmatprep.subr.bf16.mxu0 0
      %693 = vmatpush1.bf16.msra.mxu0 0
      %694 = vmatprep.mubr.bf16.mxu0 0
      %695 = vmatmul.mubr.bf16.gmra.mrb[0].mxu0 %v521
      %v696 = vpop.f32.mrb[0].mxu0
      %v697 = vadd.f32 %v632, %v696
      %v698 = vpop.f32.mrb[0].mxu0
      %v699 = vpop.f32.mrb[0].mxu0
      %v700 = vadd.f32 %v635, %v699
      %v701 = vpop.f32.mrb[0].mxu0
      %702 = vmatprep.mubr.bf16.mxu0 0
      %703 = vmatmul.mubr.bf16.gmra.mrb[0].mxu0 %v524
      %v704 = vpop.f32.mrb[0].mxu0
      %v705 = vadd.f32 %v640, %v704
      %v706 = vpop.f32.mrb[0].mxu0
      %v707 = vpop.f32.mrb[0].mxu0
      %v708 = vadd.f32 %v643, %v707
      %v709 = vpop.f32.mrb[0].mxu0
      %710 = vmatprep.mubr.bf16.mxu0 0
      %711 = vmatmul.mubr.bf16.gmra.mrb[0].mxu0 %v527
      %v712 = vpop.f32.mrb[0].mxu0
      %v713 = vadd.f32 %v648, %v712
      %v714 = vpop.f32.mrb[0].mxu0
      %v715 = vpop.f32.mrb[0].mxu0
      %v716 = vadd.f32 %v651, %v715
      %v717 = vpop.f32.mrb[0].mxu0
      %718 = vmatprep.mubr.bf16.mxu0 0
      %719 = vmatmul.mubr.bf16.gmra.mrb[0].mxu0 %v530
      %v720 = vpop.f32.mrb[0].mxu0
      %v721 = vadd.f32 %v656, %v720
      %v722 = vpop.f32.mrb[0].mxu0
      %v723 = vpop.f32.mrb[0].mxu0
      %v724 = vadd.f32 %v659, %v723
      %v725 = vpop.f32.mrb[0].mxu0
      %726 = vdwg.mxu0
      %v727 = vld [vmem:[%s212] sm:$0xf]
      %v728 = vld [vmem:[%s212 + $0x4] sm:$0xf]
      %v729 = vld [vmem:[%s212 + $0x8] sm:$0xf]
      %v730 = vld [vmem:[%s212 + $0xc] sm:$0xf]
      %v731 = vunpack.c.l.bf16 %v727
      %v732 = vunpack.c.l.bf16 %v728
      %v733 = vunpack.c.l.bf16 %v729
      %v734 = vunpack.c.l.bf16 %v730
      %v735 = vadd.f32 %v697, 0.0
      %v736 = vadd.f32 %v700, 0.0
      %v737 = vadd.f32 %v705, %v731
      %v738 = vadd.f32 %v708, %v732
      %v739 = vadd.f32 %v713, %v733
      %v740 = vadd.f32 %v716, %v734
      %v741 = vadd.f32 %v721, 0.0
      %v742 = vadd.f32 %v724, 0.0
      %v743 = vmax.f32 %v735, 0.0
      %v744 = vmax.f32 %v736, 0.0
      %v745 = vmax.f32 %v737, 0.0
      %v746 = vmax.f32 %v738, 0.0
      %v747 = vmax.f32 %v739, 0.0
      %v748 = vmax.f32 %v740, 0.0
      %v749 = vmax.f32 %v741, 0.0
      %v750 = vmax.f32 %v742, 0.0
      %v751 = vpack.c.bf16 %v744, %v743
      %v752 = vpack.c.bf16 %v746, %v745
      %v753 = vpack.c.bf16 %v748, %v747
      %v754 = vpack.c.bf16 %v750, %v749
      %v759 = vunpack.c.l.b16 %v751
      %v760 = vunpack.c.h.b16 %v751
      %v761 = vunpack.c.l.b16 %v752
      %v762 = vunpack.c.h.b16 %v752
      %v763 = vunpack.c.l.b16 %v753
      %v764 = vunpack.c.h.b16 %v753
      %v765 = vunpack.c.l.b16 %v754
      %v766 = vunpack.c.h.b16 %v754
      %v767 = vpack.c.b16 %v759, %v759
      %v768 = vpack.c.b16 %v760, %v760
      %v769 = vpack.c.b16 %v761, %v761
      %v770 = vpack.c.b16 %v762, %v762
      %v771 = vpack.c.b16 %v763, %v763
      %v772 = vpack.c.b16 %v764, %v764
      %v773 = vpack.c.b16 %v765, %v765
      %v774 = vpack.c.b16 %v766, %v766
      %vm783 = vcmask 175104
      %784 = vst.msk [vmem:[%s217] sm:$0xf] %vm783, %v767
      %785 = vst.msk [vmem:[%s217 + $0x4] sm:$0xf] %vm783, %v768
      %786 = vst.msk [vmem:[%s217 + $0x8] sm:$0xf] %vm783, %v769
      %787 = vst.msk [vmem:[%s217 + $0xc] sm:$0xf] %vm783, %v770
      %788 = vst.msk [vmem:[%s217 + $0x10] sm:$0xf] %vm783, %v771
      %789 = vst.msk [vmem:[%s217 + $0x14] sm:$0xf] %vm783, %v772
      %790 = vst.msk [vmem:[%s217 + $0x18] sm:$0xf] %vm783, %v773
      %791 = vst.msk [vmem:[%s217 + $0x1c] sm:$0xf] %vm783, %v774
      %p792 = scmp.lt.s32.totalorder %s15, 1
      %s793 = scalar_select %p792, %s15, 1
      %s794 = smul.addr %s793, 8
      %s795 = smul.addr %s794, 4
      %s796 = scalar_lea.vmem %s4, %s795
      // Predicated region
      $region37: #{resnet_forward.14} parent=35 // pred_check
        %p797 = pneg %p127
      $region38: #{resnet_forward.14} parent=35 // pred_check_branch
        %799 = sbr.rel (%p797) target = $region40
      $region39: #{resnet_forward.14} parent=35 // pred_region
        _
      $region40: #{resnet_forward.14} parent=35 // pred_fallthru
        _
    $region36: #{resnet_forward.14} parent=5 // pred_fallthru
      _
    %p800 = scmp.le.s32.totalorder 2, %s10
    // Predicated region
    $region41: #{resnet_forward.14} parent=5 // pred_check
      %p801 = pneg %p800
    $region42: #{resnet_forward.14} parent=5 // pred_check_branch
      %803 = sbr.rel (%p801) target = $region44
    $region43: #{resnet_forward.14} parent=5 // pred_region
      %s804 = ssub.s32 %s10, 2
      // Predicated region
      $region45: #{resnet_forward.14} parent=43 // pred_check
        %p805 = pneg %p133
      $region46: #{resnet_forward.14} parent=43 // pred_check_branch
        %807 = sbr.rel (%p805) target = $region48
      $region47: #{resnet_forward.14} parent=43 // pred_region
        %p808 = scmp.lt.s32.totalorder %s16, 1
        %s809 = scalar_select %p808, %s16, 1
        %s810 = smul.addr %s809, 8
        %s811 = smul.addr %s810, 4
        %s812 = scalar_lea.vmem %s4, %s811
      $region48: #{resnet_forward.14} parent=43 // pred_fallthru
        _
    $region44: #{resnet_forward.14} parent=5 // pred_fallthru
      _
  $region6: #{resnet_forward.14} parent=0 // loop_footer
    %s14 = sadd.s32 1, %s10
  $region7: #{resnet_forward.14} parent=0 // loop_footer_branch
    %9 = sbr.rel target = $region3
  $region8: #{resnet_forward.14} parent=0 // loop_exit
    _

// kernel: resnet_forward.15
$region0: #{resnet_forward.15}
  #allocation0 [shape = 'u32[]', space=smem, size = 0x4, offset = 0x4, fixed_abs, tag = 'smem constant byte address 0x4 - core index']
  #allocation1 [shape = 'u32[144,128]{1,0:T(1,128)}', space=vmem, size = 0x12000, scoped, tag = 'internal scratch']
  %s0 = inlined_call_operand.vmem [shape: bf16[2,64,16], index: 0, kind: input, shape index: {}]
  %s1 = inlined_call_operand.vmem [shape: f32[10,64], index: 1, kind: input, shape index: {}]
  %s2 = inlined_call_operand.vmem [shape: f32[10,1], index: 2, kind: input, shape index: {}]
  %s3 = inlined_call_operand.vmem [shape: f32[2,10,1], index: 3, kind: output, shape index: {}]
  %s4 = sld [smem:[#allocation0]]
  $region45: #{resnet_forward.15} parent=0
    _
  %s6 = ssub.s32 1, %s4
  %s7 = scalar_select 0, %s6, %s4
  loop: start=0, step=1, limit=4
  $region2: #{resnet_forward.15} parent=0 // loop_pre_header
    _
  $region3: #{resnet_forward.15} parent=0 // loop_header
    %s9 = sphi 0, %s13
    %p10 = scmp.ge.s32.totalorder %s9, 4
    %s19 = sphi 0, %s21
    %s22 = sphi 0, %s19
    %s23 = sphi 0, %s22
    %s39 = sphi 0, %s23
    %s43 = sphi 0, %s43
    %s45 = sphi 0, %s43
    %s46 = sphi 0, %s45
    %s60 = sphi 0, %s46
    %s64 = sphi 0, %s64
    %s66 = sphi 0, %s64
    %s67 = sphi 0, %s66
    %s81 = sphi 0, %s67
    %s87 = sphi 0, %s89
    %s90 = sphi 0, %s87
    %s91 = sphi 0, %s90
    %s107 = sphi 0, %s91
  $region4: #{resnet_forward.15} parent=0 // loop_header_branch
    %12 = sbr.rel (%p10) target = $region8
  $region5: #{resnet_forward.15} parent=0 // loop_body
    %s14 = ssub.s32 %s9, 1
    %s15 = ssub.s32 %s9, 2
    %s16 = sadd.s32 %s9, 1
    %s17 = ssub.s32 %s9, %s16
    %p18 = scmp.eq.s32.totalorder %s17, 0
    %s20 = sadd.s32 %s19, 1
    %s21 = scalar_select %p18, %s19, %s20
    %p24 = pneg %p18
    %p25 = scmp.eq.s32.totalorder %s9, 1
    %p26 = por %p24, %p25
    %p27 = scmp.ne.s32.totalorder %s19, %s22
    %p28 = scmp.eq.s32.totalorder %s9, 0
    %p29 = por %p27, %p28
    %p30 = scmp.ne.s32.totalorder %s19, %s22
    %p31 = scmp.eq.s32.totalorder %s14, 1
    %p32 = por %p30, %p31
    %p33 = scmp.ne.s32.totalorder %s22, %s23
    %p34 = scmp.eq.s32.totalorder %s14, 0
    %p35 = por %p33, %p34
    %p36 = scmp.ne.s32.totalorder %s22, %s23
    %p37 = scmp.eq.s32.totalorder %s15, 1
    %p38 = por %p36, %p37
    %p40 = scmp.ne.s32.totalorder %s23, %s39
    %p41 = scmp.eq.s32.totalorder %s15, 0
    %p42 = por %p40, %p41
    %s44 = sadd.s32 %s43, 1
    %p47 = scmp.eq.s32.totalorder %s9, 1
    %p48 = scmp.ne.s32.totalorder %s43, %s45
    %p49 = scmp.eq.s32.totalorder %s9, 0
    %p50 = por %p48, %p49
    %p51 = scmp.ne.s32.totalorder %s43, %s45
    %p52 = scmp.eq.s32.totalorder %s14, 1
    %p53 = por %p51, %p52
    %p54 = scmp.ne.s32.totalorder %s45, %s46
    %p55 = scmp.eq.s32.totalorder %s14, 0
    %p56 = por %p54, %p55
    %p57 = scmp.ne.s32.totalorder %s45, %s46
    %p58 = scmp.eq.s32.totalorder %s15, 1
    %p59 = por %p57, %p58
    %p61 = scmp.ne.s32.totalorder %s46, %s60
    %p62 = scmp.eq.s32.totalorder %s15, 0
    %p63 = por %p61, %p62
    %s65 = sadd.s32 %s64, 1
    %p68 = scmp.eq.s32.totalorder %s9, 1
    %p69 = scmp.ne.s32.totalorder %s64, %s66
    %p70 = scmp.eq.s32.totalorder %s9, 0
    %p71 = por %p69, %p70
    %p72 = scmp.ne.s32.totalorder %s64, %s66
    %p73 = scmp.eq.s32.totalorder %s14, 1
    %p74 = por %p72, %p73
    %p75 = scmp.ne.s32.totalorder %s66, %s67
    %p76 = scmp.eq.s32.totalorder %s14, 0
    %p77 = por %p75, %p76
    %p78 = scmp.ne.s32.totalorder %s66, %s67
    %p79 = scmp.eq.s32.totalorder %s15, 1
    %p80 = por %p78, %p79
    %p82 = scmp.ne.s32.totalorder %s67, %s81
    %p83 = scmp.eq.s32.totalorder %s15, 0
    %p84 = por %p82, %p83
    %s85 = ssub.s32 %s9, %s16
    %p86 = scmp.eq.s32.totalorder %s85, 0
    %s88 = sadd.s32 %s87, 1
    %s89 = scalar_select %p86, %s87, %s88
    %p92 = pneg %p86
    %p93 = scmp.eq.s32.totalorder %s9, 1
    %p94 = por %p92, %p93
    %p95 = scmp.ne.s32.totalorder %s87, %s90
    %p96 = scmp.eq.s32.totalorder %s9, 0
    %p97 = por %p95, %p96
    %p98 = scmp.ne.s32.totalorder %s87, %s90
    %p99 = scmp.eq.s32.totalorder %s14, 1
    %p100 = por %p98, %p99
    %p101 = scmp.ne.s32.totalorder %s90, %s91
    %p102 = scmp.eq.s32.totalorder %s14, 0
    %p103 = por %p101, %p102
    %p104 = scmp.ne.s32.totalorder %s90, %s91
    %p105 = scmp.eq.s32.totalorder %s15, 1
    %p106 = por %p104, %p105
    %p108 = scmp.ne.s32.totalorder %s91, %s107
    %p109 = scmp.eq.s32.totalorder %s15, 0
    %p110 = por %p108, %p109
    %p111 = scmp.le.s32.totalorder 1, %s9
    %p112 = scmp.lt.s32.totalorder %s9, 3
    %p113 = pnand %p111, %p112
    %p114 = pneg %p113
    // Predicated region
    $region9: #{resnet_forward.15} parent=5 // pred_check
      _
    $region10: #{resnet_forward.15} parent=5 // pred_check_branch
      %116 = sbr.rel (%p113) target = $region12
    $region11: #{resnet_forward.15} parent=5 // pred_region
      %s117 = ssub.s32 %s9, 1
      // Predicated region
      $region13: #{resnet_forward.15} parent=11 // pred_check
        %p118 = pneg %p56
      $region14: #{resnet_forward.15} parent=11 // pred_check_branch
        %120 = sbr.rel (%p118) target = $region16
      $region15: #{resnet_forward.15} parent=11 // pred_region
        _
      $region16: #{resnet_forward.15} parent=11 // pred_fallthru
        _
      // Predicated region
      $region17: #{resnet_forward.15} parent=11 // pred_check
        %p121 = pneg %p77
      $region18: #{resnet_forward.15} parent=11 // pred_check_branch
        %123 = sbr.rel (%p121) target = $region20
      $region19: #{resnet_forward.15} parent=11 // pred_region
        _
      $region20: #{resnet_forward.15} parent=11 // pred_fallthru
        _
    $region12: #{resnet_forward.15} parent=5 // pred_fallthru
      _
    %p124 = scmp.lt.s32.totalorder %s9, 2
    // Predicated region
    $region21: #{resnet_forward.15} parent=5 // pred_check
      %p125 = pneg %p124
    $region22: #{resnet_forward.15} parent=5 // pred_check_branch
      %127 = sbr.rel (%p125) target = $region24
    $region23: #{resnet_forward.15} parent=5 // pred_region
      // Predicated region
      $region25: #{resnet_forward.15} parent=23 // pred_check
        %p128 = pneg %p29
      $region26: #{resnet_forward.15} parent=23 // pred_check_branch
        %130 = sbr.rel (%p128) target = $region28
      $region27: #{resnet_forward.15} parent=23 // pred_region
        %p131 = scmp.lt.s32.totalorder %s9, 1
        %s132 = scalar_select %p131, %s9, 1
        %s133 = smul.addr %s132, 8
        %s134 = smul.addr %s133, 4
        %s135 = scalar_lea.vmem %s0, %s134
      $region28: #{resnet_forward.15} parent=23 // pred_fallthru
        _
    $region24: #{resnet_forward.15} parent=5 // pred_fallthru
      _
    %p136 = scmp.le.s32.totalorder 1, %s9
    %p137 = scmp.lt.s32.totalorder %s9, 3
    %p138 = pnand %p136, %p137
    %p139 = pneg %p138
    // Predicated region
    $region29: #{resnet_forward.15} parent=5 // pred_check
      _
    $region30: #{resnet_forward.15} parent=5 // pred_check_branch
      %141 = sbr.rel (%p138) target = $region32
    $region31: #{resnet_forward.15} parent=5 // pred_region
      %s142 = ssub.s32 %s9, 1
      %p143 = scmp.lt.s32.totalorder %s14, 1
      %s144 = scalar_select %p143, %s14, 1
      %s145 = smul.addr %s144, 8
      %s146 = smul.addr %s145, 4
      %s147 = scalar_lea.vmem %s0, %s146
      %p148 = pneg %p35
      %p149 = pneg %p32
      %p150 = pneg %p56
      %p151 = pneg %p53
      %p152 = pneg %p77
      %p153 = pneg %p74
      %p154 = pneg %p103
      %p155 = pneg %p100
      %p156 = scmp.lt.s32.totalorder %s14, 1
      %s157 = scalar_select %p156, %s14, 1
      %s158 = smul.addr %s157, 2
      %s159 = smul.addr %s158, 8
      %s160 = scalar_lea.vmem %s3, %s159
      %p161 = scmp.lt.s32.totalorder %s14, 1
      %s162 = scalar_select %p161, %s14, 1
      %s163 = smul.addr %s162, 8
      %s164 = smul.addr %s163, 4
      %s165 = scalar_lea.vmem %s0, %s164
      %p166 = scmp.lt.s32.totalorder %s14, 1
      %s167 = scalar_select %p166, %s14, 1
      %s168 = smul.addr %s167, 2
      %s169 = smul.addr %s168, 8
      %s170 = scalar_lea.vmem %s3, %s169
      %v171 = vld [vmem:[%s165] sm:$0xf]
      %v172 = vld [vmem:[%s165 + $0x4] sm:$0xf]
      %v173 = vld [vmem:[%s165 + $0x8] sm:$0xf]
      %v174 = vld [vmem:[%s165 + $0xc] sm:$0xf]
      %v175 = vld [vmem:[%s165 + $0x10] sm:$0xf]
      %v176 = vld [vmem:[%s165 + $0x14] sm:$0xf]
      %v177 = vld [vmem:[%s165 + $0x18] sm:$0xf]
      %v178 = vld [vmem:[%s165 + $0x1c] sm:$0xf]
      %v179 = vunpack.c.l.bf16 %v171
      %v180 = vunpack.c.l.bf16 %v172
      %v181 = vunpack.c.l.bf16 %v173
      %v182 = vunpack.c.l.bf16 %v174
      %v183 = vunpack.c.l.bf16 %v175
      %v184 = vunpack.c.l.bf16 %v176
      %v185 = vunpack.c.l.bf16 %v177
      %v186 = vunpack.c.l.bf16 %v178
      %vm187 = vcmask 130048
      %v188 = vsel %vm187, %v179, 0.0
      %189 = vadd.xlane.f32.xlu0 %v188
      %v190 = vpop.xlane.xlu0 %189
      %v191 = vsel %vm187, %v180, 0.0
      %192 = vadd.xlane.f32.xlu0 %v191
      %v193 = vpop.xlane.xlu0 %192
      %v194 = vsel %vm187, %v181, 0.0
      %195 = vadd.xlane.f32.xlu0 %v194
      %v196 = vpop.xlane.xlu0 %195
      %v197 = vsel %vm187, %v182, 0.0
      %198 = vadd.xlane.f32.xlu0 %v197
      %v199 = vpop.xlane.xlu0 %198
      %v200 = vsel %vm187, %v183, 0.0
      %201 = vadd.xlane.f32.xlu0 %v200
      %v202 = vpop.xlane.xlu0 %201
      %v203 = vsel %vm187, %v184, 0.0
      %204 = vadd.xlane.f32.xlu0 %v203
      %v205 = vpop.xlane.xlu0 %204
      %v206 = vsel %vm187, %v185, 0.0
      %207 = vadd.xlane.f32.xlu0 %v206
      %v208 = vpop.xlane.xlu0 %207
      %v209 = vsel %vm187, %v186, 0.0
      %210 = vadd.xlane.f32.xlu0 %v209
      %v211 = vpop.xlane.xlu0 %210
      %v212 = vrcp.pop 16.0
      %v213 = vmul.f32 %v190, %v212
      %v214 = vmul.f32 %v193, %v212
      %v215 = vmul.f32 %v196, %v212
      %v216 = vmul.f32 %v199, %v212
      %v217 = vmul.f32 %v202, %v212
      %v218 = vmul.f32 %v205, %v212
      %v219 = vmul.f32 %v208, %v212
      %v220 = vmul.f32 %v211, %v212
      %v221 = vld [vmem:[%s1] sm:$0xff]
      %v222 = vld [vmem:[%s1 + $0x8] sm:$0x3]
      %v223 = vld [vmem:[%s2] sm:$0xff]
      %v224 = vld [vmem:[%s2 + $0x8] sm:$0x3]
      %vm225 = vcmask 523264
      %v227 = vsel %vm225, %v221, 0
      %v230 = vsel %vm225, %v222, 0
      %232 = vmatprep.subr.mxu0 0.0
      %233 = vmatpush1.msra.mxu0 %v213
      %234 = vmatprep.subr.mxu0 0.0
      %235 = vmatpush1.msra.mxu0 %v214
      %236 = vmatprep.subr.mxu0 0.0
      %237 = vmatpush1.msra.mxu0 %v215
      %238 = vmatprep.subr.mxu0 0.0
      %239 = vmatpush1.msra.mxu0 %v216
      %240 = vmatprep.subr.mxu0 0.0
      %241 = vmatpush1.msra.mxu0 %v217
      %242 = vmatprep.subr.mxu0 0.0
      %243 = vmatpush1.msra.mxu0 %v218
      %244 = vmatprep.subr.mxu0 0.0
      %245 = vmatpush1.msra.mxu0 %v219
      %246 = vmatprep.subr.mxu0 0.0
      %247 = vmatpush1.msra.mxu0 %v220
      %248 = vmatprep.subr.mxu0 0.0
      %249 = vmatpush1.msra.mxu0 0.0
      %250 = vmatprep.subr.mxu0 0.0
      %251 = vmatpush1.msra.mxu0 0.0
      %252 = vmatprep.subr.mxu0 0.0
      %253 = vmatpush1.msra.mxu0 0.0
      %254 = vmatprep.subr.mxu0 0.0
      %255 = vmatpush1.msra.mxu0 0.0
      %256 = vmatprep.subr.mxu0 0.0
      %257 = vmatpush1.msra.mxu0 0.0
      %258 = vmatprep.subr.mxu0 0.0
      %259 = vmatpush1.msra.mxu0 0.0
      %260 = vmatprep.subr.mxu0 0.0
      %261 = vmatpush1.msra.mxu0 0.0
      %262 = vmatprep.subr.mxu0 0.0
      %263 = vmatpush1.msra.mxu0 0.0
      %264 = vmatprep.subr.mxu0 0.0
      %265 = vmatpush1.msra.mxu0 0.0
      %266 = vmatprep.subr.mxu0 0.0
      %267 = vmatpush1.msra.mxu0 0.0
      %268 = vmatprep.subr.mxu0 0.0
      %269 = vmatpush1.msra.mxu0 0.0
      %270 = vmatprep.subr.mxu0 0.0
      %271 = vmatpush1.msra.mxu0 0.0
      %272 = vmatprep.subr.mxu0 0.0
      %273 = vmatpush1.msra.mxu0 0.0
      %274 = vmatprep.subr.mxu0 0.0
      %275 = vmatpush1.msra.mxu0 0.0
      %276 = vmatprep.subr.mxu0 0.0
      %277 = vmatpush1.msra.mxu0 0.0
      %278 = vmatprep.subr.mxu0 0.0
      %279 = vmatpush1.msra.mxu0 0.0
      %280 = vmatprep.subr.mxu0 0.0
      %281 = vmatpush1.msra.mxu0 0.0
      %282 = vmatprep.subr.mxu0 0.0
      %283 = vmatpush1.msra.mxu0 0.0
      %284 = vmatprep.subr.mxu0 0.0
      %285 = vmatpush1.msra.mxu0 0.0
      %286 = vmatprep.subr.mxu0 0.0
      %287 = vmatpush1.msra.mxu0 0.0
      %288 = vmatprep.subr.mxu0 0.0
      %289 = vmatpush1.msra.mxu0 0.0
      %290 = vmatprep.subr.mxu0 0.0
      %291 = vmatpush1.msra.mxu0 0.0
      %292 = vmatprep.subr.mxu0 0.0
      %293 = vmatpush1.msra.mxu0 0.0
      %294 = vmatprep.subr.mxu0 0.0
      %295 = vmatpush1.msra.mxu0 0.0
      %296 = vmatprep.mubr.f32.mxu0 0.0
      %297 = vmatmul.mubr.f32.gmra.mrb[0].mxu0 %v227
      %v298 = vpop.f32.mrb[0].mxu0
      %v299 = vadd.f32 %v223, %v298
      %v300 = vpop.f32.mrb[0].mxu0
      %301 = vmatprep.mubr.f32.mxu0 0.0
      %302 = vmatmul.mubr.f32.gmra.mrb[0].mxu0 %v230
      %v303 = vpop.f32.mrb[0].mxu0
      %v304 = vadd.f32 %v224, %v303
      %v305 = vpop.f32.mrb[0].mxu0
      %306 = vdwg.mxu0
      %vm307 = vcmask 7168
      %308 = vst.msk [vmem:[%s170] sm:$0xff] %vm307, %v299
      %vm309 = vcmask 1024
      %310 = vst.msk [vmem:[%s170 + $0x8] sm:$0x3] %vm309, %v304
      %p311 = scmp.lt.s32.totalorder %s14, 1
      %s312 = scalar_select %p311, %s14, 1
      %s313 = smul.addr %s312, 2
      %s314 = smul.addr %s313, 8
      %s315 = scalar_lea.vmem %s3, %s314
      // Predicated region
      $region33: #{resnet_forward.15} parent=31 // pred_check
        %p316 = pneg %p100
      $region34: #{resnet_forward.15} parent=31 // pred_check_branch
        %318 = sbr.rel (%p316) target = $region36
      $region35: #{resnet_forward.15} parent=31 // pred_region
        _
      $region36: #{resnet_forward.15} parent=31 // pred_fallthru
        _
    $region32: #{resnet_forward.15} parent=5 // pred_fallthru
      _
    %p319 = scmp.le.s32.totalorder 2, %s9
    // Predicated region
    $region37: #{resnet_forward.15} parent=5 // pred_check
      %p320 = pneg %p319
    $region38: #{resnet_forward.15} parent=5 // pred_check_branch
      %322 = sbr.rel (%p320) target = $region40
    $region39: #{resnet_forward.15} parent=5 // pred_region
      %s323 = ssub.s32 %s9, 2
      // Predicated region
      $region41: #{resnet_forward.15} parent=39 // pred_check
        %p324 = pneg %p106
      $region42: #{resnet_forward.15} parent=39 // pred_check_branch
        %326 = sbr.rel (%p324) target = $region44
      $region43: #{resnet_forward.15} parent=39 // pred_region
        %p327 = scmp.lt.s32.totalorder %s15, 1
        %s328 = scalar_select %p327, %s15, 1
        %s329 = smul.addr %s328, 2
        %s330 = smul.addr %s329, 8
        %s331 = scalar_lea.vmem %s3, %s330
      $region44: #{resnet_forward.15} parent=39 // pred_fallthru
        _
    $region40: #{resnet_forward.15} parent=5 // pred_fallthru
      _
  $region6: #{resnet_forward.15} parent=0 // loop_footer
    %s13 = sadd.s32 1, %s9
  $region7: #{resnet_forward.15} parent=0 // loop_footer_branch
    %8 = sbr.rel target = $region3
  $region8: #{resnet_forward.15} parent=0 // loop_exit
    _

</llo_original>
